<compile_context>
chip_gen: v7x
topology: tpu7x:2x2x1
jax: 0.10.0
libtpu: 0.0.40
codegen_flags: <defaults>
</compile_context>

<pallas_src>
import functools

import numpy as np
import jax
import jax.numpy as jnp
from jax.experimental import pallas as pl
from jax.experimental.pallas import tpu as pltpu


def upproj_kernel(x_ref, xs_ref, wq_ref, ws_ref, *rest, group_size, has_bias):
    if has_bias:
        b_ref, g_ref, o_ref, acc_ref, dw_ref = rest
    else:
        b_ref = None
        g_ref, o_ref, acc_ref, dw_ref = rest

    i = pl.program_id(1)        # M-tile index (grid order: j, i, k)
    k = pl.program_id(2)        # K-tile index

    @pl.when(k == 0)
    def _():
        acc_ref[...] = jnp.zeros_like(acc_ref)

    # bf16 dequantized-weight cache for the current N tile: slab k.
    dwk = dw_ref.at[k]                                       # [tk, tn] bf16 view

    # Dequantize this (k, j) weight tile only on the first M tile; later M
    # tiles reuse the strip already resident in VMEM.  j is the outermost grid
    # axis, so the cache is rebuilt whenever the N tile changes.
    @pl.when(i == 0)
    def _():
        wq = wq_ref[...]                                     # [tkp, tn] int32
        ws = ws_ref[...]                                     # [tg, tn] bf16 group scales
        tkp, tn = wq.shape
        ngs = tkp // group_size                              # groups per nibble slab
        for j in range(8):
            # Arithmetic-shift sign extension: 2 int ops per nibble (1 for j==7).
            if j < 7:
                nib = (wq << (28 - 4 * j)) >> 28
            else:
                nib = wq >> 28
            nib = nib.astype(jnp.bfloat16)                   # exact: values in [-8, 7]
            sc = ws[j * ngs:(j + 1) * ngs]                   # [ngs, tn]
            # int4 * e4m3 products carry <= 7 significant bits -> exact in bf16.
            dq = (nib.reshape(ngs, group_size, tn) * sc[:, None, :]).reshape(tkp, tn)
            # Nibble j of packed row c is K-row j*tkp + c of this tile, so the
            # slab stores restore original K order with no concat / lane relayout.
            dwk[j * tkp:(j + 1) * tkp, :] = dq
        # NOTE(v7x): dequantizing to e4m3 to hit the fp8 MXU path would not be
        # exact (int4 x e4m3-scale products overflow e4m3's significand), so the
        # matmul stays on the bf16 MXU path on all generations.

    # bf16 MXU matmul with f32 accumulation; fp8 e4m3 -> bf16 is exact (1 cast).
    x = x_ref[...].astype(jnp.bfloat16)
    acc_ref[...] += jnp.dot(x, dwk[...], preferred_element_type=jnp.float32)

    # Epilogue on the last K step only.
    @pl.when(k == pl.num_programs(2) - 1)
    def _():
        y = acc_ref[...] * xs_ref[...].astype(jnp.float32)   # per-token act scale
        if has_bias:
            y = y + b_ref[...].astype(jnp.float32)           # optional bias
        y = y * g_ref[...].astype(jnp.float32)               # gate_score
        o_ref[...] = y.astype(o_ref.dtype)


def up_proj(x_fp8, x_scale_bf16, weight_i4_kn, weight_scale_fp8, bias_bf16,
            gate_score, group_size, pack_block, *, tm=256, tn=256):
    """weight_i4_kn: [K//8, N] int32 packed with pack_int4_kn(..., pack_block);
    weight_scale_fp8: [N, K//group_size] fp8 (torch layout).  The kernel's K
    tile is tied to pack_block so layout and tiling can never disagree."""
    B, S, K = x_fp8.shape
    Kp, N = weight_i4_kn.shape
    assert Kp * 8 == K
    M = B * S

    tk = pack_block                      # K tile == pack granularity (metadata)
    tm, tn = min(tm, M), min(tn, N)
    assert M % tm == 0 and N % tn == 0 and K % tk == 0
    assert tk % (8 * group_size) == 0    # nibble slabs align with scale groups
    assert (tk // 8) % group_size == 0   # slab-aligned dequant validity guard
    assert (tk // 8) % 8 == 0 and tm % 8 == 0 and tn % 128 == 0

    x2 = x_fp8.reshape(M, K)
    xs2 = x_scale_bf16.reshape(M, 1)
    g2 = gate_score.reshape(M, N)
    # Pre-cast fp8 group scales to bf16 on the host (exact; avoids sub-packed
    # fp8 scale tiles inside the kernel) and transpose to [G, N].
    ws_gn = weight_scale_fp8.T.astype(jnp.bfloat16)

    has_bias = bias_bf16 is not None

    tkp = tk // 8
    tg = tk // group_size
    grid = (N // tn, M // tm, K // tk)   # j outermost -> dw cache reused over i

    operands = [x2, xs2, weight_i4_kn, ws_gn]
    in_specs = [
        pl.BlockSpec((tm, tk), lambda j, i, k: (i, k)),      # x (fp8)
        pl.BlockSpec((tm, 1), lambda j, i, k: (i, 0)),       # per-token scale
        pl.BlockSpec((tkp, tn), lambda j, i, k: (k, j)),     # packed int4 weight
        pl.BlockSpec((tg, tn), lambda j, i, k: (k, j)),      # group scales (bf16)
    ]
    if has_bias:
        operands.append(bias_bf16.reshape(1, N))
        in_specs.append(pl.BlockSpec((1, tn), lambda j, i, k: (0, j)))  # bias
    operands.append(g2)
    in_specs.append(pl.BlockSpec((tm, tn), lambda j, i, k: (i, j)))     # gate score

    kernel = functools.partial(upproj_kernel, group_size=group_size,
                               has_bias=has_bias)
    out = pl.pallas_call(
        kernel,
        out_shape=jax.ShapeDtypeStruct((M, N), jnp.bfloat16),
        grid_spec=pltpu.PrefetchScalarGridSpec(
            num_scalar_prefetch=0,
            grid=grid,
            in_specs=in_specs,
            out_specs=pl.BlockSpec((tm, tn), lambda j, i, k: (i, j)),
            scratch_shapes=[
                pltpu.VMEM((tm, tn), jnp.float32),              # f32 accumulator
                pltpu.VMEM((K // tk, tk, tn), jnp.bfloat16),    # dequant strip cache
            ],
        ),
        compiler_params=pltpu.CompilerParams(
            # Shard megacore on j only; i must be "arbitrary" so every core
            # executes i==0 and initializes its own dw cache.
            dimension_semantics=("parallel", "arbitrary", "arbitrary"),
            vmem_limit_bytes=48 * 1024 * 1024,
        ),
    )(*operands)
    return out.reshape(B, S, N)


def pack_int4_kn(q_kn, pack_block):
    """Pack int4 weights laid out [K, N] into [K//8, N] int32.
    Per K chunk of size pack_block (pbp = pack_block//8): nibble j of packed
    row c holds the weight at K-row j*pbp + c of that chunk (matches the
    kernel's unpack).  pack_block is metadata that must be passed to up_proj."""
    K, N = q_kn.shape
    assert K % pack_block == 0 and pack_block % 8 == 0
    pbp = pack_block // 8
    qn = (q_kn.astype(np.int64) & 0xF).astype(np.uint32)
    packed = np.zeros((K // 8, N), dtype=np.uint32)
    for t in range(K // pack_block):
        blk = qn[t * pack_block:(t + 1) * pack_block]
        dst = packed[t * pbp:(t + 1) * pbp]
        for j in range(8):
            dst |= blk[j * pbp:(j + 1) * pbp] << np.uint32(4 * j)
    return jnp.asarray(packed.view(np.int32))


if __name__ == "__main__":
    B, S, K, N = 2, 256, 1024, 512
    group_size = 32
    PACK_BLOCK = 512            # kernel K tile (tk) == pack granularity
    TM, TN = 256, 256
    G = K // group_size

    key = jax.random.PRNGKey(0)
    kx, kw, kb, kg = jax.random.split(key, 4)

    # ---- activations: per-token fp8 (e4m3) quantization ----
    x = jax.random.normal(kx, (B, S, K), dtype=jnp.float32)
    xs = (jnp.max(jnp.abs(x), axis=-1, keepdims=True) / 448.0).astype(jnp.bfloat16)
    x_fp8 = (x / xs.astype(jnp.float32)).astype(jnp.float8_e4m3fn)

    # ---- weights: group-wise int4 quantization, fp8 scales ----
    w = jax.random.normal(kw, (N, K), dtype=jnp.float32) * 0.1
    w_groups = w.reshape(N, G, group_size)
    scales = (jnp.max(jnp.abs(w_groups), axis=-1) / 7.0).astype(jnp.float8_e4m3fn)  # [N, G]
    scales_f32 = scales.astype(jnp.float32)
    q = jnp.clip(jnp.round(w / jnp.repeat(scales_f32, group_size, axis=1)),
                 -8, 7).astype(jnp.int32)                                           # [N, K]

    # pack in the kernel's [K, N] layout (pack_block is explicit metadata)
    weight_i4 = pack_int4_kn(np.asarray(q).T, PACK_BLOCK)    # [K//8, N] int32

    bias = (jax.random.normal(kb, (N,), dtype=jnp.float32) * 0.05).astype(jnp.bfloat16)
    gate = jax.nn.sigmoid(
        jax.random.normal(kg, (B, S, N), dtype=jnp.float32)).astype(jnp.bfloat16)

    # ---- kernel (with bias) ----
    out = up_proj(x_fp8, xs, weight_i4, scales, bias, gate, group_size,
                  PACK_BLOCK, tm=TM, tn=TN)
    out = jax.block_until_ready(out)

    # ---- pure-JAX reference (matches UpProjFunction.forward) ----
    dw_ref = q.astype(jnp.float32) * jnp.repeat(scales_f32, group_size, axis=1)  # [N, K]
    xf = x_fp8.astype(jnp.float32).reshape(B * S, K)
    y = jnp.einsum("mk,nk->mn", xf, dw_ref, precision=jax.lax.Precision.HIGHEST)
    y = y * xs.astype(jnp.float32).reshape(B * S, 1)
    y_bias = y + bias.astype(jnp.float32)[None, :]
    gate_f32 = gate.astype(jnp.float32).reshape(B * S, N)
    y_ref = (y_bias * gate_f32).reshape(B, S, N)

    np.testing.assert_allclose(np.asarray(out, dtype=np.float32),
                               np.asarray(y_ref), rtol=2e-2, atol=2e-2)

    # ---- kernel (bias=None path, skipped at trace time) ----
    out_nb = up_proj(x_fp8, xs, weight_i4, scales, None, gate, group_size,
                     PACK_BLOCK, tm=TM, tn=TN)
    out_nb = jax.block_until_ready(out_nb)
    y_ref_nb = (y * gate_f32).reshape(B, S, N)
    np.testing.assert_allclose(np.asarray(out_nb, dtype=np.float32),
                               np.asarray(y_ref_nb), rtol=2e-2, atol=2e-2)

    print("KERNEL_OK")
</pallas_src>

<mosaic_0001>
module attributes {stable_mosaic.version = 11 : i64} {
  func.func @upproj_kernel(%arg0: i32, %arg1: i32, %arg2: i32, %arg3: memref<256x512xf8E4M3FN, #tpu.memory_space<vmem>>, %arg4: memref<256x1xbf16, #tpu.memory_space<vmem>>, %arg5: memref<64x256xi32, #tpu.memory_space<vmem>>, %arg6: memref<16x256xbf16, #tpu.memory_space<vmem>>, %arg7: memref<1x256xbf16, #tpu.memory_space<vmem>>, %arg8: memref<256x256xbf16, #tpu.memory_space<vmem>>, %arg9: memref<256x256xbf16, #tpu.memory_space<vmem>>, %arg10: memref<256x256xf32, #tpu.memory_space<vmem>>, %arg11: memref<2x512x256xbf16, #tpu.memory_space<vmem>>) attributes {dimension_semantics = [#tpu.dimension_semantics<parallel>, #tpu.dimension_semantics<arbitrary>, #tpu.dimension_semantics<arbitrary>], iteration_bounds = array<i64: 2, 2, 2>, scalar_prefetch = 0 : i64, scratch_operands = 2 : i64, tpu.core_type = #tpu.core_type<tc>, window_params = [{transform_indices = @transform_0, window_bounds = array<i64: 256, 512>}, {transform_indices = @transform_1, window_bounds = array<i64: 256, 1>}, {transform_indices = @transform_2, window_bounds = array<i64: 64, 256>}, {transform_indices = @transform_3, window_bounds = array<i64: 16, 256>}, {transform_indices = @transform_4, window_bounds = array<i64: 1, 256>}, {transform_indices = @transform_5, window_bounds = array<i64: 256, 256>}, {transform_indices = @transform_6, window_bounds = array<i64: 256, 256>}]} {
    %c0_i32 = arith.constant 0 : i32
    %0 = arith.cmpi eq, %arg2, %c0_i32 : i32
    %1 = arith.extui %0 : i1 to i32
    %c0_i32_0 = arith.constant 0 : i32
    %2 = arith.cmpi ne, %1, %c0_i32_0 : i32
    scf.if %2 {
      %cst_11 = arith.constant 0.000000e+00 : f32
      %18 = vector.broadcast %cst_11 : f32 to vector<256x256xf32>
      %c0_12 = arith.constant 0 : index
      %c0_13 = arith.constant 0 : index
      %19 = vector.load %arg10[%c0_12, %c0_13] : memref<256x256xf32, #tpu.memory_space<vmem>>, vector<256x256xf32>
      tpu.vector_store %arg10[%c0_12, %c0_13], %18 {strides = array<i32>} : memref<256x256xf32, #tpu.memory_space<vmem>>, vector<256x256xf32>,
    } else {
    }
    %c0_i32_1 = arith.constant 0 : i32
    %3 = arith.cmpi eq, %arg1, %c0_i32_1 : i32
    %4 = arith.extui %3 : i1 to i32
    %c0_i32_2 = arith.constant 0 : i32
    %5 = arith.cmpi ne, %4, %c0_i32_2 : i32
    scf.if %5 {
      %c0_11 = arith.constant 0 : index
      %c0_12 = arith.constant 0 : index
      %18 = vector.load %arg5[%c0_11, %c0_12] : memref<64x256xi32, #tpu.memory_space<vmem>>, vector<64x256xi32>
      %c0_13 = arith.constant 0 : index
      %c0_14 = arith.constant 0 : index
      %19 = vector.load %arg6[%c0_13, %c0_14] : memref<16x256xbf16, #tpu.memory_space<vmem>>, vector<16x256xbf16>
      %c28_i32 = arith.constant 28 : i32
      %20 = vector.broadcast %c28_i32 : i32 to vector<64x256xi32>
      %21 = arith.shli %18, %20 : vector<64x256xi32>
      %c28_i32_15 = arith.constant 28 : i32
      %22 = vector.broadcast %c28_i32_15 : i32 to vector<64x256xi32>
      %23 = arith.shrsi %21, %22 : vector<64x256xi32>
      %24 = arith.sitofp %23 : vector<64x256xi32> to vector<64x256xbf16>
      %25 = vector.extract_strided_slice %19 {offsets = [0, 0], sizes = [2, 256], strides = [1, 1]} : vector<16x256xbf16> to vector<2x256xbf16>
      %26 = vector.shape_cast %24 : vector<64x256xbf16> to vector<2x32x256xbf16>
      %27 = vector.shape_cast %25 : vector<2x256xbf16> to vector<2x1x256xbf16>
      %28 = vector.broadcast %27 : vector<2x1x256xbf16> to vector<2x32x256xbf16>
      %29 = arith.mulf %26, %28 : vector<2x32x256xbf16>
      %30 = vector.shape_cast %29 : vector<2x32x256xbf16> to vector<64x256xbf16>
      %c0_i32_16 = arith.constant 0 : i32
      %c0_i32_17 = arith.constant 0 : i32
      %31 = tpu.memref_slice %arg11[%arg2, %c0_i32_16, %c0_i32_17] : memref<2x512x256xbf16, #tpu.memory_space<vmem>> -> memref<1x512x256xbf16, #tpu.memory_space<vmem>>
      %32 = tpu.memref_squeeze %31 : memref<1x512x256xbf16, #tpu.memory_space<vmem>> -> memref<512x256xbf16, #tpu.memory_space<vmem>>
      %c0_18 = arith.constant 0 : index
      %c0_19 = arith.constant 0 : index
      %33 = vector.load %32[%c0_18, %c0_19] : memref<512x256xbf16, #tpu.memory_space<vmem>>, vector<64x256xbf16>
      tpu.vector_store %32[%c0_18, %c0_19], %30 {strides = array<i32>} : memref<512x256xbf16, #tpu.memory_space<vmem>>, vector<64x256xbf16>,
      %c24_i32 = arith.constant 24 : i32
      %34 = vector.broadcast %c24_i32 : i32 to vector<64x256xi32>
      %35 = arith.shli %18, %34 : vector<64x256xi32>
      %c28_i32_20 = arith.constant 28 : i32
      %36 = vector.broadcast %c28_i32_20 : i32 to vector<64x256xi32>
      %37 = arith.shrsi %35, %36 : vector<64x256xi32>
      %38 = arith.sitofp %37 : vector<64x256xi32> to vector<64x256xbf16>
      %39 = vector.extract_strided_slice %19 {offsets = [2, 0], sizes = [2, 256], strides = [1, 1]} : vector<16x256xbf16> to vector<2x256xbf16>
      %40 = vector.shape_cast %38 : vector<64x256xbf16> to vector<2x32x256xbf16>
      %41 = vector.shape_cast %39 : vector<2x256xbf16> to vector<2x1x256xbf16>
      %42 = vector.broadcast %41 : vector<2x1x256xbf16> to vector<2x32x256xbf16>
      %43 = arith.mulf %40, %42 : vector<2x32x256xbf16>
      %44 = vector.shape_cast %43 : vector<2x32x256xbf16> to vector<64x256xbf16>
      %c0_i32_21 = arith.constant 0 : i32
      %c0_i32_22 = arith.constant 0 : i32
      %45 = tpu.memref_slice %arg11[%arg2, %c0_i32_21, %c0_i32_22] : memref<2x512x256xbf16, #tpu.memory_space<vmem>> -> memref<1x512x256xbf16, #tpu.memory_space<vmem>>
      %46 = tpu.memref_squeeze %45 : memref<1x512x256xbf16, #tpu.memory_space<vmem>> -> memref<512x256xbf16, #tpu.memory_space<vmem>>
      %c64 = arith.constant 64 : index
      %c0_23 = arith.constant 0 : index
      %47 = vector.load %46[%c64, %c0_23] : memref<512x256xbf16, #tpu.memory_space<vmem>>, vector<64x256xbf16>
      tpu.vector_store %46[%c64, %c0_23], %44 {strides = array<i32>} : memref<512x256xbf16, #tpu.memory_space<vmem>>, vector<64x256xbf16>,
      %c20_i32 = arith.constant 20 : i32
      %48 = vector.broadcast %c20_i32 : i32 to vector<64x256xi32>
      %49 = arith.shli %18, %48 : vector<64x256xi32>
      %c28_i32_24 = arith.constant 28 : i32
      %50 = vector.broadcast %c28_i32_24 : i32 to vector<64x256xi32>
      %51 = arith.shrsi %49, %50 : vector<64x256xi32>
      %52 = arith.sitofp %51 : vector<64x256xi32> to vector<64x256xbf16>
      %53 = vector.extract_strided_slice %19 {offsets = [4, 0], sizes = [2, 256], strides = [1, 1]} : vector<16x256xbf16> to vector<2x256xbf16>
      %54 = vector.shape_cast %52 : vector<64x256xbf16> to vector<2x32x256xbf16>
      %55 = vector.shape_cast %53 : vector<2x256xbf16> to vector<2x1x256xbf16>
      %56 = vector.broadcast %55 : vector<2x1x256xbf16> to vector<2x32x256xbf16>
      %57 = arith.mulf %54, %56 : vector<2x32x256xbf16>
      %58 = vector.shape_cast %57 : vector<2x32x256xbf16> to vector<64x256xbf16>
      %c0_i32_25 = arith.constant 0 : i32
      %c0_i32_26 = arith.constant 0 : i32
      %59 = tpu.memref_slice %arg11[%arg2, %c0_i32_25, %c0_i32_26] : memref<2x512x256xbf16, #tpu.memory_space<vmem>> -> memref<1x512x256xbf16, #tpu.memory_space<vmem>>
      %60 = tpu.memref_squeeze %59 : memref<1x512x256xbf16, #tpu.memory_space<vmem>> -> memref<512x256xbf16, #tpu.memory_space<vmem>>
      %c128 = arith.constant 128 : index
      %c0_27 = arith.constant 0 : index
      %61 = vector.load %60[%c128, %c0_27] : memref<512x256xbf16, #tpu.memory_space<vmem>>, vector<64x256xbf16>
      tpu.vector_store %60[%c128, %c0_27], %58 {strides = array<i32>} : memref<512x256xbf16, #tpu.memory_space<vmem>>, vector<64x256xbf16>,
      %c16_i32 = arith.constant 16 : i32
      %62 = vector.broadcast %c16_i32 : i32 to vector<64x256xi32>
      %63 = arith.shli %18, %62 : vector<64x256xi32>
      %c28_i32_28 = arith.constant 28 : i32
      %64 = vector.broadcast %c28_i32_28 : i32 to vector<64x256xi32>
      %65 = arith.shrsi %63, %64 : vector<64x256xi32>
      %66 = arith.sitofp %65 : vector<64x256xi32> to vector<64x256xbf16>
      %67 = vector.extract_strided_slice %19 {offsets = [6, 0], sizes = [2, 256], strides = [1, 1]} : vector<16x256xbf16> to vector<2x256xbf16>
      %68 = vector.shape_cast %66 : vector<64x256xbf16> to vector<2x32x256xbf16>
      %69 = vector.shape_cast %67 : vector<2x256xbf16> to vector<2x1x256xbf16>
      %70 = vector.broadcast %69 : vector<2x1x256xbf16> to vector<2x32x256xbf16>
      %71 = arith.mulf %68, %70 : vector<2x32x256xbf16>
      %72 = vector.shape_cast %71 : vector<2x32x256xbf16> to vector<64x256xbf16>
      %c0_i32_29 = arith.constant 0 : i32
      %c0_i32_30 = arith.constant 0 : i32
      %73 = tpu.memref_slice %arg11[%arg2, %c0_i32_29, %c0_i32_30] : memref<2x512x256xbf16, #tpu.memory_space<vmem>> -> memref<1x512x256xbf16, #tpu.memory_space<vmem>>
      %74 = tpu.memref_squeeze %73 : memref<1x512x256xbf16, #tpu.memory_space<vmem>> -> memref<512x256xbf16, #tpu.memory_space<vmem>>
      %c192 = arith.constant 192 : index
      %c0_31 = arith.constant 0 : index
      %75 = vector.load %74[%c192, %c0_31] : memref<512x256xbf16, #tpu.memory_space<vmem>>, vector<64x256xbf16>
      tpu.vector_store %74[%c192, %c0_31], %72 {strides = array<i32>} : memref<512x256xbf16, #tpu.memory_space<vmem>>, vector<64x256xbf16>,
      %c12_i32 = arith.constant 12 : i32
      %76 = vector.broadcast %c12_i32 : i32 to vector<64x256xi32>
      %77 = arith.shli %18, %76 : vector<64x256xi32>
      %c28_i32_32 = arith.constant 28 : i32
      %78 = vector.broadcast %c28_i32_32 : i32 to vector<64x256xi32>
      %79 = arith.shrsi %77, %78 : vector<64x256xi32>
      %80 = arith.sitofp %79 : vector<64x256xi32> to vector<64x256xbf16>
      %81 = vector.extract_strided_slice %19 {offsets = [8, 0], sizes = [2, 256], strides = [1, 1]} : vector<16x256xbf16> to vector<2x256xbf16>
      %82 = vector.shape_cast %80 : vector<64x256xbf16> to vector<2x32x256xbf16>
      %83 = vector.shape_cast %81 : vector<2x256xbf16> to vector<2x1x256xbf16>
      %84 = vector.broadcast %83 : vector<2x1x256xbf16> to vector<2x32x256xbf16>
      %85 = arith.mulf %82, %84 : vector<2x32x256xbf16>
      %86 = vector.shape_cast %85 : vector<2x32x256xbf16> to vector<64x256xbf16>
      %c0_i32_33 = arith.constant 0 : i32
      %c0_i32_34 = arith.constant 0 : i32
      %87 = tpu.memref_slice %arg11[%arg2, %c0_i32_33, %c0_i32_34] : memref<2x512x256xbf16, #tpu.memory_space<vmem>> -> memref<1x512x256xbf16, #tpu.memory_space<vmem>>
      %88 = tpu.memref_squeeze %87 : memref<1x512x256xbf16, #tpu.memory_space<vmem>> -> memref<512x256xbf16, #tpu.memory_space<vmem>>
      %c256 = arith.constant 256 : index
      %c0_35 = arith.constant 0 : index
      %89 = vector.load %88[%c256, %c0_35] : memref<512x256xbf16, #tpu.memory_space<vmem>>, vector<64x256xbf16>
      tpu.vector_store %88[%c256, %c0_35], %86 {strides = array<i32>} : memref<512x256xbf16, #tpu.memory_space<vmem>>, vector<64x256xbf16>,
      %c8_i32 = arith.constant 8 : i32
      %90 = vector.broadcast %c8_i32 : i32 to vector<64x256xi32>
      %91 = arith.shli %18, %90 : vector<64x256xi32>
      %c28_i32_36 = arith.constant 28 : i32
      %92 = vector.broadcast %c28_i32_36 : i32 to vector<64x256xi32>
      %93 = arith.shrsi %91, %92 : vector<64x256xi32>
      %94 = arith.sitofp %93 : vector<64x256xi32> to vector<64x256xbf16>
      %95 = vector.extract_strided_slice %19 {offsets = [10, 0], sizes = [2, 256], strides = [1, 1]} : vector<16x256xbf16> to vector<2x256xbf16>
      %96 = vector.shape_cast %94 : vector<64x256xbf16> to vector<2x32x256xbf16>
      %97 = vector.shape_cast %95 : vector<2x256xbf16> to vector<2x1x256xbf16>
      %98 = vector.broadcast %97 : vector<2x1x256xbf16> to vector<2x32x256xbf16>
      %99 = arith.mulf %96, %98 : vector<2x32x256xbf16>
      %100 = vector.shape_cast %99 : vector<2x32x256xbf16> to vector<64x256xbf16>
      %c0_i32_37 = arith.constant 0 : i32
      %c0_i32_38 = arith.constant 0 : i32
      %101 = tpu.memref_slice %arg11[%arg2, %c0_i32_37, %c0_i32_38] : memref<2x512x256xbf16, #tpu.memory_space<vmem>> -> memref<1x512x256xbf16, #tpu.memory_space<vmem>>
      %102 = tpu.memref_squeeze %101 : memref<1x512x256xbf16, #tpu.memory_space<vmem>> -> memref<512x256xbf16, #tpu.memory_space<vmem>>
      %c320 = arith.constant 320 : index
      %c0_39 = arith.constant 0 : index
      %103 = vector.load %102[%c320, %c0_39] : memref<512x256xbf16, #tpu.memory_space<vmem>>, vector<64x256xbf16>
      tpu.vector_store %102[%c320, %c0_39], %100 {strides = array<i32>} : memref<512x256xbf16, #tpu.memory_space<vmem>>, vector<64x256xbf16>,
      %c4_i32 = arith.constant 4 : i32
      %104 = vector.broadcast %c4_i32 : i32 to vector<64x256xi32>
      %105 = arith.shli %18, %104 : vector<64x256xi32>
      %c28_i32_40 = arith.constant 28 : i32
      %106 = vector.broadcast %c28_i32_40 : i32 to vector<64x256xi32>
      %107 = arith.shrsi %105, %106 : vector<64x256xi32>
      %108 = arith.sitofp %107 : vector<64x256xi32> to vector<64x256xbf16>
      %109 = vector.extract_strided_slice %19 {offsets = [12, 0], sizes = [2, 256], strides = [1, 1]} : vector<16x256xbf16> to vector<2x256xbf16>
      %110 = vector.shape_cast %108 : vector<64x256xbf16> to vector<2x32x256xbf16>
      %111 = vector.shape_cast %109 : vector<2x256xbf16> to vector<2x1x256xbf16>
      %112 = vector.broadcast %111 : vector<2x1x256xbf16> to vector<2x32x256xbf16>
      %113 = arith.mulf %110, %112 : vector<2x32x256xbf16>
      %114 = vector.shape_cast %113 : vector<2x32x256xbf16> to vector<64x256xbf16>
      %c0_i32_41 = arith.constant 0 : i32
      %c0_i32_42 = arith.constant 0 : i32
      %115 = tpu.memref_slice %arg11[%arg2, %c0_i32_41, %c0_i32_42] : memref<2x512x256xbf16, #tpu.memory_space<vmem>> -> memref<1x512x256xbf16, #tpu.memory_space<vmem>>
      %116 = tpu.memref_squeeze %115 : memref<1x512x256xbf16, #tpu.memory_space<vmem>> -> memref<512x256xbf16, #tpu.memory_space<vmem>>
      %c384 = arith.constant 384 : index
      %c0_43 = arith.constant 0 : index
      %117 = vector.load %116[%c384, %c0_43] : memref<512x256xbf16, #tpu.memory_space<vmem>>, vector<64x256xbf16>
      tpu.vector_store %116[%c384, %c0_43], %114 {strides = array<i32>} : memref<512x256xbf16, #tpu.memory_space<vmem>>, vector<64x256xbf16>,
      %c28_i32_44 = arith.constant 28 : i32
      %118 = vector.broadcast %c28_i32_44 : i32 to vector<64x256xi32>
      %119 = arith.shrsi %18, %118 : vector<64x256xi32>
      %120 = arith.sitofp %119 : vector<64x256xi32> to vector<64x256xbf16>
      %121 = vector.extract_strided_slice %19 {offsets = [14, 0], sizes = [2, 256], strides = [1, 1]} : vector<16x256xbf16> to vector<2x256xbf16>
      %122 = vector.shape_cast %120 : vector<64x256xbf16> to vector<2x32x256xbf16>
      %123 = vector.shape_cast %121 : vector<2x256xbf16> to vector<2x1x256xbf16>
      %124 = vector.broadcast %123 : vector<2x1x256xbf16> to vector<2x32x256xbf16>
      %125 = arith.mulf %122, %124 : vector<2x32x256xbf16>
      %126 = vector.shape_cast %125 : vector<2x32x256xbf16> to vector<64x256xbf16>
      %c0_i32_45 = arith.constant 0 : i32
      %c0_i32_46 = arith.constant 0 : i32
      %127 = tpu.memref_slice %arg11[%arg2, %c0_i32_45, %c0_i32_46] : memref<2x512x256xbf16, #tpu.memory_space<vmem>> -> memref<1x512x256xbf16, #tpu.memory_space<vmem>>
      %128 = tpu.memref_squeeze %127 : memref<1x512x256xbf16, #tpu.memory_space<vmem>> -> memref<512x256xbf16, #tpu.memory_space<vmem>>
      %c448 = arith.constant 448 : index
      %c0_47 = arith.constant 0 : index
      %129 = vector.load %128[%c448, %c0_47] : memref<512x256xbf16, #tpu.memory_space<vmem>>, vector<64x256xbf16>
      tpu.vector_store %128[%c448, %c0_47], %126 {strides = array<i32>} : memref<512x256xbf16, #tpu.memory_space<vmem>>, vector<64x256xbf16>,
    } else {
    }
    %c0 = arith.constant 0 : index
    %c0_3 = arith.constant 0 : index
    %6 = vector.load %arg3[%c0, %c0_3] : memref<256x512xf8E4M3FN, #tpu.memory_space<vmem>>, vector<256x512xf8E4M3FN>
    %7 = arith.extf %6 : vector<256x512xf8E4M3FN> to vector<256x512xbf16>
    %c0_4 = arith.constant 0 : index
    %c0_5 = arith.constant 0 : index
    %8 = vector.load %arg10[%c0_4, %c0_5] : memref<256x256xf32, #tpu.memory_space<vmem>>, vector<256x256xf32>
    %9 = arith.index_cast %arg2 : i32 to index
    %c0_6 = arith.constant 0 : index
    %c0_7 = arith.constant 0 : index
    %10 = vector.load %arg11[%9, %c0_6, %c0_7] : memref<2x512x256xbf16, #tpu.memory_space<vmem>>, vector<1x512x256xbf16>
    %11 = vector.shape_cast %10 : vector<1x512x256xbf16> to vector<512x256xbf16>
    %cst = arith.constant dense<0.000000e+00> : vector<256x256xf32>
    %12 = tpu.matmul %7, %11, %cst {dimension_numbers = #tpu.dot_dimension_numbers<[1], [0], [0], [1], [0, 0, 1, 1], [], []>} : vector<256x512xbf16>, vector<512x256xbf16>, vector<256x256xf32> -> vector<256x256xf32>
    %13 = arith.addf %8, %12 : vector<256x256xf32>
    %c0_8 = arith.constant 0 : index
    %c0_9 = arith.constant 0 : index
    %14 = vector.load %arg10[%c0_8, %c0_9] : memref<256x256xf32, #tpu.memory_space<vmem>>, vector<256x256xf32>
    tpu.vector_store %arg10[%c0_8, %c0_9], %13 {strides = array<i32>} : memref<256x256xf32, #tpu.memory_space<vmem>>, vector<256x256xf32>,
    %c1_i32 = arith.constant 1 : i32
    %15 = arith.cmpi eq, %arg2, %c1_i32 : i32
    %16 = arith.extui %15 : i1 to i32
    %c0_i32_10 = arith.constant 0 : i32
    %17 = arith.cmpi ne, %16, %c0_i32_10 : i32
    scf.if %17 {
      %c0_11 = arith.constant 0 : index
      %c0_12 = arith.constant 0 : index
      %18 = vector.load %arg10[%c0_11, %c0_12] : memref<256x256xf32, #tpu.memory_space<vmem>>, vector<256x256xf32>
      %c0_13 = arith.constant 0 : index
      %c0_14 = arith.constant 0 : index
      %19 = vector.load %arg4[%c0_13, %c0_14] : memref<256x1xbf16, #tpu.memory_space<vmem>>, vector<256x1xbf16>
      %20 = arith.extf %19 : vector<256x1xbf16> to vector<256x1xf32>
      %21 = vector.broadcast %20 : vector<256x1xf32> to vector<256x256xf32>
      %22 = arith.mulf %18, %21 : vector<256x256xf32>
      %c0_15 = arith.constant 0 : index
      %c0_16 = arith.constant 0 : index
      %23 = vector.load %arg7[%c0_15, %c0_16] : memref<1x256xbf16, #tpu.memory_space<vmem>>, vector<1x256xbf16>
      %24 = arith.extf %23 : vector<1x256xbf16> to vector<1x256xf32>
      %25 = vector.broadcast %24 : vector<1x256xf32> to vector<256x256xf32>
      %26 = arith.addf %22, %25 : vector<256x256xf32>
      %c0_17 = arith.constant 0 : index
      %c0_18 = arith.constant 0 : index
      %27 = vector.load %arg8[%c0_17, %c0_18] : memref<256x256xbf16, #tpu.memory_space<vmem>>, vector<256x256xbf16>
      %28 = arith.extf %27 : vector<256x256xbf16> to vector<256x256xf32>
      %29 = arith.mulf %26, %28 : vector<256x256xf32>
      %30 = arith.truncf %29 : vector<256x256xf32> to vector<256x256xbf16>
      %c0_19 = arith.constant 0 : index
      %c0_20 = arith.constant 0 : index
      %31 = vector.load %arg9[%c0_19, %c0_20] : memref<256x256xbf16, #tpu.memory_space<vmem>>, vector<256x256xbf16>
      tpu.vector_store %arg9[%c0_19, %c0_20], %30 {strides = array<i32>} : memref<256x256xbf16, #tpu.memory_space<vmem>>, vector<256x256xbf16>,
    } else {
    }
    return
  }
  func.func @transform_0(%arg0: i32, %arg1: i32, %arg2: i32) -> (i32, i32) {
    %c0_i32 = arith.constant 0 : i32
    return %arg1, %arg2 : i32, i32
  }
  func.func @transform_1(%arg0: i32, %arg1: i32, %arg2: i32) -> (i32, i32) {
    %c0_i32 = arith.constant 0 : i32
    %c0_i32_0 = arith.constant 0 : i32
    return %arg1, %c0_i32 : i32, i32
  }
  func.func @transform_2(%arg0: i32, %arg1: i32, %arg2: i32) -> (i32, i32) {
    %c0_i32 = arith.constant 0 : i32
    return %arg2, %arg0 : i32, i32
  }
  func.func @transform_3(%arg0: i32, %arg1: i32, %arg2: i32) -> (i32, i32) {
    %c0_i32 = arith.constant 0 : i32
    return %arg2, %arg0 : i32, i32
  }
  func.func @transform_4(%arg0: i32, %arg1: i32, %arg2: i32) -> (i32, i32) {
    %c0_i32 = arith.constant 0 : i32
    %c0_i32_0 = arith.constant 0 : i32
    return %c0_i32, %arg0 : i32, i32
  }
  func.func @transform_5(%arg0: i32, %arg1: i32, %arg2: i32) -> (i32, i32) {
    %c0_i32 = arith.constant 0 : i32
    return %arg1, %arg0 : i32, i32
  }
  func.func @transform_6(%arg0: i32, %arg1: i32, %arg2: i32) -> (i32, i32) {
    %c0_i32 = arith.constant 0 : i32
    return %arg1, %arg0 : i32, i32
  }
}

</mosaic_0001>

<llo_original>
// kernel: tpu_custom_call.1
$region0: #{tpu_custom_call.1}
  #allocation0 [shape = 'u32[]', space=smem, size = 0x4, offset = 0x4, fixed_abs, tag = 'smem constant byte address 0x4 - core index']
  #allocation1 [shape = 'u32[144,128]{1,0:T(1,128)}', space=vmem, size = 0x12000, scoped, tag = 'internal scratch']
  #allocation2 [shape = 'f32[256,256]{1,0:T(8,128)}', space=vmem, size = 0x40000, scoped, tag = 'scratch operand']
  #allocation3 [shape = 'bf16[2,512,256]{2,1,0:T(16,128)(2,1)}', space=vmem, size = 0x80000, scoped, tag = 'scratch operand']
  %s0 = inlined_call_operand.hbm [shape: f8e4m3fn[512,1024], index: 0, kind: input, shape index: {}]
  %s1 = inlined_call_operand.vmem [shape: bf16[512,1], index: 1, kind: input, shape index: {}]
  %s2 = inlined_call_operand.hbm [shape: s32[128,512], index: 2, kind: input, shape index: {}]
  %s3 = inlined_call_operand.vmem [shape: bf16[32,512], index: 3, kind: input, shape index: {}]
  %s4 = inlined_call_operand.vmem [shape: bf16[1,512], index: 4, kind: input, shape index: {}]
  %s5 = inlined_call_operand.hbm [shape: bf16[512,512], index: 5, kind: input, shape index: {}]
  %s6 = inlined_call_operand.hbm [shape: bf16[512,512], index: 6, kind: output, shape index: {}]
  %s7 = sld [smem:[#allocation0]]
  $region119: #{tpu_custom_call.1} parent=0
    _
  %s9 = ssub.s32 1, %s7
  %s10 = scalar_select 0, %s9, %s7
  $region1: #{tpu_custom_call.1} parent=0
    #allocation4 [shape = 'u8[262144]{0}', space=vmem, size = 0x40000, scoped, tag = 'input window, operand 0']
    #allocation5 [shape = 's32[2]{0}', space=sflag, size = 0x8, scoped, tag = 'scoped memory for tpu_custom_call.1']
    #allocation6 [shape = 's32[2]{0}', space=sflag, size = 0x8, scoped, tag = 'scoped memory for tpu_custom_call.1']
    #allocation7 [shape = 'u8[131072]{0}', space=vmem, size = 0x20000, scoped, tag = 'input window, operand 2']
    #allocation8 [shape = 's32[2]{0}', space=sflag, size = 0x8, scoped, tag = 'scoped memory for tpu_custom_call.1']
    #allocation9 [shape = 'u8[16384]{0}', space=vmem, size = 0x4000, scoped, tag = 'input window, operand 3']
    #allocation10 [shape = 'u8[262144]{0}', space=vmem, size = 0x40000, scoped, tag = 'input window, operand 5']
    #allocation11 [shape = 'u8[262144]{0}', space=vmem, size = 0x40000, scoped, tag = 'output window, operand 0']
    %11 = vsyncpa [#allocation5], 0
    %s12 = scalar_lea.sflag [#allocation5], 1
    %13 = vsyncpa %s12, 0
    %14 = vsyncpa [#allocation8], 0
    %s15 = scalar_lea.sflag [#allocation8], 1
    %16 = vsyncpa %s15, 0
    %17 = vsyncpa [#allocation6], 0
    %s18 = scalar_lea.sflag [#allocation6], 1
    %19 = vsyncpa %s18, 0
    loop: start=0, step=1, limit=10
    $region2: #{tpu_custom_call.1} parent=1 // loop_pre_header
      _
    $region3: #{tpu_custom_call.1} parent=1 // loop_header
      %s21 = sphi 0, %s25
      %p22 = scmp.ge.s32.totalorder %s21, 10
      %s28 = sphi 0, %s47
      %s29 = sphi 0, %s43
      %s30 = sphi 0, %s39
      %s31 = sphi 0, %s28
      %s32 = sphi 0, %s29
      %s33 = sphi 0, %s30
      %s34 = sphi 0, %s31
      %s35 = sphi 0, %s32
      %s36 = sphi 0, %s33
      %s52 = sphi 0, %s54
      %s55 = sphi 0, %s52
      %s56 = sphi 0, %s55
      %s72 = sphi 0, %s56
      %s78 = sphi 0, %s80
      %s81 = sphi 0, %s78
      %s82 = sphi 0, %s81
      %s98 = sphi 0, %s82
      %s106 = sphi 0, %s108
      %s109 = sphi 0, %s106
      %s110 = sphi 0, %s109
      %s126 = sphi 0, %s110
      %s134 = sphi 0, %s136
      %s137 = sphi 0, %s134
      %s138 = sphi 0, %s137
      %s154 = sphi 0, %s138
      %s160 = sphi 0, %s162
      %s163 = sphi 0, %s160
      %s164 = sphi 0, %s163
      %s180 = sphi 0, %s164
      %s188 = sphi 0, %s190
      %s191 = sphi 0, %s188
      %s192 = sphi 0, %s191
      %s208 = sphi 0, %s192
      %s216 = sphi 0, %s218
      %s219 = sphi 0, %s216
      %s220 = sphi 0, %s219
      %s236 = sphi 0, %s220
    $region4: #{tpu_custom_call.1} parent=1 // loop_header_branch
      %24 = sbr.rel (%p22) target = $region8
    $region5: #{tpu_custom_call.1} parent=1 // loop_body
      %s26 = ssub.s32 %s21, 1
      %s27 = ssub.s32 %s21, 2
      %s37 = sadd.s32 1, %s30
      %p38 = scmp.ge.s32.totalorder %s37, 2
      %s39 = scalar_select %p38, 0, %s37
      %s40 = sadd.s32 1, %s29
      %s41 = scalar_select %p38, %s40, %s29
      %p42 = scmp.ge.s32.totalorder %s41, 2
      %s43 = scalar_select %p42, 0, %s41
      %s44 = sadd.s32 1, %s28
      %s45 = scalar_select %p42, %s44, %s28
      %p46 = scmp.ge.s32.totalorder %s45, 2
      %s47 = scalar_select %p46, 0, %s45
      %s48 = ssub.s32 %s29, %s43
      %s49 = ssub.s32 %s30, %s39
      %s50 = sor.u32 %s48, %s49
      %p51 = scmp.eq.s32.totalorder %s50, 0
      %s53 = sadd.s32 %s52, 1
      %s54 = scalar_select %p51, %s52, %s53
      %p57 = pneg %p51
      %p58 = scmp.eq.s32.totalorder %s21, 7
      %p59 = por %p57, %p58
      %p60 = scmp.ne.s32.totalorder %s52, %s55
      %p61 = scmp.eq.s32.totalorder %s21, 0
      %p62 = por %p60, %p61
      %p63 = scmp.ne.s32.totalorder %s52, %s55
      %p64 = scmp.eq.s32.totalorder %s26, 7
      %p65 = por %p63, %p64
      %p66 = scmp.ne.s32.totalorder %s55, %s56
      %p67 = scmp.eq.s32.totalorder %s26, 0
      %p68 = por %p66, %p67
      %p69 = scmp.ne.s32.totalorder %s55, %s56
      %p70 = scmp.eq.s32.totalorder %s27, 7
      %p71 = por %p69, %p70
      %p73 = scmp.ne.s32.totalorder %s56, %s72
      %p74 = scmp.eq.s32.totalorder %s27, 0
      %p75 = por %p73, %p74
      %s76 = ssub.s32 %s29, %s43
      %p77 = scmp.eq.s32.totalorder %s76, 0
      %s79 = sadd.s32 %s78, 1
      %s80 = scalar_select %p77, %s78, %s79
      %p83 = pneg %p77
      %p84 = scmp.eq.s32.totalorder %s21, 7
      %p85 = por %p83, %p84
      %p86 = scmp.ne.s32.totalorder %s78, %s81
      %p87 = scmp.eq.s32.totalorder %s21, 0
      %p88 = por %p86, %p87
      %p89 = scmp.ne.s32.totalorder %s78, %s81
      %p90 = scmp.eq.s32.totalorder %s26, 7
      %p91 = por %p89, %p90
      %p92 = scmp.ne.s32.totalorder %s81, %s82
      %p93 = scmp.eq.s32.totalorder %s26, 0
      %p94 = por %p92, %p93
      %p95 = scmp.ne.s32.totalorder %s81, %s82
      %p96 = scmp.eq.s32.totalorder %s27, 7
      %p97 = por %p95, %p96
      %p99 = scmp.ne.s32.totalorder %s82, %s98
      %p100 = scmp.eq.s32.totalorder %s27, 0
      %p101 = por %p99, %p100
      %s102 = ssub.s32 %s30, %s39
      %s103 = ssub.s32 %s28, %s47
      %s104 = sor.u32 %s102, %s103
      %p105 = scmp.eq.s32.totalorder %s104, 0
      %s107 = sadd.s32 %s106, 1
      %s108 = scalar_select %p105, %s106, %s107
      %p111 = pneg %p105
      %p112 = scmp.eq.s32.totalorder %s21, 7
      %p113 = por %p111, %p112
      %p114 = scmp.ne.s32.totalorder %s106, %s109
      %p115 = scmp.eq.s32.totalorder %s21, 0
      %p116 = por %p114, %p115
      %p117 = scmp.ne.s32.totalorder %s106, %s109
      %p118 = scmp.eq.s32.totalorder %s26, 7
      %p119 = por %p117, %p118
      %p120 = scmp.ne.s32.totalorder %s109, %s110
      %p121 = scmp.eq.s32.totalorder %s26, 0
      %p122 = por %p120, %p121
      %p123 = scmp.ne.s32.totalorder %s109, %s110
      %p124 = scmp.eq.s32.totalorder %s27, 7
      %p125 = por %p123, %p124
      %p127 = scmp.ne.s32.totalorder %s110, %s126
      %p128 = scmp.eq.s32.totalorder %s27, 0
      %p129 = por %p127, %p128
      %s130 = ssub.s32 %s30, %s39
      %s131 = ssub.s32 %s28, %s47
      %s132 = sor.u32 %s130, %s131
      %p133 = scmp.eq.s32.totalorder %s132, 0
      %s135 = sadd.s32 %s134, 1
      %s136 = scalar_select %p133, %s134, %s135
      %p139 = pneg %p133
      %p140 = scmp.eq.s32.totalorder %s21, 7
      %p141 = por %p139, %p140
      %p142 = scmp.ne.s32.totalorder %s134, %s137
      %p143 = scmp.eq.s32.totalorder %s21, 0
      %p144 = por %p142, %p143
      %p145 = scmp.ne.s32.totalorder %s134, %s137
      %p146 = scmp.eq.s32.totalorder %s26, 7
      %p147 = por %p145, %p146
      %p148 = scmp.ne.s32.totalorder %s137, %s138
      %p149 = scmp.eq.s32.totalorder %s26, 0
      %p150 = por %p148, %p149
      %p151 = scmp.ne.s32.totalorder %s137, %s138
      %p152 = scmp.eq.s32.totalorder %s27, 7
      %p153 = por %p151, %p152
      %p155 = scmp.ne.s32.totalorder %s138, %s154
      %p156 = scmp.eq.s32.totalorder %s27, 0
      %p157 = por %p155, %p156
      %s158 = ssub.s32 %s28, %s47
      %p159 = scmp.eq.s32.totalorder %s158, 0
      %s161 = sadd.s32 %s160, 1
      %s162 = scalar_select %p159, %s160, %s161
      %p165 = pneg %p159
      %p166 = scmp.eq.s32.totalorder %s21, 7
      %p167 = por %p165, %p166
      %p168 = scmp.ne.s32.totalorder %s160, %s163
      %p169 = scmp.eq.s32.totalorder %s21, 0
      %p170 = por %p168, %p169
      %p171 = scmp.ne.s32.totalorder %s160, %s163
      %p172 = scmp.eq.s32.totalorder %s26, 7
      %p173 = por %p171, %p172
      %p174 = scmp.ne.s32.totalorder %s163, %s164
      %p175 = scmp.eq.s32.totalorder %s26, 0
      %p176 = por %p174, %p175
      %p177 = scmp.ne.s32.totalorder %s163, %s164
      %p178 = scmp.eq.s32.totalorder %s27, 7
      %p179 = por %p177, %p178
      %p181 = scmp.ne.s32.totalorder %s164, %s180
      %p182 = scmp.eq.s32.totalorder %s27, 0
      %p183 = por %p181, %p182
      %s184 = ssub.s32 %s29, %s43
      %s185 = ssub.s32 %s28, %s47
      %s186 = sor.u32 %s184, %s185
      %p187 = scmp.eq.s32.totalorder %s186, 0
      %s189 = sadd.s32 %s188, 1
      %s190 = scalar_select %p187, %s188, %s189
      %p193 = pneg %p187
      %p194 = scmp.eq.s32.totalorder %s21, 7
      %p195 = por %p193, %p194
      %p196 = scmp.ne.s32.totalorder %s188, %s191
      %p197 = scmp.eq.s32.totalorder %s21, 0
      %p198 = por %p196, %p197
      %p199 = scmp.ne.s32.totalorder %s188, %s191
      %p200 = scmp.eq.s32.totalorder %s26, 7
      %p201 = por %p199, %p200
      %p202 = scmp.ne.s32.totalorder %s191, %s192
      %p203 = scmp.eq.s32.totalorder %s26, 0
      %p204 = por %p202, %p203
      %p205 = scmp.ne.s32.totalorder %s191, %s192
      %p206 = scmp.eq.s32.totalorder %s27, 7
      %p207 = por %p205, %p206
      %p209 = scmp.ne.s32.totalorder %s192, %s208
      %p210 = scmp.eq.s32.totalorder %s27, 0
      %p211 = por %p209, %p210
      %s212 = ssub.s32 %s29, %s43
      %s213 = ssub.s32 %s28, %s47
      %s214 = sor.u32 %s212, %s213
      %p215 = scmp.eq.s32.totalorder %s214, 0
      %s217 = sadd.s32 %s216, 1
      %s218 = scalar_select %p215, %s216, %s217
      %p221 = pneg %p215
      %p222 = scmp.eq.s32.totalorder %s21, 7
      %p223 = por %p221, %p222
      %p224 = scmp.ne.s32.totalorder %s216, %s219
      %p225 = scmp.eq.s32.totalorder %s21, 0
      %p226 = por %p224, %p225
      %p227 = scmp.ne.s32.totalorder %s216, %s219
      %p228 = scmp.eq.s32.totalorder %s26, 7
      %p229 = por %p227, %p228
      %p230 = scmp.ne.s32.totalorder %s219, %s220
      %p231 = scmp.eq.s32.totalorder %s26, 0
      %p232 = por %p230, %p231
      %p233 = scmp.ne.s32.totalorder %s219, %s220
      %p234 = scmp.eq.s32.totalorder %s27, 7
      %p235 = por %p233, %p234
      %p237 = scmp.ne.s32.totalorder %s220, %s236
      %p238 = scmp.eq.s32.totalorder %s27, 0
      %p239 = por %p237, %p238
      %p240 = scmp.le.s32.totalorder 1, %s21
      %p241 = scmp.lt.s32.totalorder %s21, 9
      %p242 = pnand %p240, %p241
      %p243 = pneg %p242
      // Predicated region
      $region9: #{tpu_custom_call.1} parent=5 // pred_check
        _
      $region10: #{tpu_custom_call.1} parent=5 // pred_check_branch
        %245 = sbr.rel (%p242) target = $region12
      $region11: #{tpu_custom_call.1} parent=5 // pred_region
        %s246 = ssub.s32 %s21, 1
      $region12: #{tpu_custom_call.1} parent=5 // pred_fallthru
        _
      %p247 = scmp.lt.s32.totalorder %s21, 8
      // Predicated region
      $region13: #{tpu_custom_call.1} parent=5 // pred_check
        %p248 = pneg %p247
      $region14: #{tpu_custom_call.1} parent=5 // pred_check_branch
        %250 = sbr.rel (%p248) target = $region16
      $region15: #{tpu_custom_call.1} parent=5 // pred_region
        // Predicated region
        $region17: #{tpu_custom_call.1} parent=15 // pred_check
          %p251 = pneg %p62
        $region18: #{tpu_custom_call.1} parent=15 // pred_check_branch
          %253 = sbr.rel (%p251) target = $region20
        $region19: #{tpu_custom_call.1} parent=15 // pred_region
          %s254 = sand.u32 %s52, 1
          %s255 = scalar_lea.sflag [#allocation5], %s254
          %s256 = sand.u32 %s52, 1
          %s257 = smul.addr %s256, 256
          %s258 = scalar_lea.vmem [#allocation4], %s257
          %s259 = smul.u32 8, %s29
          %s260 = smul.u32 4, %s30
          %s262 = ssub.s32 4096, 4096
          %263 = vsyncadd %s255, %s262
          %s264 = smul.addr %s259, 8
          %s265 = sadd.s32 %s260, %s264
          %s266 = smul.addr %s265, 128
          %s267 = scalar_lea.hbm %s0, %s266
          %s268 = sshll.u32 %s258, 4
          %s269 = int_to_ptr.vmem [resolvable:$true] %s268
          %274 = dma.hbm_to_vmem [thread:$0]  %s267, 4096, %s269, %s255, 1024, 512, 32
        $region20: #{tpu_custom_call.1} parent=15 // pred_fallthru
          _
        // Predicated region
        $region21: #{tpu_custom_call.1} parent=15 // pred_check
          %p275 = pneg %p88
        $region22: #{tpu_custom_call.1} parent=15 // pred_check_branch
          %277 = sbr.rel (%p275) target = $region24
        $region23: #{tpu_custom_call.1} parent=15 // pred_region
          %s278 = smul.u32 32, %s29
          %p279 = scmp.lt.s32.totalorder %s278, 63
          %s280 = scalar_select %p279, %s278, 63
          %s281 = smul.addr %s280, 4
          %s282 = scalar_lea.vmem %s1, %s281
          %s283 = smul.u32 32, %s29
        $region24: #{tpu_custom_call.1} parent=15 // pred_fallthru
          _
        // Predicated region
        $region25: #{tpu_custom_call.1} parent=15 // pred_check
          %p284 = pneg %p116
        $region26: #{tpu_custom_call.1} parent=15 // pred_check_branch
          %286 = sbr.rel (%p284) target = $region28
        $region27: #{tpu_custom_call.1} parent=15 // pred_region
          %s287 = sand.u32 %s21, 1
          %s288 = scalar_lea.sflag [#allocation8], %s287
          %s289 = sand.u32 %s106, 1
          %s290 = smul.addr %s289, 128
          %s291 = scalar_lea.vmem [#allocation7], %s290
          %s292 = smul.u32 8, %s30
          %s293 = smul.u32 2, %s28
          %s295 = ssub.s32 2048, 2048
          %296 = vsyncadd %s288, %s295
          %s297 = smul.addr %s292, 4
          %s298 = sadd.s32 %s293, %s297
          %s299 = smul.addr %s298, 128
          %s300 = scalar_lea.hbm %s2, %s299
          %s301 = sshll.u32 %s291, 4
          %s302 = int_to_ptr.vmem [resolvable:$true] %s301
          %307 = dma.hbm_to_vmem [thread:$0]  %s300, 2048, %s302, %s288, 512, 256, 16
        $region28: #{tpu_custom_call.1} parent=15 // pred_fallthru
          _
        // Predicated region
        $region29: #{tpu_custom_call.1} parent=15 // pred_check
          %p308 = pneg %p144
        $region30: #{tpu_custom_call.1} parent=15 // pred_check_branch
          %310 = sbr.rel (%p308) target = $region32
        $region31: #{tpu_custom_call.1} parent=15 // pred_region
          %s311 = sand.u32 %s134, 1
          %s312 = sand.u32 %s134, 1
          %s313 = smul.addr %s312, 16
          %s314 = scalar_lea.vmem [#allocation9], %s313
          %s315 = smul.u32 2, %s30
          %s316 = smul.u32 2, %s28
          %s317 = smul.addr %s315, 4
          %s318 = sadd.s32 %s316, %s317
          %s319 = smul.addr %s318, 4
          %s320 = scalar_lea.vmem %s3, %s319
          // Predicated region
          $region33: #{tpu_custom_call.1} parent=31 // pred_check
            _
          $region34: #{tpu_custom_call.1} parent=31 // pred_check_branch
            %322 = sbr.rel (0) target = $region36
          $region35: #{tpu_custom_call.1} parent=31 // pred_region
            // Predicated region
            $region37: #{tpu_custom_call.1} parent=35 // pred_check
              _
            $region38: #{tpu_custom_call.1} parent=35 // pred_check_branch
              %324 = sbr.rel (0) target = $region40
            $region39: #{tpu_custom_call.1} parent=35 // pred_region
              // Predicated region
              $region52: #{tpu_custom_call.1} parent=39 // pred_check
                _
              $region53: #{tpu_custom_call.1} parent=39 // pred_check_branch
                %341 = sbr.rel (0) target = $region55
              $region54: #{tpu_custom_call.1} parent=39 // pred_region
                loop: start=0, step=1, limit=1
                $region56: #{tpu_custom_call.1} parent=54 // loop_pre_header
                  _
                $region57: #{tpu_custom_call.1} parent=54 // loop_header
                  %s343 = sphi 0, %s347
                  %p344 = scmp.ge.s32.totalorder %s343, 1
                  %s348 = sphi %s320, %s320
                  %s349 = sphi %s314, %s314
                $region58: #{tpu_custom_call.1} parent=54 // loop_header_branch
                  %346 = sbr.rel (%p344) target = $region62
                $region59: #{tpu_custom_call.1} parent=54 // loop_body
                  %v350 = vld [vmem:[%s348] sm:$0xff]
                  %351 = vst [vmem:[%s349] sm:$0xff] %v350
                  %v352 = vld [vmem:[%s348 + $0x10] sm:$0xff]
                  %353 = vst [vmem:[%s349 + $0x8] sm:$0xff] %v352
                $region60: #{tpu_custom_call.1} parent=54 // loop_footer
                  %s347 = sadd.s32 1, %s343
                $region61: #{tpu_custom_call.1} parent=54 // loop_footer_branch
                  %342 = sbr.rel target = $region57
                $region62: #{tpu_custom_call.1} parent=54 // loop_exit
                  _
              $region55: #{tpu_custom_call.1} parent=39 // pred_fallthru
                _
              // Predicated region
              $region63: #{tpu_custom_call.1} parent=39 // pred_check
                _
              $region64: #{tpu_custom_call.1} parent=39 // pred_check_branch
                %355 = sbr.rel target = $region66
              $region65: #{tpu_custom_call.1} parent=39 // pred_region
                _
              $region66: #{tpu_custom_call.1} parent=39 // pred_fallthru
                _
            $region40: #{tpu_custom_call.1} parent=35 // pred_fallthru
              _
            // Predicated region
            $region41: #{tpu_custom_call.1} parent=35 // pred_check
              _
            $region42: #{tpu_custom_call.1} parent=35 // pred_check_branch
              %326 = sbr.rel target = $region44
            $region43: #{tpu_custom_call.1} parent=35 // pred_region
              loop: start=0, step=1, limit=1
              $region45: #{tpu_custom_call.1} parent=43 // loop_pre_header
                _
              $region46: #{tpu_custom_call.1} parent=43 // loop_header
                %s329 = sphi 0, %s333
                %p330 = scmp.ge.s32.totalorder %s329, 1
                %s334 = sphi %s320, %s320
                %s335 = sphi %s314, %s314
              $region47: #{tpu_custom_call.1} parent=43 // loop_header_branch
                %332 = sbr.rel (%p330) target = $region51
              $region48: #{tpu_custom_call.1} parent=43 // loop_body
                %v336 = vld [vmem:[%s334] sm:$0xff]
                %337 = vst [vmem:[%s335] sm:$0xff] %v336
                %v338 = vld [vmem:[%s334 + $0x10] sm:$0xff]
                %339 = vst [vmem:[%s335 + $0x8] sm:$0xff] %v338
              $region49: #{tpu_custom_call.1} parent=43 // loop_footer
                %s333 = sadd.s32 1, %s329
              $region50: #{tpu_custom_call.1} parent=43 // loop_footer_branch
                %328 = sbr.rel target = $region46
              $region51: #{tpu_custom_call.1} parent=43 // loop_exit
                _
            $region44: #{tpu_custom_call.1} parent=35 // pred_fallthru
              _
          $region36: #{tpu_custom_call.1} parent=31 // pred_fallthru
            _
          %356 = vnop
        $region32: #{tpu_custom_call.1} parent=15 // pred_fallthru
          _
        // Predicated region
        $region67: #{tpu_custom_call.1} parent=15 // pred_check
          %p357 = pneg %p170
        $region68: #{tpu_custom_call.1} parent=15 // pred_check_branch
          %359 = sbr.rel (%p357) target = $region70
        $region69: #{tpu_custom_call.1} parent=15 // pred_region
          %s360 = smul.u32 2, %s28
          %p361 = scmp.lt.s32.totalorder %s360, 3
          %s362 = scalar_select %p361, %s360, 3
          %s363 = scalar_lea.vmem %s4, %s362
          %s364 = smul.u32 2, %s28
        $region70: #{tpu_custom_call.1} parent=15 // pred_fallthru
          _
        // Predicated region
        $region71: #{tpu_custom_call.1} parent=15 // pred_check
          %p365 = pneg %p198
        $region72: #{tpu_custom_call.1} parent=15 // pred_check_branch
          %367 = sbr.rel (%p365) target = $region74
        $region73: #{tpu_custom_call.1} parent=15 // pred_region
          %s368 = sand.u32 %s21, 1
          %s369 = scalar_lea.sflag [#allocation8], %s368
          %s370 = sand.u32 %s188, 1
          %s371 = smul.addr %s370, 256
          %s372 = scalar_lea.vmem [#allocation10], %s371
          %s373 = smul.u32 32, %s29
          %s374 = smul.u32 2, %s28
          %s376 = ssub.s32 4096, 4096
          %377 = vsyncadd %s369, %s376
          %s378 = smul.addr %s373, 4
          %s379 = sadd.s32 %s374, %s378
          %s380 = smul.addr %s379, 64
          %s381 = scalar_lea.hbm %s5, %s380
          %s382 = sshll.u32 %s372, 4
          %s383 = int_to_ptr.vmem [resolvable:$true] %s382
          %388 = dma.hbm_to_vmem [thread:$0]  %s381, 4096, %s383, %s369, 256, 128, 8
        $region74: #{tpu_custom_call.1} parent=15 // pred_fallthru
          _
      $region16: #{tpu_custom_call.1} parent=5 // pred_fallthru
        _
      %p389 = scmp.le.s32.totalorder 1, %s21
      %p390 = scmp.lt.s32.totalorder %s21, 9
      %p391 = pnand %p389, %p390
      %p392 = pneg %p391
      // Predicated region
      $region75: #{tpu_custom_call.1} parent=5 // pred_check
        _
      $region76: #{tpu_custom_call.1} parent=5 // pred_check_branch
        %394 = sbr.rel (%p391) target = $region78
      $region77: #{tpu_custom_call.1} parent=5 // pred_region
        %s395 = ssub.s32 %s21, 1
        %s396 = sand.u32 %s55, 1
        %s397 = scalar_lea.sflag [#allocation5], %s396
        %s398 = sand.u32 %s55, 1
        %s399 = smul.addr %s398, 256
        %s400 = scalar_lea.vmem [#allocation4], %s399
        // Predicated region
        $region79: #{tpu_custom_call.1} parent=77 // pred_check
          %p401 = pneg %p68
        $region80: #{tpu_custom_call.1} parent=77 // pred_check_branch
          %403 = sbr.rel (%p401) target = $region82
        $region81: #{tpu_custom_call.1} parent=77 // pred_region
          %404 = dma.done %s397, 4096
        $region82: #{tpu_custom_call.1} parent=77 // pred_fallthru
          _
        %s405 = sand.u32 %s26, 1
        %s406 = scalar_lea.sflag [#allocation8], %s405
        %s407 = sand.u32 %s109, 1
        %s408 = smul.addr %s407, 128
        %s409 = scalar_lea.vmem [#allocation7], %s408
        // Predicated region
        $region83: #{tpu_custom_call.1} parent=77 // pred_check
          %p410 = pneg %p122
        $region84: #{tpu_custom_call.1} parent=77 // pred_check_branch
          %412 = sbr.rel (%p410) target = $region86
        $region85: #{tpu_custom_call.1} parent=77 // pred_region
          %413 = dma.done %s406, 2048
        $region86: #{tpu_custom_call.1} parent=77 // pred_fallthru
          _
        %s414 = sand.u32 %s137, 1
        %s415 = sand.u32 %s137, 1
        %s416 = smul.addr %s415, 16
        %s417 = scalar_lea.vmem [#allocation9], %s416
        // Predicated region
        $region87: #{tpu_custom_call.1} parent=77 // pred_check
          %p418 = pneg %p150
        $region88: #{tpu_custom_call.1} parent=77 // pred_check_branch
          %420 = sbr.rel (%p418) target = $region90
        $region89: #{tpu_custom_call.1} parent=77 // pred_region
          _
        $region90: #{tpu_custom_call.1} parent=77 // pred_fallthru
          _
        %s421 = sand.u32 %s26, 1
        %s422 = scalar_lea.sflag [#allocation8], %s421
        %s423 = sand.u32 %s191, 1
        %s424 = smul.addr %s423, 256
        %s425 = scalar_lea.vmem [#allocation10], %s424
        // Predicated region
        $region91: #{tpu_custom_call.1} parent=77 // pred_check
          %p426 = pneg %p204
        $region92: #{tpu_custom_call.1} parent=77 // pred_check_branch
          %428 = sbr.rel (%p426) target = $region94
        $region93: #{tpu_custom_call.1} parent=77 // pred_region
          %429 = dma.done %s422, 4096
        $region94: #{tpu_custom_call.1} parent=77 // pred_fallthru
          _
        %s430 = sand.u32 %s55, 1
        %s431 = scalar_lea.sflag [#allocation5], %s430
        %s432 = sand.u32 %s55, 1
        %s433 = smul.addr %s432, 256
        %s434 = scalar_lea.vmem [#allocation4], %s433
        %p435 = pneg %p68
        %p436 = pneg %p65
        %s437 = smul.u32 32, %s32
        %p438 = scmp.lt.s32.totalorder %s437, 63
        %s439 = scalar_select %p438, %s437, 63
        %s440 = smul.addr %s439, 4
        %s441 = scalar_lea.vmem %s1, %s440
        %p442 = pneg %p94
        %p443 = pneg %p91
        %s444 = sand.u32 %s26, 1
        %s445 = scalar_lea.sflag [#allocation8], %s444
        %s446 = sand.u32 %s109, 1
        %s447 = smul.addr %s446, 128
        %s448 = scalar_lea.vmem [#allocation7], %s447
        %p449 = pneg %p122
        %p450 = pneg %p119
        %s451 = sand.u32 %s137, 1
        %s452 = sand.u32 %s137, 1
        %s453 = smul.addr %s452, 16
        %s454 = scalar_lea.vmem [#allocation9], %s453
        %p455 = pneg %p150
        %p456 = pneg %p147
        %s457 = smul.u32 2, %s31
        %p458 = scmp.lt.s32.totalorder %s457, 3
        %s459 = scalar_select %p458, %s457, 3
        %s460 = scalar_lea.vmem %s4, %s459
        %p461 = pneg %p176
        %p462 = pneg %p173
        %s463 = sand.u32 %s26, 1
        %s464 = scalar_lea.sflag [#allocation8], %s463
        %s465 = sand.u32 %s191, 1
        %s466 = smul.addr %s465, 256
        %s467 = scalar_lea.vmem [#allocation10], %s466
        %p468 = pneg %p204
        %p469 = pneg %p201
        %p470 = pneg %p232
        %p471 = pneg %p229
        %s472 = sand.u32 %s219, 1
        %s473 = scalar_lea.sflag [#allocation6], %s472
        %s474 = sand.u32 %s219, 1
        %s475 = smul.addr %s474, 256
        %s476 = scalar_lea.vmem [#allocation11], %s475
        %s477 = smul.u32 8, %s32
        %s478 = smul.u32 4, %s33
        %s479 = smul.u32 32, %s32
        %p480 = scmp.lt.s32.totalorder %s479, 63
        %s481 = scalar_select %p480, %s479, 63
        %s482 = smul.addr %s481, 4
        %s483 = scalar_lea.vmem %s1, %s482
        %s484 = smul.u32 32, %s32
        %s485 = smul.u32 8, %s33
        %s486 = smul.u32 2, %s31
        %s487 = smul.u32 2, %s33
        %s488 = smul.u32 2, %s31
        %s489 = smul.u32 2, %s31
        %p490 = scmp.lt.s32.totalorder %s489, 3
        %s491 = scalar_select %p490, %s489, 3
        %s492 = scalar_lea.vmem %s4, %s491
        %s493 = smul.u32 2, %s31
        %s494 = smul.u32 32, %s32
        %s495 = smul.u32 2, %s31
        %s496 = smul.u32 32, %s32
        %s497 = smul.u32 2, %s31
        %p498 = scmp.eq.s32.totalorder %s33, 0
        // Predicated region
        $region95: #{tpu_custom_call.1} parent=77 // pred_check
          %p499 = pneg %p498
        $region96: #{tpu_custom_call.1} parent=77 // pred_check_branch
          %501 = sbr.rel (%p499) target = $region98
        $region97: #{tpu_custom_call.1} parent=77 // pred_region
          %502 = vst [vmem:[#allocation2] sm:$0xff] 0.0
          %503 = vst [vmem:[#allocation2 + $0x8] sm:$0xff] 0.0
          %504 = vst [vmem:[#allocation2 + $0x10] sm:$0xff] 0.0
          %505 = vst [vmem:[#allocation2 + $0x18] sm:$0xff] 0.0
          %506 = vst [vmem:[#allocation2 + $0x20] sm:$0xff] 0.0
          %507 = vst [vmem:[#allocation2 + $0x28] sm:$0xff] 0.0
          %508 = vst [vmem:[#allocation2 + $0x30] sm:$0xff] 0.0
          %509 = vst [vmem:[#allocation2 + $0x38] sm:$0xff] 0.0
          %510 = vst [vmem:[#allocation2 + $0x40] sm:$0xff] 0.0
          %511 = vst [vmem:[#allocation2 + $0x48] sm:$0xff] 0.0
          %512 = vst [vmem:[#allocation2 + $0x50] sm:$0xff] 0.0
          %513 = vst [vmem:[#allocation2 + $0x58] sm:$0xff] 0.0
          %514 = vst [vmem:[#allocation2 + $0x60] sm:$0xff] 0.0
          %515 = vst [vmem:[#allocation2 + $0x68] sm:$0xff] 0.0
          %516 = vst [vmem:[#allocation2 + $0x70] sm:$0xff] 0.0
          %517 = vst [vmem:[#allocation2 + $0x78] sm:$0xff] 0.0
          %518 = vst [vmem:[#allocation2 + $0x80] sm:$0xff] 0.0
          %519 = vst [vmem:[#allocation2 + $0x88] sm:$0xff] 0.0
          %520 = vst [vmem:[#allocation2 + $0x90] sm:$0xff] 0.0
          %521 = vst [vmem:[#allocation2 + $0x98] sm:$0xff] 0.0
          %522 = vst [vmem:[#allocation2 + $0xa0] sm:$0xff] 0.0
          %523 = vst [vmem:[#allocation2 + $0xa8] sm:$0xff] 0.0
          %524 = vst [vmem:[#allocation2 + $0xb0] sm:$0xff] 0.0
          %525 = vst [vmem:[#allocation2 + $0xb8] sm:$0xff] 0.0
          %526 = vst [vmem:[#allocation2 + $0xc0] sm:$0xff] 0.0
          %527 = vst [vmem:[#allocation2 + $0xc8] sm:$0xff] 0.0
          %528 = vst [vmem:[#allocation2 + $0xd0] sm:$0xff] 0.0
          %529 = vst [vmem:[#allocation2 + $0xd8] sm:$0xff] 0.0
          %530 = vst [vmem:[#allocation2 + $0xe0] sm:$0xff] 0.0
          %531 = vst [vmem:[#allocation2 + $0xe8] sm:$0xff] 0.0
          %532 = vst [vmem:[#allocation2 + $0xf0] sm:$0xff] 0.0
          %533 = vst [vmem:[#allocation2 + $0xf8] sm:$0xff] 0.0
          %534 = vst [vmem:[#allocation2 + $0x100] sm:$0xff] 0.0
          %535 = vst [vmem:[#allocation2 + $0x108] sm:$0xff] 0.0
          %536 = vst [vmem:[#allocation2 + $0x110] sm:$0xff] 0.0
          %537 = vst [vmem:[#allocation2 + $0x118] sm:$0xff] 0.0
          %538 = vst [vmem:[#allocation2 + $0x120] sm:$0xff] 0.0
          %539 = vst [vmem:[#allocation2 + $0x128] sm:$0xff] 0.0
          %540 = vst [vmem:[#allocation2 + $0x130] sm:$0xff] 0.0
          %541 = vst [vmem:[#allocation2 + $0x138] sm:$0xff] 0.0
          %542 = vst [vmem:[#allocation2 + $0x140] sm:$0xff] 0.0
          %543 = vst [vmem:[#allocation2 + $0x148] sm:$0xff] 0.0
          %544 = vst [vmem:[#allocation2 + $0x150] sm:$0xff] 0.0
          %545 = vst [vmem:[#allocation2 + $0x158] sm:$0xff] 0.0
          %546 = vst [vmem:[#allocation2 + $0x160] sm:$0xff] 0.0
          %547 = vst [vmem:[#allocation2 + $0x168] sm:$0xff] 0.0
          %548 = vst [vmem:[#allocation2 + $0x170] sm:$0xff] 0.0
          %549 = vst [vmem:[#allocation2 + $0x178] sm:$0xff] 0.0
          %550 = vst [vmem:[#allocation2 + $0x180] sm:$0xff] 0.0
          %551 = vst [vmem:[#allocation2 + $0x188] sm:$0xff] 0.0
          %552 = vst [vmem:[#allocation2 + $0x190] sm:$0xff] 0.0
          %553 = vst [vmem:[#allocation2 + $0x198] sm:$0xff] 0.0
          %554 = vst [vmem:[#allocation2 + $0x1a0] sm:$0xff] 0.0
          %555 = vst [vmem:[#allocation2 + $0x1a8] sm:$0xff] 0.0
          %556 = vst [vmem:[#allocation2 + $0x1b0] sm:$0xff] 0.0
          %557 = vst [vmem:[#allocation2 + $0x1b8] sm:$0xff] 0.0
          %558 = vst [vmem:[#allocation2 + $0x1c0] sm:$0xff] 0.0
          %559 = vst [vmem:[#allocation2 + $0x1c8] sm:$0xff] 0.0
          %560 = vst [vmem:[#allocation2 + $0x1d0] sm:$0xff] 0.0
          %561 = vst [vmem:[#allocation2 + $0x1d8] sm:$0xff] 0.0
          %562 = vst [vmem:[#allocation2 + $0x1e0] sm:$0xff] 0.0
          %563 = vst [vmem:[#allocation2 + $0x1e8] sm:$0xff] 0.0
          %564 = vst [vmem:[#allocation2 + $0x1f0] sm:$0xff] 0.0
          %565 = vst [vmem:[#allocation2 + $0x1f8] sm:$0xff] 0.0
        $region98: #{tpu_custom_call.1} parent=77 // pred_fallthru
          _
        %p566 = scmp.eq.s32.totalorder %s32, 0
        // Predicated region
        $region99: #{tpu_custom_call.1} parent=77 // pred_check
          %p567 = pneg %p566
        $region100: #{tpu_custom_call.1} parent=77 // pred_check_branch
          %569 = sbr.rel (%p567) target = $region102
        $region101: #{tpu_custom_call.1} parent=77 // pred_region
          %v570 = vld [vmem:[%s409] sm:$0xff]
          %v571 = vld [vmem:[%s409 + $0x8] sm:$0xff]
          %v572 = vld [vmem:[%s409 + $0x10] sm:$0xff]
          %v573 = vld [vmem:[%s409 + $0x18] sm:$0xff]
          %v574 = vld [vmem:[%s409 + $0x20] sm:$0xff]
          %v575 = vld [vmem:[%s409 + $0x28] sm:$0xff]
          %v576 = vld [vmem:[%s409 + $0x30] sm:$0xff]
          %v577 = vld [vmem:[%s409 + $0x38] sm:$0xff]
          %v578 = vld [vmem:[%s409 + $0x40] sm:$0xff]
          %v579 = vld [vmem:[%s409 + $0x48] sm:$0xff]
          %v580 = vld [vmem:[%s409 + $0x50] sm:$0xff]
          %v581 = vld [vmem:[%s409 + $0x58] sm:$0xff]
          %v582 = vld [vmem:[%s409 + $0x60] sm:$0xff]
          %v583 = vld [vmem:[%s409 + $0x68] sm:$0xff]
          %v584 = vld [vmem:[%s409 + $0x70] sm:$0xff]
          %v585 = vld [vmem:[%s409 + $0x78] sm:$0xff]
          %v586 = vld [vmem:[%s417] sm:$0xff]
          %v587 = vld [vmem:[%s417 + $0x8] sm:$0xff]
          %v588 = vshll.u32 %v570, 28
          %v589 = vshll.u32 %v571, 28
          %v590 = vshll.u32 %v572, 28
          %v591 = vshll.u32 %v573, 28
          %v592 = vshll.u32 %v574, 28
          %v593 = vshll.u32 %v575, 28
          %v594 = vshll.u32 %v576, 28
          %v595 = vshll.u32 %v577, 28
          %v596 = vshll.u32 %v578, 28
          %v597 = vshll.u32 %v579, 28
          %v598 = vshll.u32 %v580, 28
          %v599 = vshll.u32 %v581, 28
          %v600 = vshll.u32 %v582, 28
          %v601 = vshll.u32 %v583, 28
          %v602 = vshll.u32 %v584, 28
          %v603 = vshll.u32 %v585, 28
          %v604 = vshra.s32 %v588, 28
          %v605 = vshra.s32 %v589, 28
          %v606 = vshra.s32 %v590, 28
          %v607 = vshra.s32 %v591, 28
          %v608 = vshra.s32 %v592, 28
          %v609 = vshra.s32 %v593, 28
          %v610 = vshra.s32 %v594, 28
          %v611 = vshra.s32 %v595, 28
          %v612 = vshra.s32 %v596, 28
          %v613 = vshra.s32 %v597, 28
          %v614 = vshra.s32 %v598, 28
          %v615 = vshra.s32 %v599, 28
          %v616 = vshra.s32 %v600, 28
          %v617 = vshra.s32 %v601, 28
          %v618 = vshra.s32 %v602, 28
          %v619 = vshra.s32 %v603, 28
          %v620 = vcvt.s32.f32 %v604
          %v621 = vcvt.s32.f32 %v605
          %v622 = vcvt.s32.f32 %v606
          %v623 = vcvt.s32.f32 %v607
          %v624 = vcvt.s32.f32 %v608
          %v625 = vcvt.s32.f32 %v609
          %v626 = vcvt.s32.f32 %v610
          %v627 = vcvt.s32.f32 %v611
          %v628 = vcvt.s32.f32 %v612
          %v629 = vcvt.s32.f32 %v613
          %v630 = vcvt.s32.f32 %v614
          %v631 = vcvt.s32.f32 %v615
          %v632 = vcvt.s32.f32 %v616
          %v633 = vcvt.s32.f32 %v617
          %v634 = vcvt.s32.f32 %v618
          %v635 = vcvt.s32.f32 %v619
          %v636 = vpack.c.bf16 %v622, %v620
          %v637 = vpack.c.bf16 %v623, %v621
          %v638 = vpack.c.bf16 %v626, %v624
          %v639 = vpack.c.bf16 %v627, %v625
          %v640 = vpack.c.bf16 %v630, %v628
          %v641 = vpack.c.bf16 %v631, %v629
          %v642 = vpack.c.bf16 %v634, %v632
          %v643 = vpack.c.bf16 %v635, %v633
          %v646 = vunpack.c.l.s4 1966171168
          %v647 = vunpack.c.0.s8 %v646
          %v648 = vlaneseq
          %v649 = vshrl.u32 %v648, 7
          %v650 = vsub.s32 %v647, %v649
          %v651 = vrot.slane %v586, %v650
          %v653 = vunpack.c.l.s4 1966171168
          %v654 = vunpack.c.0.s8 %v653
          %v655 = vlaneseq
          %v656 = vshrl.u32 %v655, 7
          %v657 = vsub.s32 %v654, %v656
          %v658 = vrot.slane %v651, %v657
          %v659 = vunpack.i.l.s16 %v658
          %v660 = vunpack.i.h.s16 %v658
          %v661 = vpack.i.b16 %v659, %v659
          %v662 = vpack.i.b16 %v660, %v660
          %v663 = vlaneseq
          %v664 = vshrl.u32 %v663, 7
          %v665 = vsub.s32 0, %v664
          %v666 = vrot.slane %v661, %v665
          %v667 = vlaneseq
          %v668 = vshrl.u32 %v667, 7
          %v669 = vsub.s32 1, %v668
          %v670 = vrot.slane %v661, %v669
          %v671 = vlaneseq
          %v672 = vshrl.u32 %v671, 7
          %v673 = vsub.s32 0, %v672
          %v674 = vrot.slane %v662, %v673
          %v675 = vlaneseq
          %v676 = vshrl.u32 %v675, 7
          %v677 = vsub.s32 1, %v676
          %v678 = vrot.slane %v662, %v677
          %v680 = vpack.i.b16 %v666, %v666
          %v682 = vlaneseq
          %v683 = vshrl.u32 %v682, 7
          %v684 = vsub.s32 0, %v683
          %v685 = vrot.slane %v680, %v684
          %v687 = vpack.i.b16 %v670, %v670
          %v689 = vlaneseq
          %v690 = vshrl.u32 %v689, 7
          %v691 = vsub.s32 0, %v690
          %v692 = vrot.slane %v687, %v691
          %v694 = vpack.i.b16 %v674, %v674
          %v696 = vlaneseq
          %v697 = vshrl.u32 %v696, 7
          %v698 = vsub.s32 0, %v697
          %v699 = vrot.slane %v694, %v698
          %v701 = vpack.i.b16 %v678, %v678
          %v703 = vlaneseq
          %v704 = vshrl.u32 %v703, 7
          %v705 = vsub.s32 0, %v704
          %v706 = vrot.slane %v701, %v705
          %v707 = vmul.bf16 %v636, %v685
          %v708 = vmul.bf16 %v637, %v692
          %v709 = vmul.bf16 %v638, %v685
          %v710 = vmul.bf16 %v639, %v692
          %v711 = vmul.bf16 %v640, %v699
          %v712 = vmul.bf16 %v641, %v706
          %v713 = vmul.bf16 %v642, %v699
          %v714 = vmul.bf16 %v643, %v706
          %s715 = smul.u32 %s33, 64
          %s716 = smul.addr %s715, 8
          %s717 = scalar_lea.vmem [#allocation3], %s716
          %718 = vst [vmem:[%s717] sm:$0xff] %v707
          %719 = vst [vmem:[%s717 + $0x8] sm:$0xff] %v708
          %720 = vst [vmem:[%s717 + $0x10] sm:$0xff] %v709
          %721 = vst [vmem:[%s717 + $0x18] sm:$0xff] %v710
          %722 = vst [vmem:[%s717 + $0x20] sm:$0xff] %v711
          %723 = vst [vmem:[%s717 + $0x28] sm:$0xff] %v712
          %724 = vst [vmem:[%s717 + $0x30] sm:$0xff] %v713
          %725 = vst [vmem:[%s717 + $0x38] sm:$0xff] %v714
          %v726 = vshll.u32 %v570, 24
          %v727 = vshll.u32 %v571, 24
          %v728 = vshll.u32 %v572, 24
          %v729 = vshll.u32 %v573, 24
          %v730 = vshll.u32 %v574, 24
          %v731 = vshll.u32 %v575, 24
          %v732 = vshll.u32 %v576, 24
          %v733 = vshll.u32 %v577, 24
          %v734 = vshll.u32 %v578, 24
          %v735 = vshll.u32 %v579, 24
          %v736 = vshll.u32 %v580, 24
          %v737 = vshll.u32 %v581, 24
          %v738 = vshll.u32 %v582, 24
          %v739 = vshll.u32 %v583, 24
          %v740 = vshll.u32 %v584, 24
          %v741 = vshll.u32 %v585, 24
          %v742 = vshra.s32 %v726, 28
          %v743 = vshra.s32 %v727, 28
          %v744 = vshra.s32 %v728, 28
          %v745 = vshra.s32 %v729, 28
          %v746 = vshra.s32 %v730, 28
          %v747 = vshra.s32 %v731, 28
          %v748 = vshra.s32 %v732, 28
          %v749 = vshra.s32 %v733, 28
          %v750 = vshra.s32 %v734, 28
          %v751 = vshra.s32 %v735, 28
          %v752 = vshra.s32 %v736, 28
          %v753 = vshra.s32 %v737, 28
          %v754 = vshra.s32 %v738, 28
          %v755 = vshra.s32 %v739, 28
          %v756 = vshra.s32 %v740, 28
          %v757 = vshra.s32 %v741, 28
          %v758 = vcvt.s32.f32 %v742
          %v759 = vcvt.s32.f32 %v743
          %v760 = vcvt.s32.f32 %v744
          %v761 = vcvt.s32.f32 %v745
          %v762 = vcvt.s32.f32 %v746
          %v763 = vcvt.s32.f32 %v747
          %v764 = vcvt.s32.f32 %v748
          %v765 = vcvt.s32.f32 %v749
          %v766 = vcvt.s32.f32 %v750
          %v767 = vcvt.s32.f32 %v751
          %v768 = vcvt.s32.f32 %v752
          %v769 = vcvt.s32.f32 %v753
          %v770 = vcvt.s32.f32 %v754
          %v771 = vcvt.s32.f32 %v755
          %v772 = vcvt.s32.f32 %v756
          %v773 = vcvt.s32.f32 %v757
          %v774 = vpack.c.bf16 %v760, %v758
          %v775 = vpack.c.bf16 %v761, %v759
          %v776 = vpack.c.bf16 %v764, %v762
          %v777 = vpack.c.bf16 %v765, %v763
          %v778 = vpack.c.bf16 %v768, %v766
          %v779 = vpack.c.bf16 %v769, %v767
          %v780 = vpack.c.bf16 %v772, %v770
          %v781 = vpack.c.bf16 %v773, %v771
          %v782 = vcombine.high %v651, %v651
          %v784 = vunpack.c.l.s4 1966171168
          %v785 = vunpack.c.0.s8 %v784
          %v786 = vlaneseq
          %v787 = vshrl.u32 %v786, 7
          %v788 = vsub.s32 %v785, %v787
          %v789 = vrot.slane %v782, %v788
          %v790 = vunpack.i.l.s16 %v789
          %v791 = vunpack.i.h.s16 %v789
          %v792 = vpack.i.b16 %v790, %v790
          %v793 = vpack.i.b16 %v791, %v791
          %v794 = vlaneseq
          %v795 = vshrl.u32 %v794, 7
          %v796 = vsub.s32 0, %v795
          %v797 = vrot.slane %v792, %v796
          %v798 = vlaneseq
          %v799 = vshrl.u32 %v798, 7
          %v800 = vsub.s32 1, %v799
          %v801 = vrot.slane %v792, %v800
          %v802 = vlaneseq
          %v803 = vshrl.u32 %v802, 7
          %v804 = vsub.s32 0, %v803
          %v805 = vrot.slane %v793, %v804
          %v806 = vlaneseq
          %v807 = vshrl.u32 %v806, 7
          %v808 = vsub.s32 1, %v807
          %v809 = vrot.slane %v793, %v808
          %v811 = vpack.i.b16 %v797, %v797
          %v813 = vlaneseq
          %v814 = vshrl.u32 %v813, 7
          %v815 = vsub.s32 0, %v814
          %v816 = vrot.slane %v811, %v815
          %v818 = vpack.i.b16 %v801, %v801
          %v820 = vlaneseq
          %v821 = vshrl.u32 %v820, 7
          %v822 = vsub.s32 0, %v821
          %v823 = vrot.slane %v818, %v822
          %v825 = vpack.i.b16 %v805, %v805
          %v827 = vlaneseq
          %v828 = vshrl.u32 %v827, 7
          %v829 = vsub.s32 0, %v828
          %v830 = vrot.slane %v825, %v829
          %v832 = vpack.i.b16 %v809, %v809
          %v834 = vlaneseq
          %v835 = vshrl.u32 %v834, 7
          %v836 = vsub.s32 0, %v835
          %v837 = vrot.slane %v832, %v836
          %v838 = vmul.bf16 %v774, %v816
          %v839 = vmul.bf16 %v775, %v823
          %v840 = vmul.bf16 %v776, %v816
          %v841 = vmul.bf16 %v777, %v823
          %v842 = vmul.bf16 %v778, %v830
          %v843 = vmul.bf16 %v779, %v837
          %v844 = vmul.bf16 %v780, %v830
          %v845 = vmul.bf16 %v781, %v837
          %846 = vst [vmem:[%s717 + $0x40] sm:$0xff] %v838
          %847 = vst [vmem:[%s717 + $0x48] sm:$0xff] %v839
          %848 = vst [vmem:[%s717 + $0x50] sm:$0xff] %v840
          %849 = vst [vmem:[%s717 + $0x58] sm:$0xff] %v841
          %850 = vst [vmem:[%s717 + $0x60] sm:$0xff] %v842
          %851 = vst [vmem:[%s717 + $0x68] sm:$0xff] %v843
          %852 = vst [vmem:[%s717 + $0x70] sm:$0xff] %v844
          %853 = vst [vmem:[%s717 + $0x78] sm:$0xff] %v845
          %v854 = vshll.u32 %v570, 20
          %v855 = vshll.u32 %v571, 20
          %v856 = vshll.u32 %v572, 20
          %v857 = vshll.u32 %v573, 20
          %v858 = vshll.u32 %v574, 20
          %v859 = vshll.u32 %v575, 20
          %v860 = vshll.u32 %v576, 20
          %v861 = vshll.u32 %v577, 20
          %v862 = vshll.u32 %v578, 20
          %v863 = vshll.u32 %v579, 20
          %v864 = vshll.u32 %v580, 20
          %v865 = vshll.u32 %v581, 20
          %v866 = vshll.u32 %v582, 20
          %v867 = vshll.u32 %v583, 20
          %v868 = vshll.u32 %v584, 20
          %v869 = vshll.u32 %v585, 20
          %v870 = vshra.s32 %v854, 28
          %v871 = vshra.s32 %v855, 28
          %v872 = vshra.s32 %v856, 28
          %v873 = vshra.s32 %v857, 28
          %v874 = vshra.s32 %v858, 28
          %v875 = vshra.s32 %v859, 28
          %v876 = vshra.s32 %v860, 28
          %v877 = vshra.s32 %v861, 28
          %v878 = vshra.s32 %v862, 28
          %v879 = vshra.s32 %v863, 28
          %v880 = vshra.s32 %v864, 28
          %v881 = vshra.s32 %v865, 28
          %v882 = vshra.s32 %v866, 28
          %v883 = vshra.s32 %v867, 28
          %v884 = vshra.s32 %v868, 28
          %v885 = vshra.s32 %v869, 28
          %v886 = vcvt.s32.f32 %v870
          %v887 = vcvt.s32.f32 %v871
          %v888 = vcvt.s32.f32 %v872
          %v889 = vcvt.s32.f32 %v873
          %v890 = vcvt.s32.f32 %v874
          %v891 = vcvt.s32.f32 %v875
          %v892 = vcvt.s32.f32 %v876
          %v893 = vcvt.s32.f32 %v877
          %v894 = vcvt.s32.f32 %v878
          %v895 = vcvt.s32.f32 %v879
          %v896 = vcvt.s32.f32 %v880
          %v897 = vcvt.s32.f32 %v881
          %v898 = vcvt.s32.f32 %v882
          %v899 = vcvt.s32.f32 %v883
          %v900 = vcvt.s32.f32 %v884
          %v901 = vcvt.s32.f32 %v885
          %v902 = vpack.c.bf16 %v888, %v886
          %v903 = vpack.c.bf16 %v889, %v887
          %v904 = vpack.c.bf16 %v892, %v890
          %v905 = vpack.c.bf16 %v893, %v891
          %v906 = vpack.c.bf16 %v896, %v894
          %v907 = vpack.c.bf16 %v897, %v895
          %v908 = vpack.c.bf16 %v900, %v898
          %v909 = vpack.c.bf16 %v901, %v899
          %v910 = vcombine.high %v658, %v658
          %v911 = vunpack.i.l.s16 %v910
          %v912 = vunpack.i.h.s16 %v910
          %v913 = vpack.i.b16 %v911, %v911
          %v914 = vpack.i.b16 %v912, %v912
          %v915 = vlaneseq
          %v916 = vshrl.u32 %v915, 7
          %v917 = vsub.s32 0, %v916
          %v918 = vrot.slane %v913, %v917
          %v919 = vlaneseq
          %v920 = vshrl.u32 %v919, 7
          %v921 = vsub.s32 1, %v920
          %v922 = vrot.slane %v913, %v921
          %v923 = vlaneseq
          %v924 = vshrl.u32 %v923, 7
          %v925 = vsub.s32 0, %v924
          %v926 = vrot.slane %v914, %v925
          %v927 = vlaneseq
          %v928 = vshrl.u32 %v927, 7
          %v929 = vsub.s32 1, %v928
          %v930 = vrot.slane %v914, %v929
          %v932 = vpack.i.b16 %v918, %v918
          %v934 = vlaneseq
          %v935 = vshrl.u32 %v934, 7
          %v936 = vsub.s32 0, %v935
          %v937 = vrot.slane %v932, %v936
          %v939 = vpack.i.b16 %v922, %v922
          %v941 = vlaneseq
          %v942 = vshrl.u32 %v941, 7
          %v943 = vsub.s32 0, %v942
          %v944 = vrot.slane %v939, %v943
          %v946 = vpack.i.b16 %v926, %v926
          %v948 = vlaneseq
          %v949 = vshrl.u32 %v948, 7
          %v950 = vsub.s32 0, %v949
          %v951 = vrot.slane %v946, %v950
          %v953 = vpack.i.b16 %v930, %v930
          %v955 = vlaneseq
          %v956 = vshrl.u32 %v955, 7
          %v957 = vsub.s32 0, %v956
          %v958 = vrot.slane %v953, %v957
          %v959 = vmul.bf16 %v902, %v937
          %v960 = vmul.bf16 %v903, %v944
          %v961 = vmul.bf16 %v904, %v937
          %v962 = vmul.bf16 %v905, %v944
          %v963 = vmul.bf16 %v906, %v951
          %v964 = vmul.bf16 %v907, %v958
          %v965 = vmul.bf16 %v908, %v951
          %v966 = vmul.bf16 %v909, %v958
          %967 = vst [vmem:[%s717 + $0x80] sm:$0xff] %v959
          %968 = vst [vmem:[%s717 + $0x88] sm:$0xff] %v960
          %969 = vst [vmem:[%s717 + $0x90] sm:$0xff] %v961
          %970 = vst [vmem:[%s717 + $0x98] sm:$0xff] %v962
          %971 = vst [vmem:[%s717 + $0xa0] sm:$0xff] %v963
          %972 = vst [vmem:[%s717 + $0xa8] sm:$0xff] %v964
          %973 = vst [vmem:[%s717 + $0xb0] sm:$0xff] %v965
          %974 = vst [vmem:[%s717 + $0xb8] sm:$0xff] %v966
          %v975 = vshll.u32 %v570, 16
          %v976 = vshll.u32 %v571, 16
          %v977 = vshll.u32 %v572, 16
          %v978 = vshll.u32 %v573, 16
          %v979 = vshll.u32 %v574, 16
          %v980 = vshll.u32 %v575, 16
          %v981 = vshll.u32 %v576, 16
          %v982 = vshll.u32 %v577, 16
          %v983 = vshll.u32 %v578, 16
          %v984 = vshll.u32 %v579, 16
          %v985 = vshll.u32 %v580, 16
          %v986 = vshll.u32 %v581, 16
          %v987 = vshll.u32 %v582, 16
          %v988 = vshll.u32 %v583, 16
          %v989 = vshll.u32 %v584, 16
          %v990 = vshll.u32 %v585, 16
          %v991 = vshra.s32 %v975, 28
          %v992 = vshra.s32 %v976, 28
          %v993 = vshra.s32 %v977, 28
          %v994 = vshra.s32 %v978, 28
          %v995 = vshra.s32 %v979, 28
          %v996 = vshra.s32 %v980, 28
          %v997 = vshra.s32 %v981, 28
          %v998 = vshra.s32 %v982, 28
          %v999 = vshra.s32 %v983, 28
          %v1000 = vshra.s32 %v984, 28
          %v1001 = vshra.s32 %v985, 28
          %v1002 = vshra.s32 %v986, 28
          %v1003 = vshra.s32 %v987, 28
          %v1004 = vshra.s32 %v988, 28
          %v1005 = vshra.s32 %v989, 28
          %v1006 = vshra.s32 %v990, 28
          %v1007 = vcvt.s32.f32 %v991
          %v1008 = vcvt.s32.f32 %v992
          %v1009 = vcvt.s32.f32 %v993
          %v1010 = vcvt.s32.f32 %v994
          %v1011 = vcvt.s32.f32 %v995
          %v1012 = vcvt.s32.f32 %v996
          %v1013 = vcvt.s32.f32 %v997
          %v1014 = vcvt.s32.f32 %v998
          %v1015 = vcvt.s32.f32 %v999
          %v1016 = vcvt.s32.f32 %v1000
          %v1017 = vcvt.s32.f32 %v1001
          %v1018 = vcvt.s32.f32 %v1002
          %v1019 = vcvt.s32.f32 %v1003
          %v1020 = vcvt.s32.f32 %v1004
          %v1021 = vcvt.s32.f32 %v1005
          %v1022 = vcvt.s32.f32 %v1006
          %v1023 = vpack.c.bf16 %v1009, %v1007
          %v1024 = vpack.c.bf16 %v1010, %v1008
          %v1025 = vpack.c.bf16 %v1013, %v1011
          %v1026 = vpack.c.bf16 %v1014, %v1012
          %v1027 = vpack.c.bf16 %v1017, %v1015
          %v1028 = vpack.c.bf16 %v1018, %v1016
          %v1029 = vpack.c.bf16 %v1021, %v1019
          %v1030 = vpack.c.bf16 %v1022, %v1020
          %v1031 = vcombine.high %v789, %v789
          %v1032 = vunpack.i.l.s16 %v1031
          %v1033 = vunpack.i.h.s16 %v1031
          %v1034 = vpack.i.b16 %v1032, %v1032
          %v1035 = vpack.i.b16 %v1033, %v1033
          %v1036 = vlaneseq
          %v1037 = vshrl.u32 %v1036, 7
          %v1038 = vsub.s32 0, %v1037
          %v1039 = vrot.slane %v1034, %v1038
          %v1040 = vlaneseq
          %v1041 = vshrl.u32 %v1040, 7
          %v1042 = vsub.s32 1, %v1041
          %v1043 = vrot.slane %v1034, %v1042
          %v1044 = vlaneseq
          %v1045 = vshrl.u32 %v1044, 7
          %v1046 = vsub.s32 0, %v1045
          %v1047 = vrot.slane %v1035, %v1046
          %v1048 = vlaneseq
          %v1049 = vshrl.u32 %v1048, 7
          %v1050 = vsub.s32 1, %v1049
          %v1051 = vrot.slane %v1035, %v1050
          %v1053 = vpack.i.b16 %v1039, %v1039
          %v1055 = vlaneseq
          %v1056 = vshrl.u32 %v1055, 7
          %v1057 = vsub.s32 0, %v1056
          %v1058 = vrot.slane %v1053, %v1057
          %v1060 = vpack.i.b16 %v1043, %v1043
          %v1062 = vlaneseq
          %v1063 = vshrl.u32 %v1062, 7
          %v1064 = vsub.s32 0, %v1063
          %v1065 = vrot.slane %v1060, %v1064
          %v1067 = vpack.i.b16 %v1047, %v1047
          %v1069 = vlaneseq
          %v1070 = vshrl.u32 %v1069, 7
          %v1071 = vsub.s32 0, %v1070
          %v1072 = vrot.slane %v1067, %v1071
          %v1074 = vpack.i.b16 %v1051, %v1051
          %v1076 = vlaneseq
          %v1077 = vshrl.u32 %v1076, 7
          %v1078 = vsub.s32 0, %v1077
          %v1079 = vrot.slane %v1074, %v1078
          %v1080 = vmul.bf16 %v1023, %v1058
          %v1081 = vmul.bf16 %v1024, %v1065
          %v1082 = vmul.bf16 %v1025, %v1058
          %v1083 = vmul.bf16 %v1026, %v1065
          %v1084 = vmul.bf16 %v1027, %v1072
          %v1085 = vmul.bf16 %v1028, %v1079
          %v1086 = vmul.bf16 %v1029, %v1072
          %v1087 = vmul.bf16 %v1030, %v1079
          %1088 = vst [vmem:[%s717 + $0xc0] sm:$0xff] %v1080
          %1089 = vst [vmem:[%s717 + $0xc8] sm:$0xff] %v1081
          %1090 = vst [vmem:[%s717 + $0xd0] sm:$0xff] %v1082
          %1091 = vst [vmem:[%s717 + $0xd8] sm:$0xff] %v1083
          %1092 = vst [vmem:[%s717 + $0xe0] sm:$0xff] %v1084
          %1093 = vst [vmem:[%s717 + $0xe8] sm:$0xff] %v1085
          %1094 = vst [vmem:[%s717 + $0xf0] sm:$0xff] %v1086
          %1095 = vst [vmem:[%s717 + $0xf8] sm:$0xff] %v1087
          %v1096 = vshll.u32 %v570, 12
          %v1097 = vshll.u32 %v571, 12
          %v1098 = vshll.u32 %v572, 12
          %v1099 = vshll.u32 %v573, 12
          %v1100 = vshll.u32 %v574, 12
          %v1101 = vshll.u32 %v575, 12
          %v1102 = vshll.u32 %v576, 12
          %v1103 = vshll.u32 %v577, 12
          %v1104 = vshll.u32 %v578, 12
          %v1105 = vshll.u32 %v579, 12
          %v1106 = vshll.u32 %v580, 12
          %v1107 = vshll.u32 %v581, 12
          %v1108 = vshll.u32 %v582, 12
          %v1109 = vshll.u32 %v583, 12
          %v1110 = vshll.u32 %v584, 12
          %v1111 = vshll.u32 %v585, 12
          %v1112 = vshra.s32 %v1096, 28
          %v1113 = vshra.s32 %v1097, 28
          %v1114 = vshra.s32 %v1098, 28
          %v1115 = vshra.s32 %v1099, 28
          %v1116 = vshra.s32 %v1100, 28
          %v1117 = vshra.s32 %v1101, 28
          %v1118 = vshra.s32 %v1102, 28
          %v1119 = vshra.s32 %v1103, 28
          %v1120 = vshra.s32 %v1104, 28
          %v1121 = vshra.s32 %v1105, 28
          %v1122 = vshra.s32 %v1106, 28
          %v1123 = vshra.s32 %v1107, 28
          %v1124 = vshra.s32 %v1108, 28
          %v1125 = vshra.s32 %v1109, 28
          %v1126 = vshra.s32 %v1110, 28
          %v1127 = vshra.s32 %v1111, 28
          %v1128 = vcvt.s32.f32 %v1112
          %v1129 = vcvt.s32.f32 %v1113
          %v1130 = vcvt.s32.f32 %v1114
          %v1131 = vcvt.s32.f32 %v1115
          %v1132 = vcvt.s32.f32 %v1116
          %v1133 = vcvt.s32.f32 %v1117
          %v1134 = vcvt.s32.f32 %v1118
          %v1135 = vcvt.s32.f32 %v1119
          %v1136 = vcvt.s32.f32 %v1120
          %v1137 = vcvt.s32.f32 %v1121
          %v1138 = vcvt.s32.f32 %v1122
          %v1139 = vcvt.s32.f32 %v1123
          %v1140 = vcvt.s32.f32 %v1124
          %v1141 = vcvt.s32.f32 %v1125
          %v1142 = vcvt.s32.f32 %v1126
          %v1143 = vcvt.s32.f32 %v1127
          %v1144 = vpack.c.bf16 %v1130, %v1128
          %v1145 = vpack.c.bf16 %v1131, %v1129
          %v1146 = vpack.c.bf16 %v1134, %v1132
          %v1147 = vpack.c.bf16 %v1135, %v1133
          %v1148 = vpack.c.bf16 %v1138, %v1136
          %v1149 = vpack.c.bf16 %v1139, %v1137
          %v1150 = vpack.c.bf16 %v1142, %v1140
          %v1151 = vpack.c.bf16 %v1143, %v1141
          %v1154 = vunpack.c.l.s4 1966171168
          %v1155 = vunpack.c.0.s8 %v1154
          %v1156 = vlaneseq
          %v1157 = vshrl.u32 %v1156, 7
          %v1158 = vsub.s32 %v1155, %v1157
          %v1159 = vrot.slane %v587, %v1158
          %v1161 = vunpack.c.l.s4 1966171168
          %v1162 = vunpack.c.0.s8 %v1161
          %v1163 = vlaneseq
          %v1164 = vshrl.u32 %v1163, 7
          %v1165 = vsub.s32 %v1162, %v1164
          %v1166 = vrot.slane %v1159, %v1165
          %v1167 = vunpack.i.l.s16 %v1166
          %v1168 = vunpack.i.h.s16 %v1166
          %v1169 = vpack.i.b16 %v1167, %v1167
          %v1170 = vpack.i.b16 %v1168, %v1168
          %v1171 = vlaneseq
          %v1172 = vshrl.u32 %v1171, 7
          %v1173 = vsub.s32 0, %v1172
          %v1174 = vrot.slane %v1169, %v1173
          %v1175 = vlaneseq
          %v1176 = vshrl.u32 %v1175, 7
          %v1177 = vsub.s32 1, %v1176
          %v1178 = vrot.slane %v1169, %v1177
          %v1179 = vlaneseq
          %v1180 = vshrl.u32 %v1179, 7
          %v1181 = vsub.s32 0, %v1180
          %v1182 = vrot.slane %v1170, %v1181
          %v1183 = vlaneseq
          %v1184 = vshrl.u32 %v1183, 7
          %v1185 = vsub.s32 1, %v1184
          %v1186 = vrot.slane %v1170, %v1185
          %v1188 = vpack.i.b16 %v1174, %v1174
          %v1190 = vlaneseq
          %v1191 = vshrl.u32 %v1190, 7
          %v1192 = vsub.s32 0, %v1191
          %v1193 = vrot.slane %v1188, %v1192
          %v1195 = vpack.i.b16 %v1178, %v1178
          %v1197 = vlaneseq
          %v1198 = vshrl.u32 %v1197, 7
          %v1199 = vsub.s32 0, %v1198
          %v1200 = vrot.slane %v1195, %v1199
          %v1202 = vpack.i.b16 %v1182, %v1182
          %v1204 = vlaneseq
          %v1205 = vshrl.u32 %v1204, 7
          %v1206 = vsub.s32 0, %v1205
          %v1207 = vrot.slane %v1202, %v1206
          %v1209 = vpack.i.b16 %v1186, %v1186
          %v1211 = vlaneseq
          %v1212 = vshrl.u32 %v1211, 7
          %v1213 = vsub.s32 0, %v1212
          %v1214 = vrot.slane %v1209, %v1213
          %v1215 = vmul.bf16 %v1144, %v1193
          %v1216 = vmul.bf16 %v1145, %v1200
          %v1217 = vmul.bf16 %v1146, %v1193
          %v1218 = vmul.bf16 %v1147, %v1200
          %v1219 = vmul.bf16 %v1148, %v1207
          %v1220 = vmul.bf16 %v1149, %v1214
          %v1221 = vmul.bf16 %v1150, %v1207
          %v1222 = vmul.bf16 %v1151, %v1214
          %1223 = vst [vmem:[%s717 + $0x100] sm:$0xff] %v1215
          %1224 = vst [vmem:[%s717 + $0x108] sm:$0xff] %v1216
          %1225 = vst [vmem:[%s717 + $0x110] sm:$0xff] %v1217
          %1226 = vst [vmem:[%s717 + $0x118] sm:$0xff] %v1218
          %1227 = vst [vmem:[%s717 + $0x120] sm:$0xff] %v1219
          %1228 = vst [vmem:[%s717 + $0x128] sm:$0xff] %v1220
          %1229 = vst [vmem:[%s717 + $0x130] sm:$0xff] %v1221
          %1230 = vst [vmem:[%s717 + $0x138] sm:$0xff] %v1222
          %v1231 = vshll.u32 %v570, 8
          %v1232 = vshll.u32 %v571, 8
          %v1233 = vshll.u32 %v572, 8
          %v1234 = vshll.u32 %v573, 8
          %v1235 = vshll.u32 %v574, 8
          %v1236 = vshll.u32 %v575, 8
          %v1237 = vshll.u32 %v576, 8
          %v1238 = vshll.u32 %v577, 8
          %v1239 = vshll.u32 %v578, 8
          %v1240 = vshll.u32 %v579, 8
          %v1241 = vshll.u32 %v580, 8
          %v1242 = vshll.u32 %v581, 8
          %v1243 = vshll.u32 %v582, 8
          %v1244 = vshll.u32 %v583, 8
          %v1245 = vshll.u32 %v584, 8
          %v1246 = vshll.u32 %v585, 8
          %v1247 = vshra.s32 %v1231, 28
          %v1248 = vshra.s32 %v1232, 28
          %v1249 = vshra.s32 %v1233, 28
          %v1250 = vshra.s32 %v1234, 28
          %v1251 = vshra.s32 %v1235, 28
          %v1252 = vshra.s32 %v1236, 28
          %v1253 = vshra.s32 %v1237, 28
          %v1254 = vshra.s32 %v1238, 28
          %v1255 = vshra.s32 %v1239, 28
          %v1256 = vshra.s32 %v1240, 28
          %v1257 = vshra.s32 %v1241, 28
          %v1258 = vshra.s32 %v1242, 28
          %v1259 = vshra.s32 %v1243, 28
          %v1260 = vshra.s32 %v1244, 28
          %v1261 = vshra.s32 %v1245, 28
          %v1262 = vshra.s32 %v1246, 28
          %v1263 = vcvt.s32.f32 %v1247
          %v1264 = vcvt.s32.f32 %v1248
          %v1265 = vcvt.s32.f32 %v1249
          %v1266 = vcvt.s32.f32 %v1250
          %v1267 = vcvt.s32.f32 %v1251
          %v1268 = vcvt.s32.f32 %v1252
          %v1269 = vcvt.s32.f32 %v1253
          %v1270 = vcvt.s32.f32 %v1254
          %v1271 = vcvt.s32.f32 %v1255
          %v1272 = vcvt.s32.f32 %v1256
          %v1273 = vcvt.s32.f32 %v1257
          %v1274 = vcvt.s32.f32 %v1258
          %v1275 = vcvt.s32.f32 %v1259
          %v1276 = vcvt.s32.f32 %v1260
          %v1277 = vcvt.s32.f32 %v1261
          %v1278 = vcvt.s32.f32 %v1262
          %v1279 = vpack.c.bf16 %v1265, %v1263
          %v1280 = vpack.c.bf16 %v1266, %v1264
          %v1281 = vpack.c.bf16 %v1269, %v1267
          %v1282 = vpack.c.bf16 %v1270, %v1268
          %v1283 = vpack.c.bf16 %v1273, %v1271
          %v1284 = vpack.c.bf16 %v1274, %v1272
          %v1285 = vpack.c.bf16 %v1277, %v1275
          %v1286 = vpack.c.bf16 %v1278, %v1276
          %v1287 = vcombine.high %v1159, %v1159
          %v1289 = vunpack.c.l.s4 1966171168
          %v1290 = vunpack.c.0.s8 %v1289
          %v1291 = vlaneseq
          %v1292 = vshrl.u32 %v1291, 7
          %v1293 = vsub.s32 %v1290, %v1292
          %v1294 = vrot.slane %v1287, %v1293
          %v1295 = vunpack.i.l.s16 %v1294
          %v1296 = vunpack.i.h.s16 %v1294
          %v1297 = vpack.i.b16 %v1295, %v1295
          %v1298 = vpack.i.b16 %v1296, %v1296
          %v1299 = vlaneseq
          %v1300 = vshrl.u32 %v1299, 7
          %v1301 = vsub.s32 0, %v1300
          %v1302 = vrot.slane %v1297, %v1301
          %v1303 = vlaneseq
          %v1304 = vshrl.u32 %v1303, 7
          %v1305 = vsub.s32 1, %v1304
          %v1306 = vrot.slane %v1297, %v1305
          %v1307 = vlaneseq
          %v1308 = vshrl.u32 %v1307, 7
          %v1309 = vsub.s32 0, %v1308
          %v1310 = vrot.slane %v1298, %v1309
          %v1311 = vlaneseq
          %v1312 = vshrl.u32 %v1311, 7
          %v1313 = vsub.s32 1, %v1312
          %v1314 = vrot.slane %v1298, %v1313
          %v1316 = vpack.i.b16 %v1302, %v1302
          %v1318 = vlaneseq
          %v1319 = vshrl.u32 %v1318, 7
          %v1320 = vsub.s32 0, %v1319
          %v1321 = vrot.slane %v1316, %v1320
          %v1323 = vpack.i.b16 %v1306, %v1306
          %v1325 = vlaneseq
          %v1326 = vshrl.u32 %v1325, 7
          %v1327 = vsub.s32 0, %v1326
          %v1328 = vrot.slane %v1323, %v1327
          %v1330 = vpack.i.b16 %v1310, %v1310
          %v1332 = vlaneseq
          %v1333 = vshrl.u32 %v1332, 7
          %v1334 = vsub.s32 0, %v1333
          %v1335 = vrot.slane %v1330, %v1334
          %v1337 = vpack.i.b16 %v1314, %v1314
          %v1339 = vlaneseq
          %v1340 = vshrl.u32 %v1339, 7
          %v1341 = vsub.s32 0, %v1340
          %v1342 = vrot.slane %v1337, %v1341
          %v1343 = vmul.bf16 %v1279, %v1321
          %v1344 = vmul.bf16 %v1280, %v1328
          %v1345 = vmul.bf16 %v1281, %v1321
          %v1346 = vmul.bf16 %v1282, %v1328
          %v1347 = vmul.bf16 %v1283, %v1335
          %v1348 = vmul.bf16 %v1284, %v1342
          %v1349 = vmul.bf16 %v1285, %v1335
          %v1350 = vmul.bf16 %v1286, %v1342
          %1351 = vst [vmem:[%s717 + $0x140] sm:$0xff] %v1343
          %1352 = vst [vmem:[%s717 + $0x148] sm:$0xff] %v1344
          %1353 = vst [vmem:[%s717 + $0x150] sm:$0xff] %v1345
          %1354 = vst [vmem:[%s717 + $0x158] sm:$0xff] %v1346
          %1355 = vst [vmem:[%s717 + $0x160] sm:$0xff] %v1347
          %1356 = vst [vmem:[%s717 + $0x168] sm:$0xff] %v1348
          %1357 = vst [vmem:[%s717 + $0x170] sm:$0xff] %v1349
          %1358 = vst [vmem:[%s717 + $0x178] sm:$0xff] %v1350
          %v1359 = vshll.u32 %v570, 4
          %v1360 = vshll.u32 %v571, 4
          %v1361 = vshll.u32 %v572, 4
          %v1362 = vshll.u32 %v573, 4
          %v1363 = vshll.u32 %v574, 4
          %v1364 = vshll.u32 %v575, 4
          %v1365 = vshll.u32 %v576, 4
          %v1366 = vshll.u32 %v577, 4
          %v1367 = vshll.u32 %v578, 4
          %v1368 = vshll.u32 %v579, 4
          %v1369 = vshll.u32 %v580, 4
          %v1370 = vshll.u32 %v581, 4
          %v1371 = vshll.u32 %v582, 4
          %v1372 = vshll.u32 %v583, 4
          %v1373 = vshll.u32 %v584, 4
          %v1374 = vshll.u32 %v585, 4
          %v1375 = vshra.s32 %v1359, 28
          %v1376 = vshra.s32 %v1360, 28
          %v1377 = vshra.s32 %v1361, 28
          %v1378 = vshra.s32 %v1362, 28
          %v1379 = vshra.s32 %v1363, 28
          %v1380 = vshra.s32 %v1364, 28
          %v1381 = vshra.s32 %v1365, 28
          %v1382 = vshra.s32 %v1366, 28
          %v1383 = vshra.s32 %v1367, 28
          %v1384 = vshra.s32 %v1368, 28
          %v1385 = vshra.s32 %v1369, 28
          %v1386 = vshra.s32 %v1370, 28
          %v1387 = vshra.s32 %v1371, 28
          %v1388 = vshra.s32 %v1372, 28
          %v1389 = vshra.s32 %v1373, 28
          %v1390 = vshra.s32 %v1374, 28
          %v1391 = vcvt.s32.f32 %v1375
          %v1392 = vcvt.s32.f32 %v1376
          %v1393 = vcvt.s32.f32 %v1377
          %v1394 = vcvt.s32.f32 %v1378
          %v1395 = vcvt.s32.f32 %v1379
          %v1396 = vcvt.s32.f32 %v1380
          %v1397 = vcvt.s32.f32 %v1381
          %v1398 = vcvt.s32.f32 %v1382
          %v1399 = vcvt.s32.f32 %v1383
          %v1400 = vcvt.s32.f32 %v1384
          %v1401 = vcvt.s32.f32 %v1385
          %v1402 = vcvt.s32.f32 %v1386
          %v1403 = vcvt.s32.f32 %v1387
          %v1404 = vcvt.s32.f32 %v1388
          %v1405 = vcvt.s32.f32 %v1389
          %v1406 = vcvt.s32.f32 %v1390
          %v1407 = vpack.c.bf16 %v1393, %v1391
          %v1408 = vpack.c.bf16 %v1394, %v1392
          %v1409 = vpack.c.bf16 %v1397, %v1395
          %v1410 = vpack.c.bf16 %v1398, %v1396
          %v1411 = vpack.c.bf16 %v1401, %v1399
          %v1412 = vpack.c.bf16 %v1402, %v1400
          %v1413 = vpack.c.bf16 %v1405, %v1403
          %v1414 = vpack.c.bf16 %v1406, %v1404
          %v1415 = vcombine.high %v1166, %v1166
          %v1416 = vunpack.i.l.s16 %v1415
          %v1417 = vunpack.i.h.s16 %v1415
          %v1418 = vpack.i.b16 %v1416, %v1416
          %v1419 = vpack.i.b16 %v1417, %v1417
          %v1420 = vlaneseq
          %v1421 = vshrl.u32 %v1420, 7
          %v1422 = vsub.s32 0, %v1421
          %v1423 = vrot.slane %v1418, %v1422
          %v1424 = vlaneseq
          %v1425 = vshrl.u32 %v1424, 7
          %v1426 = vsub.s32 1, %v1425
          %v1427 = vrot.slane %v1418, %v1426
          %v1428 = vlaneseq
          %v1429 = vshrl.u32 %v1428, 7
          %v1430 = vsub.s32 0, %v1429
          %v1431 = vrot.slane %v1419, %v1430
          %v1432 = vlaneseq
          %v1433 = vshrl.u32 %v1432, 7
          %v1434 = vsub.s32 1, %v1433
          %v1435 = vrot.slane %v1419, %v1434
          %v1437 = vpack.i.b16 %v1423, %v1423
          %v1439 = vlaneseq
          %v1440 = vshrl.u32 %v1439, 7
          %v1441 = vsub.s32 0, %v1440
          %v1442 = vrot.slane %v1437, %v1441
          %v1444 = vpack.i.b16 %v1427, %v1427
          %v1446 = vlaneseq
          %v1447 = vshrl.u32 %v1446, 7
          %v1448 = vsub.s32 0, %v1447
          %v1449 = vrot.slane %v1444, %v1448
          %v1451 = vpack.i.b16 %v1431, %v1431
          %v1453 = vlaneseq
          %v1454 = vshrl.u32 %v1453, 7
          %v1455 = vsub.s32 0, %v1454
          %v1456 = vrot.slane %v1451, %v1455
          %v1458 = vpack.i.b16 %v1435, %v1435
          %v1460 = vlaneseq
          %v1461 = vshrl.u32 %v1460, 7
          %v1462 = vsub.s32 0, %v1461
          %v1463 = vrot.slane %v1458, %v1462
          %v1464 = vmul.bf16 %v1407, %v1442
          %v1465 = vmul.bf16 %v1408, %v1449
          %v1466 = vmul.bf16 %v1409, %v1442
          %v1467 = vmul.bf16 %v1410, %v1449
          %v1468 = vmul.bf16 %v1411, %v1456
          %v1469 = vmul.bf16 %v1412, %v1463
          %v1470 = vmul.bf16 %v1413, %v1456
          %v1471 = vmul.bf16 %v1414, %v1463
          %1472 = vst [vmem:[%s717 + $0x180] sm:$0xff] %v1464
          %1473 = vst [vmem:[%s717 + $0x188] sm:$0xff] %v1465
          %1474 = vst [vmem:[%s717 + $0x190] sm:$0xff] %v1466
          %1475 = vst [vmem:[%s717 + $0x198] sm:$0xff] %v1467
          %1476 = vst [vmem:[%s717 + $0x1a0] sm:$0xff] %v1468
          %1477 = vst [vmem:[%s717 + $0x1a8] sm:$0xff] %v1469
          %1478 = vst [vmem:[%s717 + $0x1b0] sm:$0xff] %v1470
          %1479 = vst [vmem:[%s717 + $0x1b8] sm:$0xff] %v1471
          %v1480 = vshra.s32 %v570, 28
          %v1481 = vshra.s32 %v571, 28
          %v1482 = vshra.s32 %v572, 28
          %v1483 = vshra.s32 %v573, 28
          %v1484 = vshra.s32 %v574, 28
          %v1485 = vshra.s32 %v575, 28
          %v1486 = vshra.s32 %v576, 28
          %v1487 = vshra.s32 %v577, 28
          %v1488 = vshra.s32 %v578, 28
          %v1489 = vshra.s32 %v579, 28
          %v1490 = vshra.s32 %v580, 28
          %v1491 = vshra.s32 %v581, 28
          %v1492 = vshra.s32 %v582, 28
          %v1493 = vshra.s32 %v583, 28
          %v1494 = vshra.s32 %v584, 28
          %v1495 = vshra.s32 %v585, 28
          %v1496 = vcvt.s32.f32 %v1480
          %v1497 = vcvt.s32.f32 %v1481
          %v1498 = vcvt.s32.f32 %v1482
          %v1499 = vcvt.s32.f32 %v1483
          %v1500 = vcvt.s32.f32 %v1484
          %v1501 = vcvt.s32.f32 %v1485
          %v1502 = vcvt.s32.f32 %v1486
          %v1503 = vcvt.s32.f32 %v1487
          %v1504 = vcvt.s32.f32 %v1488
          %v1505 = vcvt.s32.f32 %v1489
          %v1506 = vcvt.s32.f32 %v1490
          %v1507 = vcvt.s32.f32 %v1491
          %v1508 = vcvt.s32.f32 %v1492
          %v1509 = vcvt.s32.f32 %v1493
          %v1510 = vcvt.s32.f32 %v1494
          %v1511 = vcvt.s32.f32 %v1495
          %v1512 = vpack.c.bf16 %v1498, %v1496
          %v1513 = vpack.c.bf16 %v1499, %v1497
          %v1514 = vpack.c.bf16 %v1502, %v1500
          %v1515 = vpack.c.bf16 %v1503, %v1501
          %v1516 = vpack.c.bf16 %v1506, %v1504
          %v1517 = vpack.c.bf16 %v1507, %v1505
          %v1518 = vpack.c.bf16 %v1510, %v1508
          %v1519 = vpack.c.bf16 %v1511, %v1509
          %v1520 = vcombine.high %v1294, %v1294
          %v1521 = vunpack.i.l.s16 %v1520
          %v1522 = vunpack.i.h.s16 %v1520
          %v1523 = vpack.i.b16 %v1521, %v1521
          %v1524 = vpack.i.b16 %v1522, %v1522
          %v1525 = vlaneseq
          %v1526 = vshrl.u32 %v1525, 7
          %v1527 = vsub.s32 0, %v1526
          %v1528 = vrot.slane %v1523, %v1527
          %v1529 = vlaneseq
          %v1530 = vshrl.u32 %v1529, 7
          %v1531 = vsub.s32 1, %v1530
          %v1532 = vrot.slane %v1523, %v1531
          %v1533 = vlaneseq
          %v1534 = vshrl.u32 %v1533, 7
          %v1535 = vsub.s32 0, %v1534
          %v1536 = vrot.slane %v1524, %v1535
          %v1537 = vlaneseq
          %v1538 = vshrl.u32 %v1537, 7
          %v1539 = vsub.s32 1, %v1538
          %v1540 = vrot.slane %v1524, %v1539
          %v1542 = vpack.i.b16 %v1528, %v1528
          %v1544 = vlaneseq
          %v1545 = vshrl.u32 %v1544, 7
          %v1546 = vsub.s32 0, %v1545
          %v1547 = vrot.slane %v1542, %v1546
          %v1549 = vpack.i.b16 %v1532, %v1532
          %v1551 = vlaneseq
          %v1552 = vshrl.u32 %v1551, 7
          %v1553 = vsub.s32 0, %v1552
          %v1554 = vrot.slane %v1549, %v1553
          %v1556 = vpack.i.b16 %v1536, %v1536
          %v1558 = vlaneseq
          %v1559 = vshrl.u32 %v1558, 7
          %v1560 = vsub.s32 0, %v1559
          %v1561 = vrot.slane %v1556, %v1560
          %v1563 = vpack.i.b16 %v1540, %v1540
          %v1565 = vlaneseq
          %v1566 = vshrl.u32 %v1565, 7
          %v1567 = vsub.s32 0, %v1566
          %v1568 = vrot.slane %v1563, %v1567
          %v1569 = vmul.bf16 %v1512, %v1547
          %v1570 = vmul.bf16 %v1513, %v1554
          %v1571 = vmul.bf16 %v1514, %v1547
          %v1572 = vmul.bf16 %v1515, %v1554
          %v1573 = vmul.bf16 %v1516, %v1561
          %v1574 = vmul.bf16 %v1517, %v1568
          %v1575 = vmul.bf16 %v1518, %v1561
          %v1576 = vmul.bf16 %v1519, %v1568
          %1577 = vst [vmem:[%s717 + $0x1c0] sm:$0xff] %v1569
          %1578 = vst [vmem:[%s717 + $0x1c8] sm:$0xff] %v1570
          %1579 = vst [vmem:[%s717 + $0x1d0] sm:$0xff] %v1571
          %1580 = vst [vmem:[%s717 + $0x1d8] sm:$0xff] %v1572
          %1581 = vst [vmem:[%s717 + $0x1e0] sm:$0xff] %v1573
          %1582 = vst [vmem:[%s717 + $0x1e8] sm:$0xff] %v1574
          %1583 = vst [vmem:[%s717 + $0x1f0] sm:$0xff] %v1575
          %1584 = vst [vmem:[%s717 + $0x1f8] sm:$0xff] %v1576
        $region102: #{tpu_custom_call.1} parent=77 // pred_fallthru
          _
        %v1585 = vld [vmem:[%s400] sm:$0xff]
        %v1586 = vld [vmem:[%s400 + $0x8] sm:$0xff]
        %v1587 = vld [vmem:[%s400 + $0x10] sm:$0xff]
        %v1588 = vld [vmem:[%s400 + $0x18] sm:$0xff]
        %v1589 = vld [vmem:[%s400 + $0x20] sm:$0xff]
        %v1590 = vld [vmem:[%s400 + $0x28] sm:$0xff]
        %v1591 = vld [vmem:[%s400 + $0x30] sm:$0xff]
        %v1592 = vld [vmem:[%s400 + $0x38] sm:$0xff]
        %v1593 = vld [vmem:[%s400 + $0x40] sm:$0xff]
        %v1594 = vld [vmem:[%s400 + $0x48] sm:$0xff]
        %v1595 = vld [vmem:[%s400 + $0x50] sm:$0xff]
        %v1596 = vld [vmem:[%s400 + $0x58] sm:$0xff]
        %v1597 = vld [vmem:[%s400 + $0x60] sm:$0xff]
        %v1598 = vld [vmem:[%s400 + $0x68] sm:$0xff]
        %v1599 = vld [vmem:[%s400 + $0x70] sm:$0xff]
        %v1600 = vld [vmem:[%s400 + $0x78] sm:$0xff]
        %v1601 = vld [vmem:[%s400 + $0x80] sm:$0xff]
        %v1602 = vld [vmem:[%s400 + $0x88] sm:$0xff]
        %v1603 = vld [vmem:[%s400 + $0x90] sm:$0xff]
        %v1604 = vld [vmem:[%s400 + $0x98] sm:$0xff]
        %v1605 = vld [vmem:[%s400 + $0xa0] sm:$0xff]
        %v1606 = vld [vmem:[%s400 + $0xa8] sm:$0xff]
        %v1607 = vld [vmem:[%s400 + $0xb0] sm:$0xff]
        %v1608 = vld [vmem:[%s400 + $0xb8] sm:$0xff]
        %v1609 = vld [vmem:[%s400 + $0xc0] sm:$0xff]
        %v1610 = vld [vmem:[%s400 + $0xc8] sm:$0xff]
        %v1611 = vld [vmem:[%s400 + $0xd0] sm:$0xff]
        %v1612 = vld [vmem:[%s400 + $0xd8] sm:$0xff]
        %v1613 = vld [vmem:[%s400 + $0xe0] sm:$0xff]
        %v1614 = vld [vmem:[%s400 + $0xe8] sm:$0xff]
        %v1615 = vld [vmem:[%s400 + $0xf0] sm:$0xff]
        %v1616 = vld [vmem:[%s400 + $0xf8] sm:$0xff]
        %v1617 = vunpack.c.l.f8e4m3fn %v1585
        %v1618 = vunpack.c.l.f8e4m3fn %v1586
        %v1619 = vunpack.c.l.f8e4m3fn %v1587
        %v1620 = vunpack.c.l.f8e4m3fn %v1588
        %v1621 = vunpack.c.h.f8e4m3fn %v1585
        %v1622 = vunpack.c.h.f8e4m3fn %v1586
        %v1623 = vunpack.c.h.f8e4m3fn %v1587
        %v1624 = vunpack.c.h.f8e4m3fn %v1588
        %v1625 = vunpack.c.l.f8e4m3fn %v1589
        %v1626 = vunpack.c.l.f8e4m3fn %v1590
        %v1627 = vunpack.c.l.f8e4m3fn %v1591
        %v1628 = vunpack.c.l.f8e4m3fn %v1592
        %v1629 = vunpack.c.h.f8e4m3fn %v1589
        %v1630 = vunpack.c.h.f8e4m3fn %v1590
        %v1631 = vunpack.c.h.f8e4m3fn %v1591
        %v1632 = vunpack.c.h.f8e4m3fn %v1592
        %v1633 = vunpack.c.l.f8e4m3fn %v1593
        %v1634 = vunpack.c.l.f8e4m3fn %v1594
        %v1635 = vunpack.c.l.f8e4m3fn %v1595
        %v1636 = vunpack.c.l.f8e4m3fn %v1596
        %v1637 = vunpack.c.h.f8e4m3fn %v1593
        %v1638 = vunpack.c.h.f8e4m3fn %v1594
        %v1639 = vunpack.c.h.f8e4m3fn %v1595
        %v1640 = vunpack.c.h.f8e4m3fn %v1596
        %v1641 = vunpack.c.l.f8e4m3fn %v1597
        %v1642 = vunpack.c.l.f8e4m3fn %v1598
        %v1643 = vunpack.c.l.f8e4m3fn %v1599
        %v1644 = vunpack.c.l.f8e4m3fn %v1600
        %v1645 = vunpack.c.h.f8e4m3fn %v1597
        %v1646 = vunpack.c.h.f8e4m3fn %v1598
        %v1647 = vunpack.c.h.f8e4m3fn %v1599
        %v1648 = vunpack.c.h.f8e4m3fn %v1600
        %v1649 = vunpack.c.l.f8e4m3fn %v1601
        %v1650 = vunpack.c.l.f8e4m3fn %v1602
        %v1651 = vunpack.c.l.f8e4m3fn %v1603
        %v1652 = vunpack.c.l.f8e4m3fn %v1604
        %v1653 = vunpack.c.h.f8e4m3fn %v1601
        %v1654 = vunpack.c.h.f8e4m3fn %v1602
        %v1655 = vunpack.c.h.f8e4m3fn %v1603
        %v1656 = vunpack.c.h.f8e4m3fn %v1604
        %v1657 = vunpack.c.l.f8e4m3fn %v1605
        %v1658 = vunpack.c.l.f8e4m3fn %v1606
        %v1659 = vunpack.c.l.f8e4m3fn %v1607
        %v1660 = vunpack.c.l.f8e4m3fn %v1608
        %v1661 = vunpack.c.h.f8e4m3fn %v1605
        %v1662 = vunpack.c.h.f8e4m3fn %v1606
        %v1663 = vunpack.c.h.f8e4m3fn %v1607
        %v1664 = vunpack.c.h.f8e4m3fn %v1608
        %v1665 = vunpack.c.l.f8e4m3fn %v1609
        %v1666 = vunpack.c.l.f8e4m3fn %v1610
        %v1667 = vunpack.c.l.f8e4m3fn %v1611
        %v1668 = vunpack.c.l.f8e4m3fn %v1612
        %v1669 = vunpack.c.h.f8e4m3fn %v1609
        %v1670 = vunpack.c.h.f8e4m3fn %v1610
        %v1671 = vunpack.c.h.f8e4m3fn %v1611
        %v1672 = vunpack.c.h.f8e4m3fn %v1612
        %v1673 = vunpack.c.l.f8e4m3fn %v1613
        %v1674 = vunpack.c.l.f8e4m3fn %v1614
        %v1675 = vunpack.c.l.f8e4m3fn %v1615
        %v1676 = vunpack.c.l.f8e4m3fn %v1616
        %v1677 = vunpack.c.h.f8e4m3fn %v1613
        %v1678 = vunpack.c.h.f8e4m3fn %v1614
        %v1679 = vunpack.c.h.f8e4m3fn %v1615
        %v1680 = vunpack.c.h.f8e4m3fn %v1616
        %v1681 = vld [vmem:[#allocation2] sm:$0xff]
        %v1682 = vld [vmem:[#allocation2 + $0x8] sm:$0xff]
        %v1683 = vld [vmem:[#allocation2 + $0x10] sm:$0xff]
        %v1684 = vld [vmem:[#allocation2 + $0x18] sm:$0xff]
        %v1685 = vld [vmem:[#allocation2 + $0x20] sm:$0xff]
        %v1686 = vld [vmem:[#allocation2 + $0x28] sm:$0xff]
        %v1687 = vld [vmem:[#allocation2 + $0x30] sm:$0xff]
        %v1688 = vld [vmem:[#allocation2 + $0x38] sm:$0xff]
        %v1689 = vld [vmem:[#allocation2 + $0x40] sm:$0xff]
        %v1690 = vld [vmem:[#allocation2 + $0x48] sm:$0xff]
        %v1691 = vld [vmem:[#allocation2 + $0x50] sm:$0xff]
        %v1692 = vld [vmem:[#allocation2 + $0x58] sm:$0xff]
        %v1693 = vld [vmem:[#allocation2 + $0x60] sm:$0xff]
        %v1694 = vld [vmem:[#allocation2 + $0x68] sm:$0xff]
        %v1695 = vld [vmem:[#allocation2 + $0x70] sm:$0xff]
        %v1696 = vld [vmem:[#allocation2 + $0x78] sm:$0xff]
        %v1697 = vld [vmem:[#allocation2 + $0x80] sm:$0xff]
        %v1698 = vld [vmem:[#allocation2 + $0x88] sm:$0xff]
        %v1699 = vld [vmem:[#allocation2 + $0x90] sm:$0xff]
        %v1700 = vld [vmem:[#allocation2 + $0x98] sm:$0xff]
        %v1701 = vld [vmem:[#allocation2 + $0xa0] sm:$0xff]
        %v1702 = vld [vmem:[#allocation2 + $0xa8] sm:$0xff]
        %v1703 = vld [vmem:[#allocation2 + $0xb0] sm:$0xff]
        %v1704 = vld [vmem:[#allocation2 + $0xb8] sm:$0xff]
        %v1705 = vld [vmem:[#allocation2 + $0xc0] sm:$0xff]
        %v1706 = vld [vmem:[#allocation2 + $0xc8] sm:$0xff]
        %v1707 = vld [vmem:[#allocation2 + $0xd0] sm:$0xff]
        %v1708 = vld [vmem:[#allocation2 + $0xd8] sm:$0xff]
        %v1709 = vld [vmem:[#allocation2 + $0xe0] sm:$0xff]
        %v1710 = vld [vmem:[#allocation2 + $0xe8] sm:$0xff]
        %v1711 = vld [vmem:[#allocation2 + $0xf0] sm:$0xff]
        %v1712 = vld [vmem:[#allocation2 + $0xf8] sm:$0xff]
        %v1713 = vld [vmem:[#allocation2 + $0x100] sm:$0xff]
        %v1714 = vld [vmem:[#allocation2 + $0x108] sm:$0xff]
        %v1715 = vld [vmem:[#allocation2 + $0x110] sm:$0xff]
        %v1716 = vld [vmem:[#allocation2 + $0x118] sm:$0xff]
        %v1717 = vld [vmem:[#allocation2 + $0x120] sm:$0xff]
        %v1718 = vld [vmem:[#allocation2 + $0x128] sm:$0xff]
        %v1719 = vld [vmem:[#allocation2 + $0x130] sm:$0xff]
        %v1720 = vld [vmem:[#allocation2 + $0x138] sm:$0xff]
        %v1721 = vld [vmem:[#allocation2 + $0x140] sm:$0xff]
        %v1722 = vld [vmem:[#allocation2 + $0x148] sm:$0xff]
        %v1723 = vld [vmem:[#allocation2 + $0x150] sm:$0xff]
        %v1724 = vld [vmem:[#allocation2 + $0x158] sm:$0xff]
        %v1725 = vld [vmem:[#allocation2 + $0x160] sm:$0xff]
        %v1726 = vld [vmem:[#allocation2 + $0x168] sm:$0xff]
        %v1727 = vld [vmem:[#allocation2 + $0x170] sm:$0xff]
        %v1728 = vld [vmem:[#allocation2 + $0x178] sm:$0xff]
        %v1729 = vld [vmem:[#allocation2 + $0x180] sm:$0xff]
        %v1730 = vld [vmem:[#allocation2 + $0x188] sm:$0xff]
        %v1731 = vld [vmem:[#allocation2 + $0x190] sm:$0xff]
        %v1732 = vld [vmem:[#allocation2 + $0x198] sm:$0xff]
        %v1733 = vld [vmem:[#allocation2 + $0x1a0] sm:$0xff]
        %v1734 = vld [vmem:[#allocation2 + $0x1a8] sm:$0xff]
        %v1735 = vld [vmem:[#allocation2 + $0x1b0] sm:$0xff]
        %v1736 = vld [vmem:[#allocation2 + $0x1b8] sm:$0xff]
        %v1737 = vld [vmem:[#allocation2 + $0x1c0] sm:$0xff]
        %v1738 = vld [vmem:[#allocation2 + $0x1c8] sm:$0xff]
        %v1739 = vld [vmem:[#allocation2 + $0x1d0] sm:$0xff]
        %v1740 = vld [vmem:[#allocation2 + $0x1d8] sm:$0xff]
        %v1741 = vld [vmem:[#allocation2 + $0x1e0] sm:$0xff]
        %v1742 = vld [vmem:[#allocation2 + $0x1e8] sm:$0xff]
        %v1743 = vld [vmem:[#allocation2 + $0x1f0] sm:$0xff]
        %v1744 = vld [vmem:[#allocation2 + $0x1f8] sm:$0xff]
        %s1745 = smul.u32 %s33, 64
        %s1746 = smul.addr %s1745, 8
        %s1747 = scalar_lea.vmem [#allocation3], %s1746
        %v1748 = vld [vmem:[%s1747] sm:$0xff]
        %v1749 = vld [vmem:[%s1747 + $0x8] sm:$0xff]
        %v1750 = vld [vmem:[%s1747 + $0x10] sm:$0xff]
        %v1751 = vld [vmem:[%s1747 + $0x18] sm:$0xff]
        %v1752 = vld [vmem:[%s1747 + $0x20] sm:$0xff]
        %v1753 = vld [vmem:[%s1747 + $0x28] sm:$0xff]
        %v1754 = vld [vmem:[%s1747 + $0x30] sm:$0xff]
        %v1755 = vld [vmem:[%s1747 + $0x38] sm:$0xff]
        %v1756 = vld [vmem:[%s1747 + $0x40] sm:$0xff]
        %v1757 = vld [vmem:[%s1747 + $0x48] sm:$0xff]
        %v1758 = vld [vmem:[%s1747 + $0x50] sm:$0xff]
        %v1759 = vld [vmem:[%s1747 + $0x58] sm:$0xff]
        %v1760 = vld [vmem:[%s1747 + $0x60] sm:$0xff]
        %v1761 = vld [vmem:[%s1747 + $0x68] sm:$0xff]
        %v1762 = vld [vmem:[%s1747 + $0x70] sm:$0xff]
        %v1763 = vld [vmem:[%s1747 + $0x78] sm:$0xff]
        %v1764 = vld [vmem:[%s1747 + $0x80] sm:$0xff]
        %v1765 = vld [vmem:[%s1747 + $0x88] sm:$0xff]
        %v1766 = vld [vmem:[%s1747 + $0x90] sm:$0xff]
        %v1767 = vld [vmem:[%s1747 + $0x98] sm:$0xff]
        %v1768 = vld [vmem:[%s1747 + $0xa0] sm:$0xff]
        %v1769 = vld [vmem:[%s1747 + $0xa8] sm:$0xff]
        %v1770 = vld [vmem:[%s1747 + $0xb0] sm:$0xff]
        %v1771 = vld [vmem:[%s1747 + $0xb8] sm:$0xff]
        %v1772 = vld [vmem:[%s1747 + $0xc0] sm:$0xff]
        %v1773 = vld [vmem:[%s1747 + $0xc8] sm:$0xff]
        %v1774 = vld [vmem:[%s1747 + $0xd0] sm:$0xff]
        %v1775 = vld [vmem:[%s1747 + $0xd8] sm:$0xff]
        %v1776 = vld [vmem:[%s1747 + $0xe0] sm:$0xff]
        %v1777 = vld [vmem:[%s1747 + $0xe8] sm:$0xff]
        %v1778 = vld [vmem:[%s1747 + $0xf0] sm:$0xff]
        %v1779 = vld [vmem:[%s1747 + $0xf8] sm:$0xff]
        %v1780 = vld [vmem:[%s1747 + $0x100] sm:$0xff]
        %v1781 = vld [vmem:[%s1747 + $0x108] sm:$0xff]
        %v1782 = vld [vmem:[%s1747 + $0x110] sm:$0xff]
        %v1783 = vld [vmem:[%s1747 + $0x118] sm:$0xff]
        %v1784 = vld [vmem:[%s1747 + $0x120] sm:$0xff]
        %v1785 = vld [vmem:[%s1747 + $0x128] sm:$0xff]
        %v1786 = vld [vmem:[%s1747 + $0x130] sm:$0xff]
        %v1787 = vld [vmem:[%s1747 + $0x138] sm:$0xff]
        %v1788 = vld [vmem:[%s1747 + $0x140] sm:$0xff]
        %v1789 = vld [vmem:[%s1747 + $0x148] sm:$0xff]
        %v1790 = vld [vmem:[%s1747 + $0x150] sm:$0xff]
        %v1791 = vld [vmem:[%s1747 + $0x158] sm:$0xff]
        %v1792 = vld [vmem:[%s1747 + $0x160] sm:$0xff]
        %v1793 = vld [vmem:[%s1747 + $0x168] sm:$0xff]
        %v1794 = vld [vmem:[%s1747 + $0x170] sm:$0xff]
        %v1795 = vld [vmem:[%s1747 + $0x178] sm:$0xff]
        %v1796 = vld [vmem:[%s1747 + $0x180] sm:$0xff]
        %v1797 = vld [vmem:[%s1747 + $0x188] sm:$0xff]
        %v1798 = vld [vmem:[%s1747 + $0x190] sm:$0xff]
        %v1799 = vld [vmem:[%s1747 + $0x198] sm:$0xff]
        %v1800 = vld [vmem:[%s1747 + $0x1a0] sm:$0xff]
        %v1801 = vld [vmem:[%s1747 + $0x1a8] sm:$0xff]
        %v1802 = vld [vmem:[%s1747 + $0x1b0] sm:$0xff]
        %v1803 = vld [vmem:[%s1747 + $0x1b8] sm:$0xff]
        %v1804 = vld [vmem:[%s1747 + $0x1c0] sm:$0xff]
        %v1805 = vld [vmem:[%s1747 + $0x1c8] sm:$0xff]
        %v1806 = vld [vmem:[%s1747 + $0x1d0] sm:$0xff]
        %v1807 = vld [vmem:[%s1747 + $0x1d8] sm:$0xff]
        %v1808 = vld [vmem:[%s1747 + $0x1e0] sm:$0xff]
        %v1809 = vld [vmem:[%s1747 + $0x1e8] sm:$0xff]
        %v1810 = vld [vmem:[%s1747 + $0x1f0] sm:$0xff]
        %v1811 = vld [vmem:[%s1747 + $0x1f8] sm:$0xff]
        %1812 = vmatprep.subr.bf16.mxu0 %v1749
        %1813 = vmatpush1.bf16.msra.mxu0 %v1748
        %1814 = vmatprep.subr.bf16.mxu0 %v1751
        %1815 = vmatpush1.bf16.msra.mxu0 %v1750
        %1816 = vmatprep.subr.bf16.mxu0 %v1753
        %1817 = vmatpush1.bf16.msra.mxu0 %v1752
        %1818 = vmatprep.subr.bf16.mxu0 %v1755
        %1819 = vmatpush1.bf16.msra.mxu0 %v1754
        %1820 = vmatprep.subr.bf16.mxu0 %v1757
        %1821 = vmatpush1.bf16.msra.mxu0 %v1756
        %1822 = vmatprep.subr.bf16.mxu0 %v1759
        %1823 = vmatpush1.bf16.msra.mxu0 %v1758
        %1824 = vmatprep.subr.bf16.mxu0 %v1761
        %1825 = vmatpush1.bf16.msra.mxu0 %v1760
        %1826 = vmatprep.subr.bf16.mxu0 %v1763
        %1827 = vmatpush1.bf16.msra.mxu0 %v1762
        %1828 = vmatprep.subr.bf16.mxu0 %v1765
        %1829 = vmatpush1.bf16.msra.mxu0 %v1764
        %1830 = vmatprep.subr.bf16.mxu0 %v1767
        %1831 = vmatpush1.bf16.msra.mxu0 %v1766
        %1832 = vmatprep.subr.bf16.mxu0 %v1769
        %1833 = vmatpush1.bf16.msra.mxu0 %v1768
        %1834 = vmatprep.subr.bf16.mxu0 %v1771
        %1835 = vmatpush1.bf16.msra.mxu0 %v1770
        %1836 = vmatprep.subr.bf16.mxu0 %v1773
        %1837 = vmatpush1.bf16.msra.mxu0 %v1772
        %1838 = vmatprep.subr.bf16.mxu0 %v1775
        %1839 = vmatpush1.bf16.msra.mxu0 %v1774
        %1840 = vmatprep.subr.bf16.mxu0 %v1777
        %1841 = vmatpush1.bf16.msra.mxu0 %v1776
        %1842 = vmatprep.subr.bf16.mxu0 %v1779
        %1843 = vmatpush1.bf16.msra.mxu0 %v1778
        %1844 = vmatprep.mubr.bf16.mxu0 %v1618
        %1845 = vmatmul.mubr.bf16.gmra.mrb[0].mxu0 %v1617
        %v1846 = vpop.f32.mrb[0].mxu0
        %v1847 = vadd.f32 0.0, %v1846
        %v1848 = vpop.f32.mrb[0].mxu0
        %v1849 = vadd.f32 0.0, %v1848
        %v1850 = vpop.f32.mrb[0].mxu0
        %v1851 = vadd.f32 0.0, %v1850
        %v1852 = vpop.f32.mrb[0].mxu0
        %v1853 = vadd.f32 0.0, %v1852
        %1854 = vmatprep.mubr.bf16.mxu0 %v1622
        %1855 = vmatmul.mubr.bf16.gmra.mrb[0].mxu0 %v1621
        %v1856 = vpop.f32.mrb[0].mxu0
        %v1857 = vadd.f32 0.0, %v1856
        %v1858 = vpop.f32.mrb[0].mxu0
        %v1859 = vadd.f32 0.0, %v1858
        %v1860 = vpop.f32.mrb[0].mxu0
        %v1861 = vadd.f32 0.0, %v1860
        %v1862 = vpop.f32.mrb[0].mxu0
        %v1863 = vadd.f32 0.0, %v1862
        %1864 = vmatprep.mubr.bf16.mxu0 %v1626
        %1865 = vmatmul.mubr.bf16.gmra.mrb[0].mxu0 %v1625
        %v1866 = vpop.f32.mrb[0].mxu0
        %v1867 = vadd.f32 0.0, %v1866
        %v1868 = vpop.f32.mrb[0].mxu0
        %v1869 = vadd.f32 0.0, %v1868
        %v1870 = vpop.f32.mrb[0].mxu0
        %v1871 = vadd.f32 0.0, %v1870
        %v1872 = vpop.f32.mrb[0].mxu0
        %v1873 = vadd.f32 0.0, %v1872
        %1874 = vmatprep.mubr.bf16.mxu0 %v1630
        %1875 = vmatmul.mubr.bf16.gmra.mrb[0].mxu0 %v1629
        %v1876 = vpop.f32.mrb[0].mxu0
        %v1877 = vadd.f32 0.0, %v1876
        %v1878 = vpop.f32.mrb[0].mxu0
        %v1879 = vadd.f32 0.0, %v1878
        %v1880 = vpop.f32.mrb[0].mxu0
        %v1881 = vadd.f32 0.0, %v1880
        %v1882 = vpop.f32.mrb[0].mxu0
        %v1883 = vadd.f32 0.0, %v1882
        %1884 = vmatprep.mubr.bf16.mxu0 %v1634
        %1885 = vmatmul.mubr.bf16.gmra.mrb[0].mxu0 %v1633
        %v1886 = vpop.f32.mrb[0].mxu0
        %v1887 = vadd.f32 0.0, %v1886
        %v1888 = vpop.f32.mrb[0].mxu0
        %v1889 = vadd.f32 0.0, %v1888
        %v1890 = vpop.f32.mrb[0].mxu0
        %v1891 = vadd.f32 0.0, %v1890
        %v1892 = vpop.f32.mrb[0].mxu0
        %v1893 = vadd.f32 0.0, %v1892
        %1894 = vmatprep.mubr.bf16.mxu0 %v1638
        %1895 = vmatmul.mubr.bf16.gmra.mrb[0].mxu0 %v1637
        %v1896 = vpop.f32.mrb[0].mxu0
        %v1897 = vadd.f32 0.0, %v1896
        %v1898 = vpop.f32.mrb[0].mxu0
        %v1899 = vadd.f32 0.0, %v1898
        %v1900 = vpop.f32.mrb[0].mxu0
        %v1901 = vadd.f32 0.0, %v1900
        %v1902 = vpop.f32.mrb[0].mxu0
        %v1903 = vadd.f32 0.0, %v1902
        %1904 = vmatprep.mubr.bf16.mxu0 %v1642
        %1905 = vmatmul.mubr.bf16.gmra.mrb[0].mxu0 %v1641
        %v1906 = vpop.f32.mrb[0].mxu0
        %v1907 = vadd.f32 0.0, %v1906
        %v1908 = vpop.f32.mrb[0].mxu0
        %v1909 = vadd.f32 0.0, %v1908
        %v1910 = vpop.f32.mrb[0].mxu0
        %v1911 = vadd.f32 0.0, %v1910
        %v1912 = vpop.f32.mrb[0].mxu0
        %v1913 = vadd.f32 0.0, %v1912
        %1914 = vmatprep.mubr.bf16.mxu0 %v1646
        %1915 = vmatmul.mubr.bf16.gmra.mrb[0].mxu0 %v1645
        %v1916 = vpop.f32.mrb[0].mxu0
        %v1917 = vadd.f32 0.0, %v1916
        %v1918 = vpop.f32.mrb[0].mxu0
        %v1919 = vadd.f32 0.0, %v1918
        %v1920 = vpop.f32.mrb[0].mxu0
        %v1921 = vadd.f32 0.0, %v1920
        %v1922 = vpop.f32.mrb[0].mxu0
        %v1923 = vadd.f32 0.0, %v1922
        %1924 = vmatprep.mubr.bf16.mxu0 %v1650
        %1925 = vmatmul.mubr.bf16.gmra.mrb[0].mxu0 %v1649
        %v1926 = vpop.f32.mrb[0].mxu0
        %v1927 = vadd.f32 0.0, %v1926
        %v1928 = vpop.f32.mrb[0].mxu0
        %v1929 = vadd.f32 0.0, %v1928
        %v1930 = vpop.f32.mrb[0].mxu0
        %v1931 = vadd.f32 0.0, %v1930
        %v1932 = vpop.f32.mrb[0].mxu0
        %v1933 = vadd.f32 0.0, %v1932
        %1934 = vmatprep.mubr.bf16.mxu0 %v1654
        %1935 = vmatmul.mubr.bf16.gmra.mrb[0].mxu0 %v1653
        %v1936 = vpop.f32.mrb[0].mxu0
        %v1937 = vadd.f32 0.0, %v1936
        %v1938 = vpop.f32.mrb[0].mxu0
        %v1939 = vadd.f32 0.0, %v1938
        %v1940 = vpop.f32.mrb[0].mxu0
        %v1941 = vadd.f32 0.0, %v1940
        %v1942 = vpop.f32.mrb[0].mxu0
        %v1943 = vadd.f32 0.0, %v1942
        %1944 = vmatprep.mubr.bf16.mxu0 %v1658
        %1945 = vmatmul.mubr.bf16.gmra.mrb[0].mxu0 %v1657
        %v1946 = vpop.f32.mrb[0].mxu0
        %v1947 = vadd.f32 0.0, %v1946
        %v1948 = vpop.f32.mrb[0].mxu0
        %v1949 = vadd.f32 0.0, %v1948
        %v1950 = vpop.f32.mrb[0].mxu0
        %v1951 = vadd.f32 0.0, %v1950
        %v1952 = vpop.f32.mrb[0].mxu0
        %v1953 = vadd.f32 0.0, %v1952
        %1954 = vmatprep.mubr.bf16.mxu0 %v1662
        %1955 = vmatmul.mubr.bf16.gmra.mrb[0].mxu0 %v1661
        %v1956 = vpop.f32.mrb[0].mxu0
        %v1957 = vadd.f32 0.0, %v1956
        %v1958 = vpop.f32.mrb[0].mxu0
        %v1959 = vadd.f32 0.0, %v1958
        %v1960 = vpop.f32.mrb[0].mxu0
        %v1961 = vadd.f32 0.0, %v1960
        %v1962 = vpop.f32.mrb[0].mxu0
        %v1963 = vadd.f32 0.0, %v1962
        %1964 = vmatprep.mubr.bf16.mxu0 %v1666
        %1965 = vmatmul.mubr.bf16.gmra.mrb[0].mxu0 %v1665
        %v1966 = vpop.f32.mrb[0].mxu0
        %v1967 = vadd.f32 0.0, %v1966
        %v1968 = vpop.f32.mrb[0].mxu0
        %v1969 = vadd.f32 0.0, %v1968
        %v1970 = vpop.f32.mrb[0].mxu0
        %v1971 = vadd.f32 0.0, %v1970
        %v1972 = vpop.f32.mrb[0].mxu0
        %v1973 = vadd.f32 0.0, %v1972
        %1974 = vmatprep.mubr.bf16.mxu0 %v1670
        %1975 = vmatmul.mubr.bf16.gmra.mrb[0].mxu0 %v1669
        %v1976 = vpop.f32.mrb[0].mxu0
        %v1977 = vadd.f32 0.0, %v1976
        %v1978 = vpop.f32.mrb[0].mxu0
        %v1979 = vadd.f32 0.0, %v1978
        %v1980 = vpop.f32.mrb[0].mxu0
        %v1981 = vadd.f32 0.0, %v1980
        %v1982 = vpop.f32.mrb[0].mxu0
        %v1983 = vadd.f32 0.0, %v1982
        %1984 = vmatprep.mubr.bf16.mxu0 %v1674
        %1985 = vmatmul.mubr.bf16.gmra.mrb[0].mxu0 %v1673
        %v1986 = vpop.f32.mrb[0].mxu0
        %v1987 = vadd.f32 0.0, %v1986
        %v1988 = vpop.f32.mrb[0].mxu0
        %v1989 = vadd.f32 0.0, %v1988
        %v1990 = vpop.f32.mrb[0].mxu0
        %v1991 = vadd.f32 0.0, %v1990
        %v1992 = vpop.f32.mrb[0].mxu0
        %v1993 = vadd.f32 0.0, %v1992
        %1994 = vmatprep.mubr.bf16.mxu0 %v1678
        %1995 = vmatmul.mubr.bf16.gmra.mrb[0].mxu0 %v1677
        %v1996 = vpop.f32.mrb[0].mxu0
        %v1997 = vadd.f32 0.0, %v1996
        %v1998 = vpop.f32.mrb[0].mxu0
        %v1999 = vadd.f32 0.0, %v1998
        %v2000 = vpop.f32.mrb[0].mxu0
        %v2001 = vadd.f32 0.0, %v2000
        %v2002 = vpop.f32.mrb[0].mxu0
        %v2003 = vadd.f32 0.0, %v2002
        %2004 = vdwg.mxu0
        %2005 = vmatprep.subr.bf16.mxu0 %v1781
        %2006 = vmatpush1.bf16.msra.mxu0 %v1780
        %2007 = vmatprep.subr.bf16.mxu0 %v1783
        %2008 = vmatpush1.bf16.msra.mxu0 %v1782
        %2009 = vmatprep.subr.bf16.mxu0 %v1785
        %2010 = vmatpush1.bf16.msra.mxu0 %v1784
        %2011 = vmatprep.subr.bf16.mxu0 %v1787
        %2012 = vmatpush1.bf16.msra.mxu0 %v1786
        %2013 = vmatprep.subr.bf16.mxu0 %v1789
        %2014 = vmatpush1.bf16.msra.mxu0 %v1788
        %2015 = vmatprep.subr.bf16.mxu0 %v1791
        %2016 = vmatpush1.bf16.msra.mxu0 %v1790
        %2017 = vmatprep.subr.bf16.mxu0 %v1793
        %2018 = vmatpush1.bf16.msra.mxu0 %v1792
        %2019 = vmatprep.subr.bf16.mxu0 %v1795
        %2020 = vmatpush1.bf16.msra.mxu0 %v1794
        %2021 = vmatprep.subr.bf16.mxu0 %v1797
        %2022 = vmatpush1.bf16.msra.mxu0 %v1796
        %2023 = vmatprep.subr.bf16.mxu0 %v1799
        %2024 = vmatpush1.bf16.msra.mxu0 %v1798
        %2025 = vmatprep.subr.bf16.mxu0 %v1801
        %2026 = vmatpush1.bf16.msra.mxu0 %v1800
        %2027 = vmatprep.subr.bf16.mxu0 %v1803
        %2028 = vmatpush1.bf16.msra.mxu0 %v1802
        %2029 = vmatprep.subr.bf16.mxu0 %v1805
        %2030 = vmatpush1.bf16.msra.mxu0 %v1804
        %2031 = vmatprep.subr.bf16.mxu0 %v1807
        %2032 = vmatpush1.bf16.msra.mxu0 %v1806
        %2033 = vmatprep.subr.bf16.mxu0 %v1809
        %2034 = vmatpush1.bf16.msra.mxu0 %v1808
        %2035 = vmatprep.subr.bf16.mxu0 %v1811
        %2036 = vmatpush1.bf16.msra.mxu0 %v1810
        %2037 = vmatprep.mubr.bf16.mxu0 %v1620
        %2038 = vmatmul.mubr.bf16.gmra.mrb[0].mxu0 %v1619
        %v2039 = vpop.f32.mrb[0].mxu0
        %v2040 = vadd.f32 %v1847, %v2039
        %v2041 = vpop.f32.mrb[0].mxu0
        %v2042 = vadd.f32 %v1849, %v2041
        %v2043 = vpop.f32.mrb[0].mxu0
        %v2044 = vadd.f32 %v1851, %v2043
        %v2045 = vpop.f32.mrb[0].mxu0
        %v2046 = vadd.f32 %v1853, %v2045
        %2047 = vmatprep.mubr.bf16.mxu0 %v1624
        %2048 = vmatmul.mubr.bf16.gmra.mrb[0].mxu0 %v1623
        %v2049 = vpop.f32.mrb[0].mxu0
        %v2050 = vadd.f32 %v1857, %v2049
        %v2051 = vpop.f32.mrb[0].mxu0
        %v2052 = vadd.f32 %v1859, %v2051
        %v2053 = vpop.f32.mrb[0].mxu0
        %v2054 = vadd.f32 %v1861, %v2053
        %v2055 = vpop.f32.mrb[0].mxu0
        %v2056 = vadd.f32 %v1863, %v2055
        %2057 = vmatprep.mubr.bf16.mxu0 %v1628
        %2058 = vmatmul.mubr.bf16.gmra.mrb[0].mxu0 %v1627
        %v2059 = vpop.f32.mrb[0].mxu0
        %v2060 = vadd.f32 %v1867, %v2059
        %v2061 = vpop.f32.mrb[0].mxu0
        %v2062 = vadd.f32 %v1869, %v2061
        %v2063 = vpop.f32.mrb[0].mxu0
        %v2064 = vadd.f32 %v1871, %v2063
        %v2065 = vpop.f32.mrb[0].mxu0
        %v2066 = vadd.f32 %v1873, %v2065
        %2067 = vmatprep.mubr.bf16.mxu0 %v1632
        %2068 = vmatmul.mubr.bf16.gmra.mrb[0].mxu0 %v1631
        %v2069 = vpop.f32.mrb[0].mxu0
        %v2070 = vadd.f32 %v1877, %v2069
        %v2071 = vpop.f32.mrb[0].mxu0
        %v2072 = vadd.f32 %v1879, %v2071
        %v2073 = vpop.f32.mrb[0].mxu0
        %v2074 = vadd.f32 %v1881, %v2073
        %v2075 = vpop.f32.mrb[0].mxu0
        %v2076 = vadd.f32 %v1883, %v2075
        %2077 = vmatprep.mubr.bf16.mxu0 %v1636
        %2078 = vmatmul.mubr.bf16.gmra.mrb[0].mxu0 %v1635
        %v2079 = vpop.f32.mrb[0].mxu0
        %v2080 = vadd.f32 %v1887, %v2079
        %v2081 = vpop.f32.mrb[0].mxu0
        %v2082 = vadd.f32 %v1889, %v2081
        %v2083 = vpop.f32.mrb[0].mxu0
        %v2084 = vadd.f32 %v1891, %v2083
        %v2085 = vpop.f32.mrb[0].mxu0
        %v2086 = vadd.f32 %v1893, %v2085
        %2087 = vmatprep.mubr.bf16.mxu0 %v1640
        %2088 = vmatmul.mubr.bf16.gmra.mrb[0].mxu0 %v1639
        %v2089 = vpop.f32.mrb[0].mxu0
        %v2090 = vadd.f32 %v1897, %v2089
        %v2091 = vpop.f32.mrb[0].mxu0
        %v2092 = vadd.f32 %v1899, %v2091
        %v2093 = vpop.f32.mrb[0].mxu0
        %v2094 = vadd.f32 %v1901, %v2093
        %v2095 = vpop.f32.mrb[0].mxu0
        %v2096 = vadd.f32 %v1903, %v2095
        %2097 = vmatprep.mubr.bf16.mxu0 %v1644
        %2098 = vmatmul.mubr.bf16.gmra.mrb[0].mxu0 %v1643
        %v2099 = vpop.f32.mrb[0].mxu0
        %v2100 = vadd.f32 %v1907, %v2099
        %v2101 = vpop.f32.mrb[0].mxu0
        %v2102 = vadd.f32 %v1909, %v2101
        %v2103 = vpop.f32.mrb[0].mxu0
        %v2104 = vadd.f32 %v1911, %v2103
        %v2105 = vpop.f32.mrb[0].mxu0
        %v2106 = vadd.f32 %v1913, %v2105
        %2107 = vmatprep.mubr.bf16.mxu0 %v1648
        %2108 = vmatmul.mubr.bf16.gmra.mrb[0].mxu0 %v1647
        %v2109 = vpop.f32.mrb[0].mxu0
        %v2110 = vadd.f32 %v1917, %v2109
        %v2111 = vpop.f32.mrb[0].mxu0
        %v2112 = vadd.f32 %v1919, %v2111
        %v2113 = vpop.f32.mrb[0].mxu0
        %v2114 = vadd.f32 %v1921, %v2113
        %v2115 = vpop.f32.mrb[0].mxu0
        %v2116 = vadd.f32 %v1923, %v2115
        %2117 = vmatprep.mubr.bf16.mxu0 %v1652
        %2118 = vmatmul.mubr.bf16.gmra.mrb[0].mxu0 %v1651
        %v2119 = vpop.f32.mrb[0].mxu0
        %v2120 = vadd.f32 %v1927, %v2119
        %v2121 = vpop.f32.mrb[0].mxu0
        %v2122 = vadd.f32 %v1929, %v2121
        %v2123 = vpop.f32.mrb[0].mxu0
        %v2124 = vadd.f32 %v1931, %v2123
        %v2125 = vpop.f32.mrb[0].mxu0
        %v2126 = vadd.f32 %v1933, %v2125
        %2127 = vmatprep.mubr.bf16.mxu0 %v1656
        %2128 = vmatmul.mubr.bf16.gmra.mrb[0].mxu0 %v1655
        %v2129 = vpop.f32.mrb[0].mxu0
        %v2130 = vadd.f32 %v1937, %v2129
        %v2131 = vpop.f32.mrb[0].mxu0
        %v2132 = vadd.f32 %v1939, %v2131
        %v2133 = vpop.f32.mrb[0].mxu0
        %v2134 = vadd.f32 %v1941, %v2133
        %v2135 = vpop.f32.mrb[0].mxu0
        %v2136 = vadd.f32 %v1943, %v2135
        %2137 = vmatprep.mubr.bf16.mxu0 %v1660
        %2138 = vmatmul.mubr.bf16.gmra.mrb[0].mxu0 %v1659
        %v2139 = vpop.f32.mrb[0].mxu0
        %v2140 = vadd.f32 %v1947, %v2139
        %v2141 = vpop.f32.mrb[0].mxu0
        %v2142 = vadd.f32 %v1949, %v2141
        %v2143 = vpop.f32.mrb[0].mxu0
        %v2144 = vadd.f32 %v1951, %v2143
        %v2145 = vpop.f32.mrb[0].mxu0
        %v2146 = vadd.f32 %v1953, %v2145
        %2147 = vmatprep.mubr.bf16.mxu0 %v1664
        %2148 = vmatmul.mubr.bf16.gmra.mrb[0].mxu0 %v1663
        %v2149 = vpop.f32.mrb[0].mxu0
        %v2150 = vadd.f32 %v1957, %v2149
        %v2151 = vpop.f32.mrb[0].mxu0
        %v2152 = vadd.f32 %v1959, %v2151
        %v2153 = vpop.f32.mrb[0].mxu0
        %v2154 = vadd.f32 %v1961, %v2153
        %v2155 = vpop.f32.mrb[0].mxu0
        %v2156 = vadd.f32 %v1963, %v2155
        %2157 = vmatprep.mubr.bf16.mxu0 %v1668
        %2158 = vmatmul.mubr.bf16.gmra.mrb[0].mxu0 %v1667
        %v2159 = vpop.f32.mrb[0].mxu0
        %v2160 = vadd.f32 %v1967, %v2159
        %v2161 = vpop.f32.mrb[0].mxu0
        %v2162 = vadd.f32 %v1969, %v2161
        %v2163 = vpop.f32.mrb[0].mxu0
        %v2164 = vadd.f32 %v1971, %v2163
        %v2165 = vpop.f32.mrb[0].mxu0
        %v2166 = vadd.f32 %v1973, %v2165
        %2167 = vmatprep.mubr.bf16.mxu0 %v1672
        %2168 = vmatmul.mubr.bf16.gmra.mrb[0].mxu0 %v1671
        %v2169 = vpop.f32.mrb[0].mxu0
        %v2170 = vadd.f32 %v1977, %v2169
        %v2171 = vpop.f32.mrb[0].mxu0
        %v2172 = vadd.f32 %v1979, %v2171
        %v2173 = vpop.f32.mrb[0].mxu0
        %v2174 = vadd.f32 %v1981, %v2173
        %v2175 = vpop.f32.mrb[0].mxu0
        %v2176 = vadd.f32 %v1983, %v2175
        %2177 = vmatprep.mubr.bf16.mxu0 %v1676
        %2178 = vmatmul.mubr.bf16.gmra.mrb[0].mxu0 %v1675
        %v2179 = vpop.f32.mrb[0].mxu0
        %v2180 = vadd.f32 %v1987, %v2179
        %v2181 = vpop.f32.mrb[0].mxu0
        %v2182 = vadd.f32 %v1989, %v2181
        %v2183 = vpop.f32.mrb[0].mxu0
        %v2184 = vadd.f32 %v1991, %v2183
        %v2185 = vpop.f32.mrb[0].mxu0
        %v2186 = vadd.f32 %v1993, %v2185
        %2187 = vmatprep.mubr.bf16.mxu0 %v1680
        %2188 = vmatmul.mubr.bf16.gmra.mrb[0].mxu0 %v1679
        %v2189 = vpop.f32.mrb[0].mxu0
        %v2190 = vadd.f32 %v1997, %v2189
        %v2191 = vpop.f32.mrb[0].mxu0
        %v2192 = vadd.f32 %v1999, %v2191
        %v2193 = vpop.f32.mrb[0].mxu0
        %v2194 = vadd.f32 %v2001, %v2193
        %v2195 = vpop.f32.mrb[0].mxu0
        %v2196 = vadd.f32 %v2003, %v2195
        %2197 = vdwg.mxu0
        %v2198 = vadd.f32 %v1681, %v2040
        %v2199 = vadd.f32 %v1682, %v2042
        %v2200 = vadd.f32 %v1683, %v2044
        %v2201 = vadd.f32 %v1684, %v2046
        %v2202 = vadd.f32 %v1685, %v2050
        %v2203 = vadd.f32 %v1686, %v2052
        %v2204 = vadd.f32 %v1687, %v2054
        %v2205 = vadd.f32 %v1688, %v2056
        %v2206 = vadd.f32 %v1689, %v2060
        %v2207 = vadd.f32 %v1690, %v2062
        %v2208 = vadd.f32 %v1691, %v2064
        %v2209 = vadd.f32 %v1692, %v2066
        %v2210 = vadd.f32 %v1693, %v2070
        %v2211 = vadd.f32 %v1694, %v2072
        %v2212 = vadd.f32 %v1695, %v2074
        %v2213 = vadd.f32 %v1696, %v2076
        %v2214 = vadd.f32 %v1697, %v2080
        %v2215 = vadd.f32 %v1698, %v2082
        %v2216 = vadd.f32 %v1699, %v2084
        %v2217 = vadd.f32 %v1700, %v2086
        %v2218 = vadd.f32 %v1701, %v2090
        %v2219 = vadd.f32 %v1702, %v2092
        %v2220 = vadd.f32 %v1703, %v2094
        %v2221 = vadd.f32 %v1704, %v2096
        %v2222 = vadd.f32 %v1705, %v2100
        %v2223 = vadd.f32 %v1706, %v2102
        %v2224 = vadd.f32 %v1707, %v2104
        %v2225 = vadd.f32 %v1708, %v2106
        %v2226 = vadd.f32 %v1709, %v2110
        %v2227 = vadd.f32 %v1710, %v2112
        %v2228 = vadd.f32 %v1711, %v2114
        %v2229 = vadd.f32 %v1712, %v2116
        %v2230 = vadd.f32 %v1713, %v2120
        %v2231 = vadd.f32 %v1714, %v2122
        %v2232 = vadd.f32 %v1715, %v2124
        %v2233 = vadd.f32 %v1716, %v2126
        %v2234 = vadd.f32 %v1717, %v2130
        %v2235 = vadd.f32 %v1718, %v2132
        %v2236 = vadd.f32 %v1719, %v2134
        %v2237 = vadd.f32 %v1720, %v2136
        %v2238 = vadd.f32 %v1721, %v2140
        %v2239 = vadd.f32 %v1722, %v2142
        %v2240 = vadd.f32 %v1723, %v2144
        %v2241 = vadd.f32 %v1724, %v2146
        %v2242 = vadd.f32 %v1725, %v2150
        %v2243 = vadd.f32 %v1726, %v2152
        %v2244 = vadd.f32 %v1727, %v2154
        %v2245 = vadd.f32 %v1728, %v2156
        %v2246 = vadd.f32 %v1729, %v2160
        %v2247 = vadd.f32 %v1730, %v2162
        %v2248 = vadd.f32 %v1731, %v2164
        %v2249 = vadd.f32 %v1732, %v2166
        %v2250 = vadd.f32 %v1733, %v2170
        %v2251 = vadd.f32 %v1734, %v2172
        %v2252 = vadd.f32 %v1735, %v2174
        %v2253 = vadd.f32 %v1736, %v2176
        %v2254 = vadd.f32 %v1737, %v2180
        %v2255 = vadd.f32 %v1738, %v2182
        %v2256 = vadd.f32 %v1739, %v2184
        %v2257 = vadd.f32 %v1740, %v2186
        %v2258 = vadd.f32 %v1741, %v2190
        %v2259 = vadd.f32 %v1742, %v2192
        %v2260 = vadd.f32 %v1743, %v2194
        %v2261 = vadd.f32 %v1744, %v2196
        %2262 = vst [vmem:[#allocation2] sm:$0xff] %v2198
        %2263 = vst [vmem:[#allocation2 + $0x8] sm:$0xff] %v2199
        %2264 = vst [vmem:[#allocation2 + $0x10] sm:$0xff] %v2200
        %2265 = vst [vmem:[#allocation2 + $0x18] sm:$0xff] %v2201
        %2266 = vst [vmem:[#allocation2 + $0x20] sm:$0xff] %v2202
        %2267 = vst [vmem:[#allocation2 + $0x28] sm:$0xff] %v2203
        %2268 = vst [vmem:[#allocation2 + $0x30] sm:$0xff] %v2204
        %2269 = vst [vmem:[#allocation2 + $0x38] sm:$0xff] %v2205
        %2270 = vst [vmem:[#allocation2 + $0x40] sm:$0xff] %v2206
        %2271 = vst [vmem:[#allocation2 + $0x48] sm:$0xff] %v2207
        %2272 = vst [vmem:[#allocation2 + $0x50] sm:$0xff] %v2208
        %2273 = vst [vmem:[#allocation2 + $0x58] sm:$0xff] %v2209
        %2274 = vst [vmem:[#allocation2 + $0x60] sm:$0xff] %v2210
        %2275 = vst [vmem:[#allocation2 + $0x68] sm:$0xff] %v2211
        %2276 = vst [vmem:[#allocation2 + $0x70] sm:$0xff] %v2212
        %2277 = vst [vmem:[#allocation2 + $0x78] sm:$0xff] %v2213
        %2278 = vst [vmem:[#allocation2 + $0x80] sm:$0xff] %v2214
        %2279 = vst [vmem:[#allocation2 + $0x88] sm:$0xff] %v2215
        %2280 = vst [vmem:[#allocation2 + $0x90] sm:$0xff] %v2216
        %2281 = vst [vmem:[#allocation2 + $0x98] sm:$0xff] %v2217
        %2282 = vst [vmem:[#allocation2 + $0xa0] sm:$0xff] %v2218
        %2283 = vst [vmem:[#allocation2 + $0xa8] sm:$0xff] %v2219
        %2284 = vst [vmem:[#allocation2 + $0xb0] sm:$0xff] %v2220
        %2285 = vst [vmem:[#allocation2 + $0xb8] sm:$0xff] %v2221
        %2286 = vst [vmem:[#allocation2 + $0xc0] sm:$0xff] %v2222
        %2287 = vst [vmem:[#allocation2 + $0xc8] sm:$0xff] %v2223
        %2288 = vst [vmem:[#allocation2 + $0xd0] sm:$0xff] %v2224
        %2289 = vst [vmem:[#allocation2 + $0xd8] sm:$0xff] %v2225
        %2290 = vst [vmem:[#allocation2 + $0xe0] sm:$0xff] %v2226
        %2291 = vst [vmem:[#allocation2 + $0xe8] sm:$0xff] %v2227
        %2292 = vst [vmem:[#allocation2 + $0xf0] sm:$0xff] %v2228
        %2293 = vst [vmem:[#allocation2 + $0xf8] sm:$0xff] %v2229
        %2294 = vst [vmem:[#allocation2 + $0x100] sm:$0xff] %v2230
        %2295 = vst [vmem:[#allocation2 + $0x108] sm:$0xff] %v2231
        %2296 = vst [vmem:[#allocation2 + $0x110] sm:$0xff] %v2232
        %2297 = vst [vmem:[#allocation2 + $0x118] sm:$0xff] %v2233
        %2298 = vst [vmem:[#allocation2 + $0x120] sm:$0xff] %v2234
        %2299 = vst [vmem:[#allocation2 + $0x128] sm:$0xff] %v2235
        %2300 = vst [vmem:[#allocation2 + $0x130] sm:$0xff] %v2236
        %2301 = vst [vmem:[#allocation2 + $0x138] sm:$0xff] %v2237
        %2302 = vst [vmem:[#allocation2 + $0x140] sm:$0xff] %v2238
        %2303 = vst [vmem:[#allocation2 + $0x148] sm:$0xff] %v2239
        %2304 = vst [vmem:[#allocation2 + $0x150] sm:$0xff] %v2240
        %2305 = vst [vmem:[#allocation2 + $0x158] sm:$0xff] %v2241
        %2306 = vst [vmem:[#allocation2 + $0x160] sm:$0xff] %v2242
        %2307 = vst [vmem:[#allocation2 + $0x168] sm:$0xff] %v2243
        %2308 = vst [vmem:[#allocation2 + $0x170] sm:$0xff] %v2244
        %2309 = vst [vmem:[#allocation2 + $0x178] sm:$0xff] %v2245
        %2310 = vst [vmem:[#allocation2 + $0x180] sm:$0xff] %v2246
        %2311 = vst [vmem:[#allocation2 + $0x188] sm:$0xff] %v2247
        %2312 = vst [vmem:[#allocation2 + $0x190] sm:$0xff] %v2248
        %2313 = vst [vmem:[#allocation2 + $0x198] sm:$0xff] %v2249
        %2314 = vst [vmem:[#allocation2 + $0x1a0] sm:$0xff] %v2250
        %2315 = vst [vmem:[#allocation2 + $0x1a8] sm:$0xff] %v2251
        %2316 = vst [vmem:[#allocation2 + $0x1b0] sm:$0xff] %v2252
        %2317 = vst [vmem:[#allocation2 + $0x1b8] sm:$0xff] %v2253
        %2318 = vst [vmem:[#allocation2 + $0x1c0] sm:$0xff] %v2254
        %2319 = vst [vmem:[#allocation2 + $0x1c8] sm:$0xff] %v2255
        %2320 = vst [vmem:[#allocation2 + $0x1d0] sm:$0xff] %v2256
        %2321 = vst [vmem:[#allocation2 + $0x1d8] sm:$0xff] %v2257
        %2322 = vst [vmem:[#allocation2 + $0x1e0] sm:$0xff] %v2258
        %2323 = vst [vmem:[#allocation2 + $0x1e8] sm:$0xff] %v2259
        %2324 = vst [vmem:[#allocation2 + $0x1f0] sm:$0xff] %v2260
        %2325 = vst [vmem:[#allocation2 + $0x1f8] sm:$0xff] %v2261
        %p2326 = scmp.eq.s32.totalorder %s33, 1
        // Predicated region
        $region103: #{tpu_custom_call.1} parent=77 // pred_check
          %p2327 = pneg %p2326
        $region104: #{tpu_custom_call.1} parent=77 // pred_check_branch
          %2329 = sbr.rel (%p2327) target = $region106
        $region105: #{tpu_custom_call.1} parent=77 // pred_region
          %v2330 = vld [vmem:[#allocation2] sm:$0xff]
          %v2331 = vld [vmem:[#allocation2 + $0x8] sm:$0xff]
          %v2332 = vld [vmem:[#allocation2 + $0x10] sm:$0xff]
          %v2333 = vld [vmem:[#allocation2 + $0x18] sm:$0xff]
          %v2334 = vld [vmem:[#allocation2 + $0x20] sm:$0xff]
          %v2335 = vld [vmem:[#allocation2 + $0x28] sm:$0xff]
          %v2336 = vld [vmem:[#allocation2 + $0x30] sm:$0xff]
          %v2337 = vld [vmem:[#allocation2 + $0x38] sm:$0xff]
          %v2338 = vld [vmem:[#allocation2 + $0x40] sm:$0xff]
          %v2339 = vld [vmem:[#allocation2 + $0x48] sm:$0xff]
          %v2340 = vld [vmem:[#allocation2 + $0x50] sm:$0xff]
          %v2341 = vld [vmem:[#allocation2 + $0x58] sm:$0xff]
          %v2342 = vld [vmem:[#allocation2 + $0x60] sm:$0xff]
          %v2343 = vld [vmem:[#allocation2 + $0x68] sm:$0xff]
          %v2344 = vld [vmem:[#allocation2 + $0x70] sm:$0xff]
          %v2345 = vld [vmem:[#allocation2 + $0x78] sm:$0xff]
          %v2346 = vld [vmem:[#allocation2 + $0x80] sm:$0xff]
          %v2347 = vld [vmem:[#allocation2 + $0x88] sm:$0xff]
          %v2348 = vld [vmem:[#allocation2 + $0x90] sm:$0xff]
          %v2349 = vld [vmem:[#allocation2 + $0x98] sm:$0xff]
          %v2350 = vld [vmem:[#allocation2 + $0xa0] sm:$0xff]
          %v2351 = vld [vmem:[#allocation2 + $0xa8] sm:$0xff]
          %v2352 = vld [vmem:[#allocation2 + $0xb0] sm:$0xff]
          %v2353 = vld [vmem:[#allocation2 + $0xb8] sm:$0xff]
          %v2354 = vld [vmem:[#allocation2 + $0xc0] sm:$0xff]
          %v2355 = vld [vmem:[#allocation2 + $0xc8] sm:$0xff]
          %v2356 = vld [vmem:[#allocation2 + $0xd0] sm:$0xff]
          %v2357 = vld [vmem:[#allocation2 + $0xd8] sm:$0xff]
          %v2358 = vld [vmem:[#allocation2 + $0xe0] sm:$0xff]
          %v2359 = vld [vmem:[#allocation2 + $0xe8] sm:$0xff]
          %v2360 = vld [vmem:[#allocation2 + $0xf0] sm:$0xff]
          %v2361 = vld [vmem:[#allocation2 + $0xf8] sm:$0xff]
          %v2362 = vld [vmem:[#allocation2 + $0x100] sm:$0xff]
          %v2363 = vld [vmem:[#allocation2 + $0x108] sm:$0xff]
          %v2364 = vld [vmem:[#allocation2 + $0x110] sm:$0xff]
          %v2365 = vld [vmem:[#allocation2 + $0x118] sm:$0xff]
          %v2366 = vld [vmem:[#allocation2 + $0x120] sm:$0xff]
          %v2367 = vld [vmem:[#allocation2 + $0x128] sm:$0xff]
          %v2368 = vld [vmem:[#allocation2 + $0x130] sm:$0xff]
          %v2369 = vld [vmem:[#allocation2 + $0x138] sm:$0xff]
          %v2370 = vld [vmem:[#allocation2 + $0x140] sm:$0xff]
          %v2371 = vld [vmem:[#allocation2 + $0x148] sm:$0xff]
          %v2372 = vld [vmem:[#allocation2 + $0x150] sm:$0xff]
          %v2373 = vld [vmem:[#allocation2 + $0x158] sm:$0xff]
          %v2374 = vld [vmem:[#allocation2 + $0x160] sm:$0xff]
          %v2375 = vld [vmem:[#allocation2 + $0x168] sm:$0xff]
          %v2376 = vld [vmem:[#allocation2 + $0x170] sm:$0xff]
          %v2377 = vld [vmem:[#allocation2 + $0x178] sm:$0xff]
          %v2378 = vld [vmem:[#allocation2 + $0x180] sm:$0xff]
          %v2379 = vld [vmem:[#allocation2 + $0x188] sm:$0xff]
          %v2380 = vld [vmem:[#allocation2 + $0x190] sm:$0xff]
          %v2381 = vld [vmem:[#allocation2 + $0x198] sm:$0xff]
          %v2382 = vld [vmem:[#allocation2 + $0x1a0] sm:$0xff]
          %v2383 = vld [vmem:[#allocation2 + $0x1a8] sm:$0xff]
          %v2384 = vld [vmem:[#allocation2 + $0x1b0] sm:$0xff]
          %v2385 = vld [vmem:[#allocation2 + $0x1b8] sm:$0xff]
          %v2386 = vld [vmem:[#allocation2 + $0x1c0] sm:$0xff]
          %v2387 = vld [vmem:[#allocation2 + $0x1c8] sm:$0xff]
          %v2388 = vld [vmem:[#allocation2 + $0x1d0] sm:$0xff]
          %v2389 = vld [vmem:[#allocation2 + $0x1d8] sm:$0xff]
          %v2390 = vld [vmem:[#allocation2 + $0x1e0] sm:$0xff]
          %v2391 = vld [vmem:[#allocation2 + $0x1e8] sm:$0xff]
          %v2392 = vld [vmem:[#allocation2 + $0x1f0] sm:$0xff]
          %v2393 = vld [vmem:[#allocation2 + $0x1f8] sm:$0xff]
          %v2394 = vld [vmem:[%s483] sm:$0xf]
          %v2395 = vld [vmem:[%s483 + $0x4] sm:$0xf]
          %v2396 = vld [vmem:[%s483 + $0x8] sm:$0xf]
          %v2397 = vld [vmem:[%s483 + $0xc] sm:$0xf]
          %v2398 = vld [vmem:[%s483 + $0x10] sm:$0xf]
          %v2399 = vld [vmem:[%s483 + $0x14] sm:$0xf]
          %v2400 = vld [vmem:[%s483 + $0x18] sm:$0xf]
          %v2401 = vld [vmem:[%s483 + $0x1c] sm:$0xf]
          %v2402 = vld [vmem:[%s483 + $0x20] sm:$0xf]
          %v2403 = vld [vmem:[%s483 + $0x24] sm:$0xf]
          %v2404 = vld [vmem:[%s483 + $0x28] sm:$0xf]
          %v2405 = vld [vmem:[%s483 + $0x2c] sm:$0xf]
          %v2406 = vld [vmem:[%s483 + $0x30] sm:$0xf]
          %v2407 = vld [vmem:[%s483 + $0x34] sm:$0xf]
          %v2408 = vld [vmem:[%s483 + $0x38] sm:$0xf]
          %v2409 = vld [vmem:[%s483 + $0x3c] sm:$0xf]
          %v2410 = vld [vmem:[%s483 + $0x40] sm:$0xf]
          %v2411 = vld [vmem:[%s483 + $0x44] sm:$0xf]
          %v2412 = vld [vmem:[%s483 + $0x48] sm:$0xf]
          %v2413 = vld [vmem:[%s483 + $0x4c] sm:$0xf]
          %v2414 = vld [vmem:[%s483 + $0x50] sm:$0xf]
          %v2415 = vld [vmem:[%s483 + $0x54] sm:$0xf]
          %v2416 = vld [vmem:[%s483 + $0x58] sm:$0xf]
          %v2417 = vld [vmem:[%s483 + $0x5c] sm:$0xf]
          %v2418 = vld [vmem:[%s483 + $0x60] sm:$0xf]
          %v2419 = vld [vmem:[%s483 + $0x64] sm:$0xf]
          %v2420 = vld [vmem:[%s483 + $0x68] sm:$0xf]
          %v2421 = vld [vmem:[%s483 + $0x6c] sm:$0xf]
          %v2422 = vld [vmem:[%s483 + $0x70] sm:$0xf]
          %v2423 = vld [vmem:[%s483 + $0x74] sm:$0xf]
          %v2424 = vld [vmem:[%s483 + $0x78] sm:$0xf]
          %v2425 = vld [vmem:[%s483 + $0x7c] sm:$0xf]
          %v2426 = vunpack.c.l.bf16 %v2394
          %v2427 = vunpack.c.l.bf16 %v2395
          %v2428 = vunpack.c.l.bf16 %v2396
          %v2429 = vunpack.c.l.bf16 %v2397
          %v2430 = vunpack.c.l.bf16 %v2398
          %v2431 = vunpack.c.l.bf16 %v2399
          %v2432 = vunpack.c.l.bf16 %v2400
          %v2433 = vunpack.c.l.bf16 %v2401
          %v2434 = vunpack.c.l.bf16 %v2402
          %v2435 = vunpack.c.l.bf16 %v2403
          %v2436 = vunpack.c.l.bf16 %v2404
          %v2437 = vunpack.c.l.bf16 %v2405
          %v2438 = vunpack.c.l.bf16 %v2406
          %v2439 = vunpack.c.l.bf16 %v2407
          %v2440 = vunpack.c.l.bf16 %v2408
          %v2441 = vunpack.c.l.bf16 %v2409
          %v2442 = vunpack.c.l.bf16 %v2410
          %v2443 = vunpack.c.l.bf16 %v2411
          %v2444 = vunpack.c.l.bf16 %v2412
          %v2445 = vunpack.c.l.bf16 %v2413
          %v2446 = vunpack.c.l.bf16 %v2414
          %v2447 = vunpack.c.l.bf16 %v2415
          %v2448 = vunpack.c.l.bf16 %v2416
          %v2449 = vunpack.c.l.bf16 %v2417
          %v2450 = vunpack.c.l.bf16 %v2418
          %v2451 = vunpack.c.l.bf16 %v2419
          %v2452 = vunpack.c.l.bf16 %v2420
          %v2453 = vunpack.c.l.bf16 %v2421
          %v2454 = vunpack.c.l.bf16 %v2422
          %v2455 = vunpack.c.l.bf16 %v2423
          %v2456 = vunpack.c.l.bf16 %v2424
          %v2457 = vunpack.c.l.bf16 %v2425
          %2459 = vset.pattern.permute.xlu0 0
          %2460 = vperm.xlu0 %2459, %v2426
          %v2461 = vpop.permute.xlu0 %2460
          %2464 = vset.pattern.permute.xlu0 0
          %2465 = vperm.xlu0 %2464, %v2427
          %v2466 = vpop.permute.xlu0 %2465
          %2469 = vset.pattern.permute.xlu0 0
          %2470 = vperm.xlu0 %2469, %v2428
          %v2471 = vpop.permute.xlu0 %2470
          %2474 = vset.pattern.permute.xlu0 0
          %2475 = vperm.xlu0 %2474, %v2429
          %v2476 = vpop.permute.xlu0 %2475
          %2479 = vset.pattern.permute.xlu0 0
          %2480 = vperm.xlu0 %2479, %v2430
          %v2481 = vpop.permute.xlu0 %2480
          %2484 = vset.pattern.permute.xlu0 0
          %2485 = vperm.xlu0 %2484, %v2431
          %v2486 = vpop.permute.xlu0 %2485
          %2489 = vset.pattern.permute.xlu0 0
          %2490 = vperm.xlu0 %2489, %v2432
          %v2491 = vpop.permute.xlu0 %2490
          %2494 = vset.pattern.permute.xlu0 0
          %2495 = vperm.xlu0 %2494, %v2433
          %v2496 = vpop.permute.xlu0 %2495
          %2499 = vset.pattern.permute.xlu0 0
          %2500 = vperm.xlu0 %2499, %v2434
          %v2501 = vpop.permute.xlu0 %2500
          %2504 = vset.pattern.permute.xlu0 0
          %2505 = vperm.xlu0 %2504, %v2435
          %v2506 = vpop.permute.xlu0 %2505
          %2509 = vset.pattern.permute.xlu0 0
          %2510 = vperm.xlu0 %2509, %v2436
          %v2511 = vpop.permute.xlu0 %2510
          %2514 = vset.pattern.permute.xlu0 0
          %2515 = vperm.xlu0 %2514, %v2437
          %v2516 = vpop.permute.xlu0 %2515
          %2519 = vset.pattern.permute.xlu0 0
          %2520 = vperm.xlu0 %2519, %v2438
          %v2521 = vpop.permute.xlu0 %2520
          %2524 = vset.pattern.permute.xlu0 0
          %2525 = vperm.xlu0 %2524, %v2439
          %v2526 = vpop.permute.xlu0 %2525
          %2529 = vset.pattern.permute.xlu0 0
          %2530 = vperm.xlu0 %2529, %v2440
          %v2531 = vpop.permute.xlu0 %2530
          %2534 = vset.pattern.permute.xlu0 0
          %2535 = vperm.xlu0 %2534, %v2441
          %v2536 = vpop.permute.xlu0 %2535
          %2539 = vset.pattern.permute.xlu0 0
          %2540 = vperm.xlu0 %2539, %v2442
          %v2541 = vpop.permute.xlu0 %2540
          %2544 = vset.pattern.permute.xlu0 0
          %2545 = vperm.xlu0 %2544, %v2443
          %v2546 = vpop.permute.xlu0 %2545
          %2549 = vset.pattern.permute.xlu0 0
          %2550 = vperm.xlu0 %2549, %v2444
          %v2551 = vpop.permute.xlu0 %2550
          %2554 = vset.pattern.permute.xlu0 0
          %2555 = vperm.xlu0 %2554, %v2445
          %v2556 = vpop.permute.xlu0 %2555
          %2559 = vset.pattern.permute.xlu0 0
          %2560 = vperm.xlu0 %2559, %v2446
          %v2561 = vpop.permute.xlu0 %2560
          %2564 = vset.pattern.permute.xlu0 0
          %2565 = vperm.xlu0 %2564, %v2447
          %v2566 = vpop.permute.xlu0 %2565
          %2569 = vset.pattern.permute.xlu0 0
          %2570 = vperm.xlu0 %2569, %v2448
          %v2571 = vpop.permute.xlu0 %2570
          %2574 = vset.pattern.permute.xlu0 0
          %2575 = vperm.xlu0 %2574, %v2449
          %v2576 = vpop.permute.xlu0 %2575
          %2579 = vset.pattern.permute.xlu0 0
          %2580 = vperm.xlu0 %2579, %v2450
          %v2581 = vpop.permute.xlu0 %2580
          %2584 = vset.pattern.permute.xlu0 0
          %2585 = vperm.xlu0 %2584, %v2451
          %v2586 = vpop.permute.xlu0 %2585
          %2589 = vset.pattern.permute.xlu0 0
          %2590 = vperm.xlu0 %2589, %v2452
          %v2591 = vpop.permute.xlu0 %2590
          %2594 = vset.pattern.permute.xlu0 0
          %2595 = vperm.xlu0 %2594, %v2453
          %v2596 = vpop.permute.xlu0 %2595
          %2599 = vset.pattern.permute.xlu0 0
          %2600 = vperm.xlu0 %2599, %v2454
          %v2601 = vpop.permute.xlu0 %2600
          %2604 = vset.pattern.permute.xlu0 0
          %2605 = vperm.xlu0 %2604, %v2455
          %v2606 = vpop.permute.xlu0 %2605
          %2609 = vset.pattern.permute.xlu0 0
          %2610 = vperm.xlu0 %2609, %v2456
          %v2611 = vpop.permute.xlu0 %2610
          %2614 = vset.pattern.permute.xlu0 0
          %2615 = vperm.xlu0 %2614, %v2457
          %v2616 = vpop.permute.xlu0 %2615
          %v2618 = vmul.f32 %v2330, %v2461
          %v2619 = vmul.f32 %v2331, %v2461
          %v2620 = vmul.f32 %v2332, %v2466
          %v2621 = vmul.f32 %v2333, %v2466
          %v2622 = vmul.f32 %v2334, %v2471
          %v2623 = vmul.f32 %v2335, %v2471
          %v2624 = vmul.f32 %v2336, %v2476
          %v2625 = vmul.f32 %v2337, %v2476
          %v2626 = vmul.f32 %v2338, %v2481
          %v2627 = vmul.f32 %v2339, %v2481
          %v2628 = vmul.f32 %v2340, %v2486
          %v2629 = vmul.f32 %v2341, %v2486
          %v2630 = vmul.f32 %v2342, %v2491
          %v2631 = vmul.f32 %v2343, %v2491
          %v2632 = vmul.f32 %v2344, %v2496
          %v2633 = vmul.f32 %v2345, %v2496
          %v2634 = vmul.f32 %v2346, %v2501
          %v2635 = vmul.f32 %v2347, %v2501
          %v2636 = vmul.f32 %v2348, %v2506
          %v2637 = vmul.f32 %v2349, %v2506
          %v2638 = vmul.f32 %v2350, %v2511
          %v2639 = vmul.f32 %v2351, %v2511
          %v2640 = vmul.f32 %v2352, %v2516
          %v2641 = vmul.f32 %v2353, %v2516
          %v2642 = vmul.f32 %v2354, %v2521
          %v2643 = vmul.f32 %v2355, %v2521
          %v2644 = vmul.f32 %v2356, %v2526
          %v2645 = vmul.f32 %v2357, %v2526
          %v2646 = vmul.f32 %v2358, %v2531
          %v2647 = vmul.f32 %v2359, %v2531
          %v2648 = vmul.f32 %v2360, %v2536
          %v2649 = vmul.f32 %v2361, %v2536
          %v2650 = vmul.f32 %v2362, %v2541
          %v2651 = vmul.f32 %v2363, %v2541
          %v2652 = vmul.f32 %v2364, %v2546
          %v2653 = vmul.f32 %v2365, %v2546
          %v2654 = vmul.f32 %v2366, %v2551
          %v2655 = vmul.f32 %v2367, %v2551
          %v2656 = vmul.f32 %v2368, %v2556
          %v2657 = vmul.f32 %v2369, %v2556
          %v2658 = vmul.f32 %v2370, %v2561
          %v2659 = vmul.f32 %v2371, %v2561
          %v2660 = vmul.f32 %v2372, %v2566
          %v2661 = vmul.f32 %v2373, %v2566
          %v2662 = vmul.f32 %v2374, %v2571
          %v2663 = vmul.f32 %v2375, %v2571
          %v2664 = vmul.f32 %v2376, %v2576
          %v2665 = vmul.f32 %v2377, %v2576
          %v2666 = vmul.f32 %v2378, %v2581
          %v2667 = vmul.f32 %v2379, %v2581
          %v2668 = vmul.f32 %v2380, %v2586
          %v2669 = vmul.f32 %v2381, %v2586
          %v2670 = vmul.f32 %v2382, %v2591
          %v2671 = vmul.f32 %v2383, %v2591
          %v2672 = vmul.f32 %v2384, %v2596
          %v2673 = vmul.f32 %v2385, %v2596
          %v2674 = vmul.f32 %v2386, %v2601
          %v2675 = vmul.f32 %v2387, %v2601
          %v2676 = vmul.f32 %v2388, %v2606
          %v2677 = vmul.f32 %v2389, %v2606
          %v2678 = vmul.f32 %v2390, %v2611
          %v2679 = vmul.f32 %v2391, %v2611
          %v2680 = vmul.f32 %v2392, %v2616
          %v2681 = vmul.f32 %v2393, %v2616
          %v2682 = vld [vmem:[%s492] sm:$0x3]
          %v2683 = vunpack.c.l.bf16 %v2682
          %v2685 = vlaneseq
          %v2686 = vshrl.u32 %v2685, 7
          %v2687 = vsub.s32 0, %v2686
          %v2688 = vrot.slane %v2683, %v2687
          %v2689 = vlaneseq
          %v2690 = vshrl.u32 %v2689, 7
          %v2691 = vsub.s32 2, %v2690
          %v2692 = vrot.slane %v2683, %v2691
          %v2695 = vlaneseq
          %v2696 = vshrl.u32 %v2695, 7
          %v2697 = vsub.s32 0, %v2696
          %v2698 = vrot.slane %v2688, %v2697
          %v2699 = vlaneseq
          %v2700 = vshrl.u32 %v2699, 7
          %v2701 = vsub.s32 0, %v2700
          %v2702 = vrot.slane %v2692, %v2701
          %v2703 = vadd.f32 %v2618, %v2698
          %v2704 = vadd.f32 %v2619, %v2702
          %v2705 = vadd.f32 %v2620, %v2698
          %v2706 = vadd.f32 %v2621, %v2702
          %v2707 = vadd.f32 %v2622, %v2698
          %v2708 = vadd.f32 %v2623, %v2702
          %v2709 = vadd.f32 %v2624, %v2698
          %v2710 = vadd.f32 %v2625, %v2702
          %v2711 = vadd.f32 %v2626, %v2698
          %v2712 = vadd.f32 %v2627, %v2702
          %v2713 = vadd.f32 %v2628, %v2698
          %v2714 = vadd.f32 %v2629, %v2702
          %v2715 = vadd.f32 %v2630, %v2698
          %v2716 = vadd.f32 %v2631, %v2702
          %v2717 = vadd.f32 %v2632, %v2698
          %v2718 = vadd.f32 %v2633, %v2702
          %v2719 = vadd.f32 %v2634, %v2698
          %v2720 = vadd.f32 %v2635, %v2702
          %v2721 = vadd.f32 %v2636, %v2698
          %v2722 = vadd.f32 %v2637, %v2702
          %v2723 = vadd.f32 %v2638, %v2698
          %v2724 = vadd.f32 %v2639, %v2702
          %v2725 = vadd.f32 %v2640, %v2698
          %v2726 = vadd.f32 %v2641, %v2702
          %v2727 = vadd.f32 %v2642, %v2698
          %v2728 = vadd.f32 %v2643, %v2702
          %v2729 = vadd.f32 %v2644, %v2698
          %v2730 = vadd.f32 %v2645, %v2702
          %v2731 = vadd.f32 %v2646, %v2698
          %v2732 = vadd.f32 %v2647, %v2702
          %v2733 = vadd.f32 %v2648, %v2698
          %v2734 = vadd.f32 %v2649, %v2702
          %v2735 = vadd.f32 %v2650, %v2698
          %v2736 = vadd.f32 %v2651, %v2702
          %v2737 = vadd.f32 %v2652, %v2698
          %v2738 = vadd.f32 %v2653, %v2702
          %v2739 = vadd.f32 %v2654, %v2698
          %v2740 = vadd.f32 %v2655, %v2702
          %v2741 = vadd.f32 %v2656, %v2698
          %v2742 = vadd.f32 %v2657, %v2702
          %v2743 = vadd.f32 %v2658, %v2698
          %v2744 = vadd.f32 %v2659, %v2702
          %v2745 = vadd.f32 %v2660, %v2698
          %v2746 = vadd.f32 %v2661, %v2702
          %v2747 = vadd.f32 %v2662, %v2698
          %v2748 = vadd.f32 %v2663, %v2702
          %v2749 = vadd.f32 %v2664, %v2698
          %v2750 = vadd.f32 %v2665, %v2702
          %v2751 = vadd.f32 %v2666, %v2698
          %v2752 = vadd.f32 %v2667, %v2702
          %v2753 = vadd.f32 %v2668, %v2698
          %v2754 = vadd.f32 %v2669, %v2702
          %v2755 = vadd.f32 %v2670, %v2698
          %v2756 = vadd.f32 %v2671, %v2702
          %v2757 = vadd.f32 %v2672, %v2698
          %v2758 = vadd.f32 %v2673, %v2702
          %v2759 = vadd.f32 %v2674, %v2698
          %v2760 = vadd.f32 %v2675, %v2702
          %v2761 = vadd.f32 %v2676, %v2698
          %v2762 = vadd.f32 %v2677, %v2702
          %v2763 = vadd.f32 %v2678, %v2698
          %v2764 = vadd.f32 %v2679, %v2702
          %v2765 = vadd.f32 %v2680, %v2698
          %v2766 = vadd.f32 %v2681, %v2702
          %v2767 = vld [vmem:[%s425] sm:$0xff]
          %v2768 = vld [vmem:[%s425 + $0x8] sm:$0xff]
          %v2769 = vld [vmem:[%s425 + $0x10] sm:$0xff]
          %v2770 = vld [vmem:[%s425 + $0x18] sm:$0xff]
          %v2771 = vld [vmem:[%s425 + $0x20] sm:$0xff]
          %v2772 = vld [vmem:[%s425 + $0x28] sm:$0xff]
          %v2773 = vld [vmem:[%s425 + $0x30] sm:$0xff]
          %v2774 = vld [vmem:[%s425 + $0x38] sm:$0xff]
          %v2775 = vld [vmem:[%s425 + $0x40] sm:$0xff]
          %v2776 = vld [vmem:[%s425 + $0x48] sm:$0xff]
          %v2777 = vld [vmem:[%s425 + $0x50] sm:$0xff]
          %v2778 = vld [vmem:[%s425 + $0x58] sm:$0xff]
          %v2779 = vld [vmem:[%s425 + $0x60] sm:$0xff]
          %v2780 = vld [vmem:[%s425 + $0x68] sm:$0xff]
          %v2781 = vld [vmem:[%s425 + $0x70] sm:$0xff]
          %v2782 = vld [vmem:[%s425 + $0x78] sm:$0xff]
          %v2783 = vld [vmem:[%s425 + $0x80] sm:$0xff]
          %v2784 = vld [vmem:[%s425 + $0x88] sm:$0xff]
          %v2785 = vld [vmem:[%s425 + $0x90] sm:$0xff]
          %v2786 = vld [vmem:[%s425 + $0x98] sm:$0xff]
          %v2787 = vld [vmem:[%s425 + $0xa0] sm:$0xff]
          %v2788 = vld [vmem:[%s425 + $0xa8] sm:$0xff]
          %v2789 = vld [vmem:[%s425 + $0xb0] sm:$0xff]
          %v2790 = vld [vmem:[%s425 + $0xb8] sm:$0xff]
          %v2791 = vld [vmem:[%s425 + $0xc0] sm:$0xff]
          %v2792 = vld [vmem:[%s425 + $0xc8] sm:$0xff]
          %v2793 = vld [vmem:[%s425 + $0xd0] sm:$0xff]
          %v2794 = vld [vmem:[%s425 + $0xd8] sm:$0xff]
          %v2795 = vld [vmem:[%s425 + $0xe0] sm:$0xff]
          %v2796 = vld [vmem:[%s425 + $0xe8] sm:$0xff]
          %v2797 = vld [vmem:[%s425 + $0xf0] sm:$0xff]
          %v2798 = vld [vmem:[%s425 + $0xf8] sm:$0xff]
          %v2799 = vunpack.c.l.bf16 %v2767
          %v2800 = vunpack.c.h.bf16 %v2767
          %v2801 = vunpack.c.l.bf16 %v2768
          %v2802 = vunpack.c.h.bf16 %v2768
          %v2803 = vunpack.c.l.bf16 %v2769
          %v2804 = vunpack.c.h.bf16 %v2769
          %v2805 = vunpack.c.l.bf16 %v2770
          %v2806 = vunpack.c.h.bf16 %v2770
          %v2807 = vunpack.c.l.bf16 %v2771
          %v2808 = vunpack.c.h.bf16 %v2771
          %v2809 = vunpack.c.l.bf16 %v2772
          %v2810 = vunpack.c.h.bf16 %v2772
          %v2811 = vunpack.c.l.bf16 %v2773
          %v2812 = vunpack.c.h.bf16 %v2773
          %v2813 = vunpack.c.l.bf16 %v2774
          %v2814 = vunpack.c.h.bf16 %v2774
          %v2815 = vunpack.c.l.bf16 %v2775
          %v2816 = vunpack.c.h.bf16 %v2775
          %v2817 = vunpack.c.l.bf16 %v2776
          %v2818 = vunpack.c.h.bf16 %v2776
          %v2819 = vunpack.c.l.bf16 %v2777
          %v2820 = vunpack.c.h.bf16 %v2777
          %v2821 = vunpack.c.l.bf16 %v2778
          %v2822 = vunpack.c.h.bf16 %v2778
          %v2823 = vunpack.c.l.bf16 %v2779
          %v2824 = vunpack.c.h.bf16 %v2779
          %v2825 = vunpack.c.l.bf16 %v2780
          %v2826 = vunpack.c.h.bf16 %v2780
          %v2827 = vunpack.c.l.bf16 %v2781
          %v2828 = vunpack.c.h.bf16 %v2781
          %v2829 = vunpack.c.l.bf16 %v2782
          %v2830 = vunpack.c.h.bf16 %v2782
          %v2831 = vunpack.c.l.bf16 %v2783
          %v2832 = vunpack.c.h.bf16 %v2783
          %v2833 = vunpack.c.l.bf16 %v2784
          %v2834 = vunpack.c.h.bf16 %v2784
          %v2835 = vunpack.c.l.bf16 %v2785
          %v2836 = vunpack.c.h.bf16 %v2785
          %v2837 = vunpack.c.l.bf16 %v2786
          %v2838 = vunpack.c.h.bf16 %v2786
          %v2839 = vunpack.c.l.bf16 %v2787
          %v2840 = vunpack.c.h.bf16 %v2787
          %v2841 = vunpack.c.l.bf16 %v2788
          %v2842 = vunpack.c.h.bf16 %v2788
          %v2843 = vunpack.c.l.bf16 %v2789
          %v2844 = vunpack.c.h.bf16 %v2789
          %v2845 = vunpack.c.l.bf16 %v2790
          %v2846 = vunpack.c.h.bf16 %v2790
          %v2847 = vunpack.c.l.bf16 %v2791
          %v2848 = vunpack.c.h.bf16 %v2791
          %v2849 = vunpack.c.l.bf16 %v2792
          %v2850 = vunpack.c.h.bf16 %v2792
          %v2851 = vunpack.c.l.bf16 %v2793
          %v2852 = vunpack.c.h.bf16 %v2793
          %v2853 = vunpack.c.l.bf16 %v2794
          %v2854 = vunpack.c.h.bf16 %v2794
          %v2855 = vunpack.c.l.bf16 %v2795
          %v2856 = vunpack.c.h.bf16 %v2795
          %v2857 = vunpack.c.l.bf16 %v2796
          %v2858 = vunpack.c.h.bf16 %v2796
          %v2859 = vunpack.c.l.bf16 %v2797
          %v2860 = vunpack.c.h.bf16 %v2797
          %v2861 = vunpack.c.l.bf16 %v2798
          %v2862 = vunpack.c.h.bf16 %v2798
          %v2863 = vmul.f32 %v2703, %v2799
          %v2864 = vmul.f32 %v2704, %v2800
          %v2865 = vmul.f32 %v2705, %v2801
          %v2866 = vmul.f32 %v2706, %v2802
          %v2867 = vmul.f32 %v2707, %v2803
          %v2868 = vmul.f32 %v2708, %v2804
          %v2869 = vmul.f32 %v2709, %v2805
          %v2870 = vmul.f32 %v2710, %v2806
          %v2871 = vmul.f32 %v2711, %v2807
          %v2872 = vmul.f32 %v2712, %v2808
          %v2873 = vmul.f32 %v2713, %v2809
          %v2874 = vmul.f32 %v2714, %v2810
          %v2875 = vmul.f32 %v2715, %v2811
          %v2876 = vmul.f32 %v2716, %v2812
          %v2877 = vmul.f32 %v2717, %v2813
          %v2878 = vmul.f32 %v2718, %v2814
          %v2879 = vmul.f32 %v2719, %v2815
          %v2880 = vmul.f32 %v2720, %v2816
          %v2881 = vmul.f32 %v2721, %v2817
          %v2882 = vmul.f32 %v2722, %v2818
          %v2883 = vmul.f32 %v2723, %v2819
          %v2884 = vmul.f32 %v2724, %v2820
          %v2885 = vmul.f32 %v2725, %v2821
          %v2886 = vmul.f32 %v2726, %v2822
          %v2887 = vmul.f32 %v2727, %v2823
          %v2888 = vmul.f32 %v2728, %v2824
          %v2889 = vmul.f32 %v2729, %v2825
          %v2890 = vmul.f32 %v2730, %v2826
          %v2891 = vmul.f32 %v2731, %v2827
          %v2892 = vmul.f32 %v2732, %v2828
          %v2893 = vmul.f32 %v2733, %v2829
          %v2894 = vmul.f32 %v2734, %v2830
          %v2895 = vmul.f32 %v2735, %v2831
          %v2896 = vmul.f32 %v2736, %v2832
          %v2897 = vmul.f32 %v2737, %v2833
          %v2898 = vmul.f32 %v2738, %v2834
          %v2899 = vmul.f32 %v2739, %v2835
          %v2900 = vmul.f32 %v2740, %v2836
          %v2901 = vmul.f32 %v2741, %v2837
          %v2902 = vmul.f32 %v2742, %v2838
          %v2903 = vmul.f32 %v2743, %v2839
          %v2904 = vmul.f32 %v2744, %v2840
          %v2905 = vmul.f32 %v2745, %v2841
          %v2906 = vmul.f32 %v2746, %v2842
          %v2907 = vmul.f32 %v2747, %v2843
          %v2908 = vmul.f32 %v2748, %v2844
          %v2909 = vmul.f32 %v2749, %v2845
          %v2910 = vmul.f32 %v2750, %v2846
          %v2911 = vmul.f32 %v2751, %v2847
          %v2912 = vmul.f32 %v2752, %v2848
          %v2913 = vmul.f32 %v2753, %v2849
          %v2914 = vmul.f32 %v2754, %v2850
          %v2915 = vmul.f32 %v2755, %v2851
          %v2916 = vmul.f32 %v2756, %v2852
          %v2917 = vmul.f32 %v2757, %v2853
          %v2918 = vmul.f32 %v2758, %v2854
          %v2919 = vmul.f32 %v2759, %v2855
          %v2920 = vmul.f32 %v2760, %v2856
          %v2921 = vmul.f32 %v2761, %v2857
          %v2922 = vmul.f32 %v2762, %v2858
          %v2923 = vmul.f32 %v2763, %v2859
          %v2924 = vmul.f32 %v2764, %v2860
          %v2925 = vmul.f32 %v2765, %v2861
          %v2926 = vmul.f32 %v2766, %v2862
          %v2927 = vpack.c.bf16 %v2865, %v2863
          %v2928 = vpack.c.bf16 %v2866, %v2864
          %v2929 = vpack.c.bf16 %v2869, %v2867
          %v2930 = vpack.c.bf16 %v2870, %v2868
          %v2931 = vpack.c.bf16 %v2873, %v2871
          %v2932 = vpack.c.bf16 %v2874, %v2872
          %v2933 = vpack.c.bf16 %v2877, %v2875
          %v2934 = vpack.c.bf16 %v2878, %v2876
          %v2935 = vpack.c.bf16 %v2881, %v2879
          %v2936 = vpack.c.bf16 %v2882, %v2880
          %v2937 = vpack.c.bf16 %v2885, %v2883
          %v2938 = vpack.c.bf16 %v2886, %v2884
          %v2939 = vpack.c.bf16 %v2889, %v2887
          %v2940 = vpack.c.bf16 %v2890, %v2888
          %v2941 = vpack.c.bf16 %v2893, %v2891
          %v2942 = vpack.c.bf16 %v2894, %v2892
          %v2943 = vpack.c.bf16 %v2897, %v2895
          %v2944 = vpack.c.bf16 %v2898, %v2896
          %v2945 = vpack.c.bf16 %v2901, %v2899
          %v2946 = vpack.c.bf16 %v2902, %v2900
          %v2947 = vpack.c.bf16 %v2905, %v2903
          %v2948 = vpack.c.bf16 %v2906, %v2904
          %v2949 = vpack.c.bf16 %v2909, %v2907
          %v2950 = vpack.c.bf16 %v2910, %v2908
          %v2951 = vpack.c.bf16 %v2913, %v2911
          %v2952 = vpack.c.bf16 %v2914, %v2912
          %v2953 = vpack.c.bf16 %v2917, %v2915
          %v2954 = vpack.c.bf16 %v2918, %v2916
          %v2955 = vpack.c.bf16 %v2921, %v2919
          %v2956 = vpack.c.bf16 %v2922, %v2920
          %v2957 = vpack.c.bf16 %v2925, %v2923
          %v2958 = vpack.c.bf16 %v2926, %v2924
          %v2991 = vunpack.c.l.b16 %v2927
          %v2992 = vunpack.c.l.b16 %v2928
          %v2993 = vunpack.c.h.b16 %v2927
          %v2994 = vunpack.c.h.b16 %v2928
          %v2995 = vunpack.c.l.b16 %v2929
          %v2996 = vunpack.c.l.b16 %v2930
          %v2997 = vunpack.c.h.b16 %v2929
          %v2998 = vunpack.c.h.b16 %v2930
          %v2999 = vunpack.c.l.b16 %v2931
          %v3000 = vunpack.c.l.b16 %v2932
          %v3001 = vunpack.c.h.b16 %v2931
          %v3002 = vunpack.c.h.b16 %v2932
          %v3003 = vunpack.c.l.b16 %v2933
          %v3004 = vunpack.c.l.b16 %v2934
          %v3005 = vunpack.c.h.b16 %v2933
          %v3006 = vunpack.c.h.b16 %v2934
          %v3007 = vunpack.c.l.b16 %v2935
          %v3008 = vunpack.c.l.b16 %v2936
          %v3009 = vunpack.c.h.b16 %v2935
          %v3010 = vunpack.c.h.b16 %v2936
          %v3011 = vunpack.c.l.b16 %v2937
          %v3012 = vunpack.c.l.b16 %v2938
          %v3013 = vunpack.c.h.b16 %v2937
          %v3014 = vunpack.c.h.b16 %v2938
          %v3015 = vunpack.c.l.b16 %v2939
          %v3016 = vunpack.c.l.b16 %v2940
          %v3017 = vunpack.c.h.b16 %v2939
          %v3018 = vunpack.c.h.b16 %v2940
          %v3019 = vunpack.c.l.b16 %v2941
          %v3020 = vunpack.c.l.b16 %v2942
          %v3021 = vunpack.c.h.b16 %v2941
          %v3022 = vunpack.c.h.b16 %v2942
          %v3023 = vunpack.c.l.b16 %v2943
          %v3024 = vunpack.c.l.b16 %v2944
          %v3025 = vunpack.c.h.b16 %v2943
          %v3026 = vunpack.c.h.b16 %v2944
          %v3027 = vunpack.c.l.b16 %v2945
          %v3028 = vunpack.c.l.b16 %v2946
          %v3029 = vunpack.c.h.b16 %v2945
          %v3030 = vunpack.c.h.b16 %v2946
          %v3031 = vunpack.c.l.b16 %v2947
          %v3032 = vunpack.c.l.b16 %v2948
          %v3033 = vunpack.c.h.b16 %v2947
          %v3034 = vunpack.c.h.b16 %v2948
          %v3035 = vunpack.c.l.b16 %v2949
          %v3036 = vunpack.c.l.b16 %v2950
          %v3037 = vunpack.c.h.b16 %v2949
          %v3038 = vunpack.c.h.b16 %v2950
          %v3039 = vunpack.c.l.b16 %v2951
          %v3040 = vunpack.c.l.b16 %v2952
          %v3041 = vunpack.c.h.b16 %v2951
          %v3042 = vunpack.c.h.b16 %v2952
          %v3043 = vunpack.c.l.b16 %v2953
          %v3044 = vunpack.c.l.b16 %v2954
          %v3045 = vunpack.c.h.b16 %v2953
          %v3046 = vunpack.c.h.b16 %v2954
          %v3047 = vunpack.c.l.b16 %v2955
          %v3048 = vunpack.c.l.b16 %v2956
          %v3049 = vunpack.c.h.b16 %v2955
          %v3050 = vunpack.c.h.b16 %v2956
          %v3051 = vunpack.c.l.b16 %v2957
          %v3052 = vunpack.c.l.b16 %v2958
          %v3053 = vunpack.c.h.b16 %v2957
          %v3054 = vunpack.c.h.b16 %v2958
          %v3055 = vpack.c.b16 %v2992, %v2991
          %v3056 = vpack.c.b16 %v2994, %v2993
          %v3057 = vpack.c.b16 %v2996, %v2995
          %v3058 = vpack.c.b16 %v2998, %v2997
          %v3059 = vpack.c.b16 %v3000, %v2999
          %v3060 = vpack.c.b16 %v3002, %v3001
          %v3061 = vpack.c.b16 %v3004, %v3003
          %v3062 = vpack.c.b16 %v3006, %v3005
          %v3063 = vpack.c.b16 %v3008, %v3007
          %v3064 = vpack.c.b16 %v3010, %v3009
          %v3065 = vpack.c.b16 %v3012, %v3011
          %v3066 = vpack.c.b16 %v3014, %v3013
          %v3067 = vpack.c.b16 %v3016, %v3015
          %v3068 = vpack.c.b16 %v3018, %v3017
          %v3069 = vpack.c.b16 %v3020, %v3019
          %v3070 = vpack.c.b16 %v3022, %v3021
          %v3071 = vpack.c.b16 %v3024, %v3023
          %v3072 = vpack.c.b16 %v3026, %v3025
          %v3073 = vpack.c.b16 %v3028, %v3027
          %v3074 = vpack.c.b16 %v3030, %v3029
          %v3075 = vpack.c.b16 %v3032, %v3031
          %v3076 = vpack.c.b16 %v3034, %v3033
          %v3077 = vpack.c.b16 %v3036, %v3035
          %v3078 = vpack.c.b16 %v3038, %v3037
          %v3079 = vpack.c.b16 %v3040, %v3039
          %v3080 = vpack.c.b16 %v3042, %v3041
          %v3081 = vpack.c.b16 %v3044, %v3043
          %v3082 = vpack.c.b16 %v3046, %v3045
          %v3083 = vpack.c.b16 %v3048, %v3047
          %v3084 = vpack.c.b16 %v3050, %v3049
          %v3085 = vpack.c.b16 %v3052, %v3051
          %v3086 = vpack.c.b16 %v3054, %v3053
          %3119 = vst [vmem:[%s476] sm:$0xff] %v3055
          %3120 = vst [vmem:[%s476 + $0x8] sm:$0xff] %v3056
          %3121 = vst [vmem:[%s476 + $0x10] sm:$0xff] %v3057
          %3122 = vst [vmem:[%s476 + $0x18] sm:$0xff] %v3058
          %3123 = vst [vmem:[%s476 + $0x20] sm:$0xff] %v3059
          %3124 = vst [vmem:[%s476 + $0x28] sm:$0xff] %v3060
          %3125 = vst [vmem:[%s476 + $0x30] sm:$0xff] %v3061
          %3126 = vst [vmem:[%s476 + $0x38] sm:$0xff] %v3062
          %3127 = vst [vmem:[%s476 + $0x40] sm:$0xff] %v3063
          %3128 = vst [vmem:[%s476 + $0x48] sm:$0xff] %v3064
          %3129 = vst [vmem:[%s476 + $0x50] sm:$0xff] %v3065
          %3130 = vst [vmem:[%s476 + $0x58] sm:$0xff] %v3066
          %3131 = vst [vmem:[%s476 + $0x60] sm:$0xff] %v3067
          %3132 = vst [vmem:[%s476 + $0x68] sm:$0xff] %v3068
          %3133 = vst [vmem:[%s476 + $0x70] sm:$0xff] %v3069
          %3134 = vst [vmem:[%s476 + $0x78] sm:$0xff] %v3070
          %3135 = vst [vmem:[%s476 + $0x80] sm:$0xff] %v3071
          %3136 = vst [vmem:[%s476 + $0x88] sm:$0xff] %v3072
          %3137 = vst [vmem:[%s476 + $0x90] sm:$0xff] %v3073
          %3138 = vst [vmem:[%s476 + $0x98] sm:$0xff] %v3074
          %3139 = vst [vmem:[%s476 + $0xa0] sm:$0xff] %v3075
          %3140 = vst [vmem:[%s476 + $0xa8] sm:$0xff] %v3076
          %3141 = vst [vmem:[%s476 + $0xb0] sm:$0xff] %v3077
          %3142 = vst [vmem:[%s476 + $0xb8] sm:$0xff] %v3078
          %3143 = vst [vmem:[%s476 + $0xc0] sm:$0xff] %v3079
          %3144 = vst [vmem:[%s476 + $0xc8] sm:$0xff] %v3080
          %3145 = vst [vmem:[%s476 + $0xd0] sm:$0xff] %v3081
          %3146 = vst [vmem:[%s476 + $0xd8] sm:$0xff] %v3082
          %3147 = vst [vmem:[%s476 + $0xe0] sm:$0xff] %v3083
          %3148 = vst [vmem:[%s476 + $0xe8] sm:$0xff] %v3084
          %3149 = vst [vmem:[%s476 + $0xf0] sm:$0xff] %v3085
          %3150 = vst [vmem:[%s476 + $0xf8] sm:$0xff] %v3086
        $region106: #{tpu_custom_call.1} parent=77 // pred_fallthru
          _
        %s3151 = sand.u32 %s219, 1
        %s3152 = scalar_lea.sflag [#allocation6], %s3151
        %s3153 = sand.u32 %s219, 1
        %s3154 = smul.addr %s3153, 256
        %s3155 = scalar_lea.vmem [#allocation11], %s3154
        // Predicated region
        $region107: #{tpu_custom_call.1} parent=77 // pred_check
          %p3156 = pneg %p229
        $region108: #{tpu_custom_call.1} parent=77 // pred_check_branch
          %3158 = sbr.rel (%p3156) target = $region110
        $region109: #{tpu_custom_call.1} parent=77 // pred_region
          %s3159 = smul.u32 32, %s32
          %s3160 = smul.u32 2, %s31
          %s3162 = ssub.s32 4096, 4096
          %3163 = vsyncadd %s3152, %s3162
          %s3164 = smul.addr %s3159, 4
          %s3165 = sadd.s32 %s3160, %s3164
          %s3166 = smul.addr %s3165, 64
          %s3167 = scalar_lea.hbm %s6, %s3166
          %s3168 = sshll.u32 %s3155, 4
          %s3169 = int_to_ptr.vmem [resolvable:$true] %s3168
          %3174 = dma.vmem_to_hbm [thread:$0]  %s3169, 4096, %s3167, %s3152, 128, 256, 8
        $region110: #{tpu_custom_call.1} parent=77 // pred_fallthru
          _
      $region78: #{tpu_custom_call.1} parent=5 // pred_fallthru
        _
      %p3175 = scmp.le.s32.totalorder 2, %s21
      // Predicated region
      $region111: #{tpu_custom_call.1} parent=5 // pred_check
        %p3176 = pneg %p3175
      $region112: #{tpu_custom_call.1} parent=5 // pred_check_branch
        %3178 = sbr.rel (%p3176) target = $region114
      $region113: #{tpu_custom_call.1} parent=5 // pred_region
        %s3179 = ssub.s32 %s21, 2
        // Predicated region
        $region115: #{tpu_custom_call.1} parent=113 // pred_check
          %p3180 = pneg %p235
        $region116: #{tpu_custom_call.1} parent=113 // pred_check_branch
          %3182 = sbr.rel (%p3180) target = $region118
        $region117: #{tpu_custom_call.1} parent=113 // pred_region
          %s3183 = sand.u32 %s220, 1
          %s3184 = scalar_lea.sflag [#allocation6], %s3183
          %s3185 = sand.u32 %s220, 1
          %s3186 = smul.addr %s3185, 256
          %s3187 = scalar_lea.vmem [#allocation11], %s3186
          %3188 = dma.done %s3184, 4096
        $region118: #{tpu_custom_call.1} parent=113 // pred_fallthru
          _
      $region114: #{tpu_custom_call.1} parent=5 // pred_fallthru
        _
    $region6: #{tpu_custom_call.1} parent=1 // loop_footer
      %s25 = sadd.s32 1, %s21
    $region7: #{tpu_custom_call.1} parent=1 // loop_footer_branch
      %20 = sbr.rel target = $region3
    $region8: #{tpu_custom_call.1} parent=1 // loop_exit
      _
    %3189 = vsyncpa [#allocation5], 1
    %s3190 = scalar_lea.sflag [#allocation5], 1
    %3191 = vsyncpa %s3190, 1
    %3192 = vsyncpa [#allocation8], 1
    %s3193 = scalar_lea.sflag [#allocation8], 1
    %3194 = vsyncpa %s3193, 1
    %3195 = vsyncpa [#allocation6], 1
    %s3196 = scalar_lea.sflag [#allocation6], 1
    %3197 = vsyncpa %s3196, 1

</llo_original>
